<compile_context>
chip_gen: v5e
topology: v5e:2x2
jax: 0.10.0
libtpu: 0.0.40
codegen_flags: <defaults>
</compile_context>

<pallas_src>
import functools
import math

import jax
import jax.numpy as jnp
from jax.experimental import pallas as pl
from jax.experimental.pallas import tpu as pltpu


_VMEM_LIMIT = 48 * 1024 * 1024


# ----------------------------------------------------------------------------
# Tiling helpers
# ----------------------------------------------------------------------------

def _round_up(x, m):
    return (x + m - 1) // m * m


def _cpad(c):
    """Channel pad width used throughout the block (lane-dense)."""
    return _round_up(c, 128)


def _tile_m(M, max_tile=512, align=16, min_blocks=2):
    """Pick (padded_M, tile_M).  Forces >= min_blocks blocks when possible so
    the parallel grid extent is >= 2 (both v7x TensorCores busy)."""
    nb = max(min_blocks, -(-M // max_tile))
    tm = _round_up(-(-M // nb), align)
    nb = -(-M // tm)
    return tm * nb, tm


def _divisor_block(dim, max_tile, quantum=128):
    """Largest tile that divides `dim`, is a multiple of `quantum` and is
    <= max_tile.  `dim` must be a positive multiple of `quantum`."""
    best = quantum
    cand = quantum
    while cand <= min(dim, max_tile):
        if dim % cand == 0:
            best = cand
        cand += quantum
    return best


# ----------------------------------------------------------------------------
# Fused GEMM (+ shift + optional residual + ReLU) kernel  --  1x1 convs
# ----------------------------------------------------------------------------

def _gemm_bias_act_kernel(a_ref, b_ref, shift_ref, *rest, relu, has_residual):
    if has_residual:
        res_ref, o_ref, acc_ref = rest
    else:
        res_ref = None
        o_ref, acc_ref = rest

    k = pl.program_id(2)

    @pl.when(k == 0)
    def _():
        acc_ref[...] = jnp.zeros_like(acc_ref)

    # bf16 x bf16 MXU matmul, f32 accumulation.
    acc_ref[...] += jnp.dot(a_ref[...], b_ref[...],
                            preferred_element_type=jnp.float32)

    @pl.when(k == pl.num_programs(2) - 1)
    def _():
        y = acc_ref[...] + shift_ref[...]
        if has_residual:
            y = y + res_ref[...].astype(jnp.float32)
        if relu:
            y = jnp.maximum(y, 0.0)
        o_ref[...] = y.astype(o_ref.dtype)


def matmul_bias_act(a, b, shift, residual=None, relu=True,
                    out_dtype=jnp.bfloat16):
    """relu?((a @ b) + shift [+ residual]).

    a: (M, K) bf16 activations (K already channel-padded, multiple of 128).
    b: (K, N) bf16 weights, BN scale pre-folded, pre-padded (N multiple of 128).
    shift: (1, N) f32 folded BatchNorm shift (+ conv bias).
    residual: optional (M, N) bf16 tensor added before the final ReLU.
    """
    M, K = a.shape
    K2, Nc = b.shape
    assert K == K2 and K % 128 == 0 and Nc % 128 == 0

    Mp, TM = _tile_m(M, max_tile=512, align=16, min_blocks=2)
    TN = _divisor_block(Nc, 512)
    TK = _divisor_block(K, 1024)

    a_p = a if Mp == M else jnp.pad(a, ((0, Mp - M), (0, 0)))
    inputs = [a_p, b, shift]
    in_specs = [
        pl.BlockSpec((TM, TK), lambda i, j, k: (i, k)),
        pl.BlockSpec((TK, TN), lambda i, j, k: (k, j)),
        pl.BlockSpec((1, TN), lambda i, j, k: (0, j)),
    ]

    has_residual = residual is not None
    if has_residual:
        r_p = residual if Mp == M else jnp.pad(residual, ((0, Mp - M), (0, 0)))
        inputs.append(r_p)
        in_specs.append(pl.BlockSpec((TM, TN), lambda i, j, k: (i, j)))

    grid = (Mp // TM, Nc // TN, K // TK)

    out = pl.pallas_call(
        functools.partial(_gemm_bias_act_kernel, relu=relu,
                          has_residual=has_residual),
        out_shape=jax.ShapeDtypeStruct((Mp, Nc), out_dtype),
        grid_spec=pltpu.PrefetchScalarGridSpec(
            num_scalar_prefetch=0,
            grid=grid,
            in_specs=in_specs,
            out_specs=pl.BlockSpec((TM, TN), lambda i, j, k: (i, j)),
            scratch_shapes=[pltpu.VMEM((TM, TN), jnp.float32)],
        ),
        compiler_params=pltpu.CompilerParams(
            dimension_semantics=("parallel", "parallel", "arbitrary"),
            vmem_limit_bytes=_VMEM_LIMIT,
        ),
    )(*inputs)
    return out if Mp == M else out[:M]


# ----------------------------------------------------------------------------
# 3x3 conv via in-kernel tap accumulation (no im2col in HBM)
# ----------------------------------------------------------------------------

def _conv3x3_kernel(x_ref, w_ref, shift_ref, o_ref, acc_ref, *, s, Ho, Wo, relu):
    # x_ref:    (s*s, Hq, Wq, C)   phase-split padded activation (one image)
    # w_ref:    (9, C, TN)         per-tap weights (BN scale folded, bf16)
    # shift_ref:(1, TN)            folded BN shift (+ conv bias)
    # o_ref:    (1, Ho*Wo, TN)
    # acc_ref:  (Ho*Wo, TN) f32 scratch
    C = w_ref.shape[1]
    acc_ref[...] = jnp.zeros_like(acc_ref)
    for di in range(3):
        for dj in range(3):
            phase = (di % s) * s + (dj % s)
            hh, ww = di // s, dj // s
            a = x_ref[phase, hh:hh + Ho, ww:ww + Wo, :].reshape(Ho * Wo, C)
            acc_ref[...] += jnp.dot(a, w_ref[di * 3 + dj],
                                    preferred_element_type=jnp.float32)
    y = acc_ref[...] + shift_ref[...]
    if relu:
        y = jnp.maximum(y, 0.0)
    o_ref[0] = y.astype(o_ref.dtype)


def conv3x3_bias_act(x, w, shift, *, stride, relu):
    """3x3 / pad-1 / stride-s conv + BN + ReLU with in-kernel tap accumulation.

    x: (N, H, W, Cp) bf16 (channels pre-padded);  w: (9, Cp, Np) bf16;
    shift: (1, Np) f32.  Returns ((N, Ho*Wo, Np) bf16, Ho, Wo).
    """
    N, H, W, Cp = x.shape
    taps, Cp2, Np = w.shape
    assert taps == 9 and Cp == Cp2 and Np % 128 == 0
    s = stride

    Ho = (H + 2 - 3) // s + 1
    Wo = (W + 2 - 3) // s + 1
    Hq = -(-(H + 2) // s)
    Wq = -(-(W + 2) // s)

    # Zero-pad (top/left = 1, bottom/right = whatever reaches Hq*s / Wq*s) and
    # phase-split so every tap is a *contiguous* window per phase slab.
    # For s == 1 this is just the ordinary padded tensor (single phase).
    xp = jnp.pad(x, ((0, 0), (1, Hq * s - H - 1), (1, Wq * s - W - 1), (0, 0)))
    xph = (xp.reshape(N, Hq, s, Wq, s, Cp)
             .transpose(0, 2, 4, 1, 3, 5)
             .reshape(N * s * s, Hq, Wq, Cp))

    TN = _divisor_block(Np, 512)
    grid = (N, Np // TN)

    out = pl.pallas_call(
        functools.partial(_conv3x3_kernel, s=s, Ho=Ho, Wo=Wo, relu=relu),
        out_shape=jax.ShapeDtypeStruct((N, Ho * Wo, Np), jnp.bfloat16),
        grid_spec=pltpu.PrefetchScalarGridSpec(
            num_scalar_prefetch=0,
            grid=grid,
            in_specs=[
                pl.BlockSpec((s * s, Hq, Wq, Cp), lambda n, j: (n, 0, 0, 0)),
                pl.BlockSpec((9, Cp, TN), lambda n, j: (0, 0, j)),
                pl.BlockSpec((1, TN), lambda n, j: (0, j)),
            ],
            out_specs=pl.BlockSpec((1, Ho * Wo, TN), lambda n, j: (n, 0, j)),
            scratch_shapes=[pltpu.VMEM((Ho * Wo, TN), jnp.float32)],
        ),
        compiler_params=pltpu.CompilerParams(
            dimension_semantics=("parallel", "parallel"),
            vmem_limit_bytes=_VMEM_LIMIT,
        ),
    )(xph, w, shift)
    return out, Ho, Wo


# ----------------------------------------------------------------------------
# Parameters (mirrors PyTorch Bottleneck: conv bias=True, BN eval mode)
# ----------------------------------------------------------------------------

def _fold_conv_bn(key, ksz, cin, cout, cin_pad, cout_pad, bias, eps=1e-5):
    wkey, bkey = jax.random.split(key)
    fan_in = ksz * ksz * cin
    bound = 1.0 / math.sqrt(fan_in)
    w = jax.random.uniform(wkey, (ksz, ksz, cin, cout), jnp.float32,
                           -bound, bound)
    b = (jax.random.uniform(bkey, (cout,), jnp.float32, -bound, bound)
         if bias else jnp.zeros((cout,), jnp.float32))
    # BatchNorm2d right after construction, eval mode: gamma=1, beta=0,
    # running_mean=0, running_var=1.
    gamma = jnp.ones((cout,), jnp.float32)
    beta = jnp.zeros((cout,), jnp.float32)
    mean = jnp.zeros((cout,), jnp.float32)
    var = jnp.ones((cout,), jnp.float32)
    scale = gamma / jnp.sqrt(var + eps)
    shift = beta + (b - mean) * scale          # conv bias folded into shift
    # Fold BN scale into the bf16 weights (one fewer kernel operand).
    w_folded = (w * scale[None, None, None, :]).astype(jnp.bfloat16)
    # Pad once, at build time, to the GEMM layout used by the kernels.
    w_gemm = jnp.zeros((ksz * ksz, cin_pad, cout_pad), jnp.bfloat16)
    w_gemm = w_gemm.at[:, :cin, :cout].set(w_folded.reshape(ksz * ksz, cin, cout))
    if ksz == 1:
        w_gemm = w_gemm[0]                     # (cin_pad, cout_pad)
    shift_p = jnp.zeros((1, cout_pad), jnp.float32).at[0, :cout].set(shift)
    return {"w": w_gemm, "shift": shift_p}


def build_bottleneck_params(key, inplanes, planes, stride, eps=1e-5):
    expansion = 4
    cin_p = _cpad(inplanes)
    mid_p = _cpad(planes)
    out_p = _cpad(planes * expansion)
    keys = jax.random.split(key, 4)
    params, meta = {}, {}

    def add(name, k, ksz, cin, cout, cinp, coutp, bias):
        params[name] = _fold_conv_bn(k, ksz, cin, cout, cinp, coutp, bias, eps)
        meta[name] = (ksz, cin, cout)

    add("conv1", keys[0], 1, inplanes, planes, cin_p, mid_p, True)
    add("conv2", keys[1], 3, planes, planes, mid_p, mid_p, True)
    add("conv3", keys[2], 1, planes, planes * expansion, mid_p, out_p, True)
    if stride != 1 or inplanes != planes * expansion:
        # Standard ResNet downsample: 1x1 stride-s conv (bias=False) + BN.
        add("down", keys[3], 1, inplanes, planes * expansion, cin_p, out_p,
            False)
    return params, meta


# ----------------------------------------------------------------------------
# Bottleneck forward
# ----------------------------------------------------------------------------

def bottleneck_forward(params, x_nchw, *, stride, out_channels):
    N, Cin, H, W = x_nchw.shape
    cin_p = params["conv1"]["w"].shape[0]

    # NCHW -> NHWC, bf16, channel pad once (zeros); padded channels stay exact
    # zeros through the whole block and are sliced off once at the very end.
    x = jnp.transpose(x_nchw, (0, 2, 3, 1)).astype(jnp.bfloat16)
    if cin_p != Cin:
        x = jnp.pad(x, ((0, 0), (0, 0), (0, 0), (0, cin_p - Cin)))

    # conv1 (1x1) + bn1 + relu
    y = matmul_bias_act(x.reshape(N * H * W, cin_p), params["conv1"]["w"],
                        params["conv1"]["shift"], relu=True)
    mid_p = y.shape[1]

    # conv2 (3x3, stride, pad=1) + bn2 + relu  -- in-kernel tap accumulation
    y, Ho, Wo = conv3x3_bias_act(y.reshape(N, H, W, mid_p),
                                 params["conv2"]["w"], params["conv2"]["shift"],
                                 stride=stride, relu=True)

    # Residual branch.
    # TODO(synk): conv1 and the downsample GEMM could share one pallas_call
    # (concatenated N) when stride == 1; at stride > 1 they have different
    # output grids, so they stay separate here.
    if "down" in params:
        xs = x[:, ::stride, ::stride, :]                       # (N,Ho,Wo,cin_p)
        residual = matmul_bias_act(xs.reshape(N * Ho * Wo, cin_p),
                                   params["down"]["w"], params["down"]["shift"],
                                   relu=False)
    else:
        residual = x.reshape(N * Ho * Wo, cin_p)

    # conv3 (1x1) + bn3 + residual add + relu, fused in one GEMM epilogue.
    out = matmul_bias_act(y.reshape(N * Ho * Wo, mid_p), params["conv3"]["w"],
                          params["conv3"]["shift"], residual=residual,
                          relu=True)
    out_p = out.shape[1]
    out = out.reshape(N, Ho, Wo, out_p)[..., :out_channels]
    # Transpose in bf16 (cheap stores), cast to f32 only at the end.
    return jnp.transpose(out, (0, 3, 1, 2)).astype(jnp.float32)


# ----------------------------------------------------------------------------
# Pure-JAX reference (same folded bf16 params, mirrored roundings)
# ----------------------------------------------------------------------------

def reference_forward(params, meta, x_nchw, stride):
    def wb(name):
        ksz, cin, cout = meta[name]
        w = params[name]["w"]
        if w.ndim == 2:
            w = w[None]
        w = w[:, :cin, :cout].astype(jnp.float32).reshape(ksz, ksz, cin, cout)
        sh = params[name]["shift"][0, :cout].astype(jnp.float32)
        return w, sh

    def conv(x, name, s, pad, relu):
        w, sh = wb(name)
        y = jax.lax.conv_general_dilated(
            x, w, (s, s), [(pad, pad), (pad, pad)],
            dimension_numbers=("NHWC", "HWIO", "NHWC"))
        y = y + sh[None, None, None, :]
        if relu:
            y = jnp.maximum(y, 0.0)
        return y

    def bf(t):
        return t.astype(jnp.bfloat16).astype(jnp.float32)

    x = bf(jnp.transpose(x_nchw, (0, 2, 3, 1)))
    if "down" in params:
        residual = bf(conv(x, "down", stride, 0, False))
    else:
        residual = x
    y = bf(conv(x, "conv1", 1, 0, True))
    y = bf(conv(y, "conv2", stride, 1, True))
    y = conv(y, "conv3", 1, 0, False)
    y = bf(jnp.maximum(y + residual, 0.0))
    return jnp.transpose(y, (0, 3, 1, 2))


# ----------------------------------------------------------------------------
# Main
# ----------------------------------------------------------------------------

if __name__ == "__main__":
    N, INPLANES, PLANES, H, W, STRIDE = 2, 64, 16, 16, 16, 2
    OUT_CHANNELS = PLANES * 4

    key = jax.random.PRNGKey(0)
    pkey, xkey = jax.random.split(key)
    params, meta = build_bottleneck_params(pkey, INPLANES, PLANES, STRIDE)

    # PyTorch-convention NCHW input.
    x = jax.random.normal(xkey, (N, INPLANES, H, W), jnp.float32)

    fwd = jax.jit(functools.partial(bottleneck_forward, stride=STRIDE,
                                    out_channels=OUT_CHANNELS))
    out = fwd(params, x)
    jax.block_until_ready(out)

    Ho, Wo = H // STRIDE, W // STRIDE
    assert out.shape == (N, OUT_CHANNELS, Ho, Wo), out.shape
    assert bool(jnp.all(jnp.isfinite(out)))

    ref = reference_forward(params, meta, x, STRIDE)
    max_diff = float(jnp.max(jnp.abs(out - ref)))
    assert max_diff < 2e-2, f"mismatch vs reference: {max_diff}"

    print("KERNEL_OK")
</pallas_src>

<mosaic_0001>
module attributes {stable_mosaic.version = 11 : i64} {
  func.func @_gemm_bias_act_kernel(%arg0: i32, %arg1: i32, %arg2: i32, %arg3: memref<64x128xbf16, #tpu.memory_space<vmem>>, %arg4: memref<128x128xbf16, #tpu.memory_space<vmem>>, %arg5: memref<1x128xf32, #tpu.memory_space<vmem>>, %arg6: memref<64x128xbf16, #tpu.memory_space<vmem>>, %arg7: memref<64x128xf32, #tpu.memory_space<vmem>>) attributes {dimension_semantics = [#tpu.dimension_semantics<parallel>, #tpu.dimension_semantics<parallel>, #tpu.dimension_semantics<arbitrary>], iteration_bounds = array<i64: 2, 1, 1>, scalar_prefetch = 0 : i64, scratch_operands = 1 : i64, tpu.core_type = #tpu.core_type<tc>, window_params = [{transform_indices = @transform_0, window_bounds = array<i64: 64, 128>}, {transform_indices = @transform_1, window_bounds = array<i64: 128, 128>}, {transform_indices = @transform_2, window_bounds = array<i64: 1, 128>}, {transform_indices = @transform_3, window_bounds = array<i64: 64, 128>}]} {
    %c0_i32 = arith.constant 0 : i32
    %0 = arith.cmpi eq, %arg2, %c0_i32 : i32
    %1 = arith.extui %0 : i1 to i32
    %c0_i32_0 = arith.constant 0 : i32
    %2 = arith.cmpi ne, %1, %c0_i32_0 : i32
    scf.if %2 {
      %cst_10 = arith.constant 0.000000e+00 : f32
      %12 = vector.broadcast %cst_10 : f32 to vector<64x128xf32>
      %c0_11 = arith.constant 0 : index
      %c0_12 = arith.constant 0 : index
      %13 = vector.load %arg7[%c0_11, %c0_12] : memref<64x128xf32, #tpu.memory_space<vmem>>, vector<64x128xf32>
      tpu.vector_store %arg7[%c0_11, %c0_12], %12 {strides = array<i32>} : memref<64x128xf32, #tpu.memory_space<vmem>>, vector<64x128xf32>,
    } else {
    }
    %c0 = arith.constant 0 : index
    %c0_1 = arith.constant 0 : index
    %3 = vector.load %arg7[%c0, %c0_1] : memref<64x128xf32, #tpu.memory_space<vmem>>, vector<64x128xf32>
    %c0_2 = arith.constant 0 : index
    %c0_3 = arith.constant 0 : index
    %4 = vector.load %arg3[%c0_2, %c0_3] : memref<64x128xbf16, #tpu.memory_space<vmem>>, vector<64x128xbf16>
    %c0_4 = arith.constant 0 : index
    %c0_5 = arith.constant 0 : index
    %5 = vector.load %arg4[%c0_4, %c0_5] : memref<128x128xbf16, #tpu.memory_space<vmem>>, vector<128x128xbf16>
    %cst = arith.constant dense<0.000000e+00> : vector<64x128xf32>
    %6 = tpu.matmul %4, %5, %cst {dimension_numbers = #tpu.dot_dimension_numbers<[1], [0], [0], [1], [0, 0, 1, 1], [], []>} : vector<64x128xbf16>, vector<128x128xbf16>, vector<64x128xf32> -> vector<64x128xf32>
    %7 = arith.addf %3, %6 : vector<64x128xf32>
    %c0_6 = arith.constant 0 : index
    %c0_7 = arith.constant 0 : index
    %8 = vector.load %arg7[%c0_6, %c0_7] : memref<64x128xf32, #tpu.memory_space<vmem>>, vector<64x128xf32>
    tpu.vector_store %arg7[%c0_6, %c0_7], %7 {strides = array<i32>} : memref<64x128xf32, #tpu.memory_space<vmem>>, vector<64x128xf32>,
    %c0_i32_8 = arith.constant 0 : i32
    %9 = arith.cmpi eq, %arg2, %c0_i32_8 : i32
    %10 = arith.extui %9 : i1 to i32
    %c0_i32_9 = arith.constant 0 : i32
    %11 = arith.cmpi ne, %10, %c0_i32_9 : i32
    scf.if %11 {
      %c0_10 = arith.constant 0 : index
      %c0_11 = arith.constant 0 : index
      %12 = vector.load %arg7[%c0_10, %c0_11] : memref<64x128xf32, #tpu.memory_space<vmem>>, vector<64x128xf32>
      %c0_12 = arith.constant 0 : index
      %c0_13 = arith.constant 0 : index
      %13 = vector.load %arg5[%c0_12, %c0_13] : memref<1x128xf32, #tpu.memory_space<vmem>>, vector<1x128xf32>
      %14 = vector.broadcast %13 : vector<1x128xf32> to vector<64x128xf32>
      %15 = arith.addf %12, %14 : vector<64x128xf32>
      %16 = arith.truncf %15 : vector<64x128xf32> to vector<64x128xbf16>
      %c0_14 = arith.constant 0 : index
      %c0_15 = arith.constant 0 : index
      %17 = vector.load %arg6[%c0_14, %c0_15] : memref<64x128xbf16, #tpu.memory_space<vmem>>, vector<64x128xbf16>
      tpu.vector_store %arg6[%c0_14, %c0_15], %16 {strides = array<i32>} : memref<64x128xbf16, #tpu.memory_space<vmem>>, vector<64x128xbf16>,
    } else {
    }
    return
  }
  func.func @transform_0(%arg0: i32, %arg1: i32, %arg2: i32) -> (i32, i32) {
    %c0_i32 = arith.constant 0 : i32
    return %arg0, %arg2 : i32, i32
  }
  func.func @transform_1(%arg0: i32, %arg1: i32, %arg2: i32) -> (i32, i32) {
    %c0_i32 = arith.constant 0 : i32
    return %arg2, %arg1 : i32, i32
  }
  func.func @transform_2(%arg0: i32, %arg1: i32, %arg2: i32) -> (i32, i32) {
    %c0_i32 = arith.constant 0 : i32
    %c0_i32_0 = arith.constant 0 : i32
    return %c0_i32, %arg1 : i32, i32
  }
  func.func @transform_3(%arg0: i32, %arg1: i32, %arg2: i32) -> (i32, i32) {
    %c0_i32 = arith.constant 0 : i32
    return %arg0, %arg1 : i32, i32
  }
}

module attributes {stable_mosaic.version = 11 : i64} {
  func.func @_gemm_bias_act_kernel(%arg0: i32, %arg1: i32, %arg2: i32, %arg3: memref<256x128xbf16, #tpu.memory_space<vmem>>, %arg4: memref<128x128xbf16, #tpu.memory_space<vmem>>, %arg5: memref<1x128xf32, #tpu.memory_space<vmem>>, %arg6: memref<256x128xbf16, #tpu.memory_space<vmem>>, %arg7: memref<256x128xf32, #tpu.memory_space<vmem>>) attributes {dimension_semantics = [#tpu.dimension_semantics<parallel>, #tpu.dimension_semantics<parallel>, #tpu.dimension_semantics<arbitrary>], iteration_bounds = array<i64: 2, 1, 1>, scalar_prefetch = 0 : i64, scratch_operands = 1 : i64, tpu.core_type = #tpu.core_type<tc>, window_params = [{transform_indices = @transform_0, window_bounds = array<i64: 256, 128>}, {transform_indices = @transform_1, window_bounds = array<i64: 128, 128>}, {transform_indices = @transform_2, window_bounds = array<i64: 1, 128>}, {transform_indices = @transform_3, window_bounds = array<i64: 256, 128>}]} {
    %c0_i32 = arith.constant 0 : i32
    %0 = arith.cmpi eq, %arg2, %c0_i32 : i32
    %1 = arith.extui %0 : i1 to i32
    %c0_i32_0 = arith.constant 0 : i32
    %2 = arith.cmpi ne, %1, %c0_i32_0 : i32
    scf.if %2 {
      %cst_10 = arith.constant 0.000000e+00 : f32
      %12 = vector.broadcast %cst_10 : f32 to vector<256x128xf32>
      %c0_11 = arith.constant 0 : index
      %c0_12 = arith.constant 0 : index
      %13 = vector.load %arg7[%c0_11, %c0_12] : memref<256x128xf32, #tpu.memory_space<vmem>>, vector<256x128xf32>
      tpu.vector_store %arg7[%c0_11, %c0_12], %12 {strides = array<i32>} : memref<256x128xf32, #tpu.memory_space<vmem>>, vector<256x128xf32>,
    } else {
    }
    %c0 = arith.constant 0 : index
    %c0_1 = arith.constant 0 : index
    %3 = vector.load %arg7[%c0, %c0_1] : memref<256x128xf32, #tpu.memory_space<vmem>>, vector<256x128xf32>
    %c0_2 = arith.constant 0 : index
    %c0_3 = arith.constant 0 : index
    %4 = vector.load %arg3[%c0_2, %c0_3] : memref<256x128xbf16, #tpu.memory_space<vmem>>, vector<256x128xbf16>
    %c0_4 = arith.constant 0 : index
    %c0_5 = arith.constant 0 : index
    %5 = vector.load %arg4[%c0_4, %c0_5] : memref<128x128xbf16, #tpu.memory_space<vmem>>, vector<128x128xbf16>
    %cst = arith.constant dense<0.000000e+00> : vector<256x128xf32>
    %6 = tpu.matmul %4, %5, %cst {dimension_numbers = #tpu.dot_dimension_numbers<[1], [0], [0], [1], [0, 0, 1, 1], [], []>} : vector<256x128xbf16>, vector<128x128xbf16>, vector<256x128xf32> -> vector<256x128xf32>
    %7 = arith.addf %3, %6 : vector<256x128xf32>
    %c0_6 = arith.constant 0 : index
    %c0_7 = arith.constant 0 : index
    %8 = vector.load %arg7[%c0_6, %c0_7] : memref<256x128xf32, #tpu.memory_space<vmem>>, vector<256x128xf32>
    tpu.vector_store %arg7[%c0_6, %c0_7], %7 {strides = array<i32>} : memref<256x128xf32, #tpu.memory_space<vmem>>, vector<256x128xf32>,
    %c0_i32_8 = arith.constant 0 : i32
    %9 = arith.cmpi eq, %arg2, %c0_i32_8 : i32
    %10 = arith.extui %9 : i1 to i32
    %c0_i32_9 = arith.constant 0 : i32
    %11 = arith.cmpi ne, %10, %c0_i32_9 : i32
    scf.if %11 {
      %c0_10 = arith.constant 0 : index
      %c0_11 = arith.constant 0 : index
      %12 = vector.load %arg7[%c0_10, %c0_11] : memref<256x128xf32, #tpu.memory_space<vmem>>, vector<256x128xf32>
      %c0_12 = arith.constant 0 : index
      %c0_13 = arith.constant 0 : index
      %13 = vector.load %arg5[%c0_12, %c0_13] : memref<1x128xf32, #tpu.memory_space<vmem>>, vector<1x128xf32>
      %14 = vector.broadcast %13 : vector<1x128xf32> to vector<256x128xf32>
      %15 = arith.addf %12, %14 : vector<256x128xf32>
      %cst_14 = arith.constant 0.000000e+00 : f32
      %16 = vector.broadcast %cst_14 : f32 to vector<256x128xf32>
      %17 = arith.maximumf %15, %16 : vector<256x128xf32>
      %18 = arith.truncf %17 : vector<256x128xf32> to vector<256x128xbf16>
      %c0_15 = arith.constant 0 : index
      %c0_16 = arith.constant 0 : index
      %19 = vector.load %arg6[%c0_15, %c0_16] : memref<256x128xbf16, #tpu.memory_space<vmem>>, vector<256x128xbf16>
      tpu.vector_store %arg6[%c0_15, %c0_16], %18 {strides = array<i32>} : memref<256x128xbf16, #tpu.memory_space<vmem>>, vector<256x128xbf16>,
    } else {
    }
    return
  }
  func.func @transform_0(%arg0: i32, %arg1: i32, %arg2: i32) -> (i32, i32) {
    %c0_i32 = arith.constant 0 : i32
    return %arg0, %arg2 : i32, i32
  }
  func.func @transform_1(%arg0: i32, %arg1: i32, %arg2: i32) -> (i32, i32) {
    %c0_i32 = arith.constant 0 : i32
    return %arg2, %arg1 : i32, i32
  }
  func.func @transform_2(%arg0: i32, %arg1: i32, %arg2: i32) -> (i32, i32) {
    %c0_i32 = arith.constant 0 : i32
    %c0_i32_0 = arith.constant 0 : i32
    return %c0_i32, %arg1 : i32, i32
  }
  func.func @transform_3(%arg0: i32, %arg1: i32, %arg2: i32) -> (i32, i32) {
    %c0_i32 = arith.constant 0 : i32
    return %arg0, %arg1 : i32, i32
  }
}

module attributes {stable_mosaic.version = 11 : i64} {
  func.func @_conv3x3_kernel(%arg0: i32, %arg1: i32, %arg2: memref<4x9x9x128xbf16, #tpu.memory_space<vmem>>, %arg3: memref<9x128x128xbf16, #tpu.memory_space<vmem>>, %arg4: memref<1x128xf32, #tpu.memory_space<vmem>>, %arg5: memref<1x64x128xbf16, #tpu.memory_space<vmem>>, %arg6: memref<64x128xf32, #tpu.memory_space<vmem>>) attributes {dimension_semantics = [#tpu.dimension_semantics<parallel>, #tpu.dimension_semantics<parallel>], iteration_bounds = array<i64: 2, 1>, scalar_prefetch = 0 : i64, scratch_operands = 1 : i64, tpu.core_type = #tpu.core_type<tc>, window_params = [{transform_indices = @transform_0, window_bounds = array<i64: 4, 9, 9, 128>}, {transform_indices = @transform_1, window_bounds = array<i64: 9, 128, 128>}, {transform_indices = @transform_2, window_bounds = array<i64: 1, 128>}, {transform_indices = @transform_3, window_bounds = array<i64: 1, 64, 128>}]} {
    %cst = arith.constant 0.000000e+00 : f32
    %0 = vector.broadcast %cst : f32 to vector<64x128xf32>
    %c0 = arith.constant 0 : index
    %c0_0 = arith.constant 0 : index
    %1 = vector.load %arg6[%c0, %c0_0] : memref<64x128xf32, #tpu.memory_space<vmem>>, vector<64x128xf32>
    tpu.vector_store %arg6[%c0, %c0_0], %0 {strides = array<i32>} : memref<64x128xf32, #tpu.memory_space<vmem>>, vector<64x128xf32>,
    %c0_1 = arith.constant 0 : index
    %c0_2 = arith.constant 0 : index
    %c0_3 = arith.constant 0 : index
    %c0_4 = arith.constant 0 : index
    %2 = vector.load %arg2[%c0_1, %c0_2, %c0_3, %c0_4] : memref<4x9x9x128xbf16, #tpu.memory_space<vmem>>, vector<1x8x8x128xbf16>
    %3 = vector.shape_cast %2 : vector<1x8x8x128xbf16> to vector<8x8x128xbf16>
    %4 = vector.shape_cast %3 : vector<8x8x128xbf16> to vector<64x128xbf16>
    %c0_5 = arith.constant 0 : index
    %c0_6 = arith.constant 0 : index
    %5 = vector.load %arg6[%c0_5, %c0_6] : memref<64x128xf32, #tpu.memory_space<vmem>>, vector<64x128xf32>
    %c0_7 = arith.constant 0 : index
    %c0_8 = arith.constant 0 : index
    %c0_9 = arith.constant 0 : index
    %6 = vector.load %arg3[%c0_7, %c0_8, %c0_9] : memref<9x128x128xbf16, #tpu.memory_space<vmem>>, vector<1x128x128xbf16>
    %7 = vector.shape_cast %6 : vector<1x128x128xbf16> to vector<128x128xbf16>
    %cst_10 = arith.constant dense<0.000000e+00> : vector<64x128xf32>
    %8 = tpu.matmul %4, %7, %cst_10 {dimension_numbers = #tpu.dot_dimension_numbers<[1], [0], [0], [1], [0, 0, 1, 1], [], []>} : vector<64x128xbf16>, vector<128x128xbf16>, vector<64x128xf32> -> vector<64x128xf32>
    %9 = arith.addf %5, %8 : vector<64x128xf32>
    %c0_11 = arith.constant 0 : index
    %c0_12 = arith.constant 0 : index
    %10 = vector.load %arg6[%c0_11, %c0_12] : memref<64x128xf32, #tpu.memory_space<vmem>>, vector<64x128xf32>
    tpu.vector_store %arg6[%c0_11, %c0_12], %9 {strides = array<i32>} : memref<64x128xf32, #tpu.memory_space<vmem>>, vector<64x128xf32>,
    %c1 = arith.constant 1 : index
    %c0_13 = arith.constant 0 : index
    %c0_14 = arith.constant 0 : index
    %c0_15 = arith.constant 0 : index
    %11 = vector.load %arg2[%c1, %c0_13, %c0_14, %c0_15] : memref<4x9x9x128xbf16, #tpu.memory_space<vmem>>, vector<1x8x8x128xbf16>
    %12 = vector.shape_cast %11 : vector<1x8x8x128xbf16> to vector<8x8x128xbf16>
    %13 = vector.shape_cast %12 : vector<8x8x128xbf16> to vector<64x128xbf16>
    %c0_16 = arith.constant 0 : index
    %c0_17 = arith.constant 0 : index
    %14 = vector.load %arg6[%c0_16, %c0_17] : memref<64x128xf32, #tpu.memory_space<vmem>>, vector<64x128xf32>
    %c1_18 = arith.constant 1 : index
    %c0_19 = arith.constant 0 : index
    %c0_20 = arith.constant 0 : index
    %15 = vector.load %arg3[%c1_18, %c0_19, %c0_20] : memref<9x128x128xbf16, #tpu.memory_space<vmem>>, vector<1x128x128xbf16>
    %16 = vector.shape_cast %15 : vector<1x128x128xbf16> to vector<128x128xbf16>
    %cst_21 = arith.constant dense<0.000000e+00> : vector<64x128xf32>
    %17 = tpu.matmul %13, %16, %cst_21 {dimension_numbers = #tpu.dot_dimension_numbers<[1], [0], [0], [1], [0, 0, 1, 1], [], []>} : vector<64x128xbf16>, vector<128x128xbf16>, vector<64x128xf32> -> vector<64x128xf32>
    %18 = arith.addf %14, %17 : vector<64x128xf32>
    %c0_22 = arith.constant 0 : index
    %c0_23 = arith.constant 0 : index
    %19 = vector.load %arg6[%c0_22, %c0_23] : memref<64x128xf32, #tpu.memory_space<vmem>>, vector<64x128xf32>
    tpu.vector_store %arg6[%c0_22, %c0_23], %18 {strides = array<i32>} : memref<64x128xf32, #tpu.memory_space<vmem>>, vector<64x128xf32>,
    %c0_24 = arith.constant 0 : index
    %c0_25 = arith.constant 0 : index
    %c1_26 = arith.constant 1 : index
    %c0_27 = arith.constant 0 : index
    %20 = vector.load %arg2[%c0_24, %c0_25, %c1_26, %c0_27] : memref<4x9x9x128xbf16, #tpu.memory_space<vmem>>, vector<1x8x8x128xbf16>
    %21 = vector.shape_cast %20 : vector<1x8x8x128xbf16> to vector<8x8x128xbf16>
    %22 = vector.shape_cast %21 : vector<8x8x128xbf16> to vector<64x128xbf16>
    %c0_28 = arith.constant 0 : index
    %c0_29 = arith.constant 0 : index
    %23 = vector.load %arg6[%c0_28, %c0_29] : memref<64x128xf32, #tpu.memory_space<vmem>>, vector<64x128xf32>
    %c2 = arith.constant 2 : index
    %c0_30 = arith.constant 0 : index
    %c0_31 = arith.constant 0 : index
    %24 = vector.load %arg3[%c2, %c0_30, %c0_31] : memref<9x128x128xbf16, #tpu.memory_space<vmem>>, vector<1x128x128xbf16>
    %25 = vector.shape_cast %24 : vector<1x128x128xbf16> to vector<128x128xbf16>
    %cst_32 = arith.constant dense<0.000000e+00> : vector<64x128xf32>
    %26 = tpu.matmul %22, %25, %cst_32 {dimension_numbers = #tpu.dot_dimension_numbers<[1], [0], [0], [1], [0, 0, 1, 1], [], []>} : vector<64x128xbf16>, vector<128x128xbf16>, vector<64x128xf32> -> vector<64x128xf32>
    %27 = arith.addf %23, %26 : vector<64x128xf32>
    %c0_33 = arith.constant 0 : index
    %c0_34 = arith.constant 0 : index
    %28 = vector.load %arg6[%c0_33, %c0_34] : memref<64x128xf32, #tpu.memory_space<vmem>>, vector<64x128xf32>
    tpu.vector_store %arg6[%c0_33, %c0_34], %27 {strides = array<i32>} : memref<64x128xf32, #tpu.memory_space<vmem>>, vector<64x128xf32>,
    %c2_35 = arith.constant 2 : index
    %c0_36 = arith.constant 0 : index
    %c0_37 = arith.constant 0 : index
    %c0_38 = arith.constant 0 : index
    %29 = vector.load %arg2[%c2_35, %c0_36, %c0_37, %c0_38] : memref<4x9x9x128xbf16, #tpu.memory_space<vmem>>, vector<1x8x8x128xbf16>
    %30 = vector.shape_cast %29 : vector<1x8x8x128xbf16> to vector<8x8x128xbf16>
    %31 = vector.shape_cast %30 : vector<8x8x128xbf16> to vector<64x128xbf16>
    %c0_39 = arith.constant 0 : index
    %c0_40 = arith.constant 0 : index
    %32 = vector.load %arg6[%c0_39, %c0_40] : memref<64x128xf32, #tpu.memory_space<vmem>>, vector<64x128xf32>
    %c3 = arith.constant 3 : index
    %c0_41 = arith.constant 0 : index
    %c0_42 = arith.constant 0 : index
    %33 = vector.load %arg3[%c3, %c0_41, %c0_42] : memref<9x128x128xbf16, #tpu.memory_space<vmem>>, vector<1x128x128xbf16>
    %34 = vector.shape_cast %33 : vector<1x128x128xbf16> to vector<128x128xbf16>
    %cst_43 = arith.constant dense<0.000000e+00> : vector<64x128xf32>
    %35 = tpu.matmul %31, %34, %cst_43 {dimension_numbers = #tpu.dot_dimension_numbers<[1], [0], [0], [1], [0, 0, 1, 1], [], []>} : vector<64x128xbf16>, vector<128x128xbf16>, vector<64x128xf32> -> vector<64x128xf32>
    %36 = arith.addf %32, %35 : vector<64x128xf32>
    %c0_44 = arith.constant 0 : index
    %c0_45 = arith.constant 0 : index
    %37 = vector.load %arg6[%c0_44, %c0_45] : memref<64x128xf32, #tpu.memory_space<vmem>>, vector<64x128xf32>
    tpu.vector_store %arg6[%c0_44, %c0_45], %36 {strides = array<i32>} : memref<64x128xf32, #tpu.memory_space<vmem>>, vector<64x128xf32>,
    %c3_46 = arith.constant 3 : index
    %c0_47 = arith.constant 0 : index
    %c0_48 = arith.constant 0 : index
    %c0_49 = arith.constant 0 : index
    %38 = vector.load %arg2[%c3_46, %c0_47, %c0_48, %c0_49] : memref<4x9x9x128xbf16, #tpu.memory_space<vmem>>, vector<1x8x8x128xbf16>
    %39 = vector.shape_cast %38 : vector<1x8x8x128xbf16> to vector<8x8x128xbf16>
    %40 = vector.shape_cast %39 : vector<8x8x128xbf16> to vector<64x128xbf16>
    %c0_50 = arith.constant 0 : index
    %c0_51 = arith.constant 0 : index
    %41 = vector.load %arg6[%c0_50, %c0_51] : memref<64x128xf32, #tpu.memory_space<vmem>>, vector<64x128xf32>
    %c4 = arith.constant 4 : index
    %c0_52 = arith.constant 0 : index
    %c0_53 = arith.constant 0 : index
    %42 = vector.load %arg3[%c4, %c0_52, %c0_53] : memref<9x128x128xbf16, #tpu.memory_space<vmem>>, vector<1x128x128xbf16>
    %43 = vector.shape_cast %42 : vector<1x128x128xbf16> to vector<128x128xbf16>
    %cst_54 = arith.constant dense<0.000000e+00> : vector<64x128xf32>
    %44 = tpu.matmul %40, %43, %cst_54 {dimension_numbers = #tpu.dot_dimension_numbers<[1], [0], [0], [1], [0, 0, 1, 1], [], []>} : vector<64x128xbf16>, vector<128x128xbf16>, vector<64x128xf32> -> vector<64x128xf32>
    %45 = arith.addf %41, %44 : vector<64x128xf32>
    %c0_55 = arith.constant 0 : index
    %c0_56 = arith.constant 0 : index
    %46 = vector.load %arg6[%c0_55, %c0_56] : memref<64x128xf32, #tpu.memory_space<vmem>>, vector<64x128xf32>
    tpu.vector_store %arg6[%c0_55, %c0_56], %45 {strides = array<i32>} : memref<64x128xf32, #tpu.memory_space<vmem>>, vector<64x128xf32>,
    %c2_57 = arith.constant 2 : index
    %c0_58 = arith.constant 0 : index
    %c1_59 = arith.constant 1 : index
    %c0_60 = arith.constant 0 : index
    %47 = vector.load %arg2[%c2_57, %c0_58, %c1_59, %c0_60] : memref<4x9x9x128xbf16, #tpu.memory_space<vmem>>, vector<1x8x8x128xbf16>
    %48 = vector.shape_cast %47 : vector<1x8x8x128xbf16> to vector<8x8x128xbf16>
    %49 = vector.shape_cast %48 : vector<8x8x128xbf16> to vector<64x128xbf16>
    %c0_61 = arith.constant 0 : index
    %c0_62 = arith.constant 0 : index
    %50 = vector.load %arg6[%c0_61, %c0_62] : memref<64x128xf32, #tpu.memory_space<vmem>>, vector<64x128xf32>
    %c5 = arith.constant 5 : index
    %c0_63 = arith.constant 0 : index
    %c0_64 = arith.constant 0 : index
    %51 = vector.load %arg3[%c5, %c0_63, %c0_64] : memref<9x128x128xbf16, #tpu.memory_space<vmem>>, vector<1x128x128xbf16>
    %52 = vector.shape_cast %51 : vector<1x128x128xbf16> to vector<128x128xbf16>
    %cst_65 = arith.constant dense<0.000000e+00> : vector<64x128xf32>
    %53 = tpu.matmul %49, %52, %cst_65 {dimension_numbers = #tpu.dot_dimension_numbers<[1], [0], [0], [1], [0, 0, 1, 1], [], []>} : vector<64x128xbf16>, vector<128x128xbf16>, vector<64x128xf32> -> vector<64x128xf32>
    %54 = arith.addf %50, %53 : vector<64x128xf32>
    %c0_66 = arith.constant 0 : index
    %c0_67 = arith.constant 0 : index
    %55 = vector.load %arg6[%c0_66, %c0_67] : memref<64x128xf32, #tpu.memory_space<vmem>>, vector<64x128xf32>
    tpu.vector_store %arg6[%c0_66, %c0_67], %54 {strides = array<i32>} : memref<64x128xf32, #tpu.memory_space<vmem>>, vector<64x128xf32>,
    %c0_68 = arith.constant 0 : index
    %c1_69 = arith.constant 1 : index
    %c0_70 = arith.constant 0 : index
    %c0_71 = arith.constant 0 : index
    %56 = vector.load %arg2[%c0_68, %c1_69, %c0_70, %c0_71] : memref<4x9x9x128xbf16, #tpu.memory_space<vmem>>, vector<1x8x8x128xbf16>
    %57 = vector.shape_cast %56 : vector<1x8x8x128xbf16> to vector<8x8x128xbf16>
    %58 = vector.shape_cast %57 : vector<8x8x128xbf16> to vector<64x128xbf16>
    %c0_72 = arith.constant 0 : index
    %c0_73 = arith.constant 0 : index
    %59 = vector.load %arg6[%c0_72, %c0_73] : memref<64x128xf32, #tpu.memory_space<vmem>>, vector<64x128xf32>
    %c6 = arith.constant 6 : index
    %c0_74 = arith.constant 0 : index
    %c0_75 = arith.constant 0 : index
    %60 = vector.load %arg3[%c6, %c0_74, %c0_75] : memref<9x128x128xbf16, #tpu.memory_space<vmem>>, vector<1x128x128xbf16>
    %61 = vector.shape_cast %60 : vector<1x128x128xbf16> to vector<128x128xbf16>
    %cst_76 = arith.constant dense<0.000000e+00> : vector<64x128xf32>
    %62 = tpu.matmul %58, %61, %cst_76 {dimension_numbers = #tpu.dot_dimension_numbers<[1], [0], [0], [1], [0, 0, 1, 1], [], []>} : vector<64x128xbf16>, vector<128x128xbf16>, vector<64x128xf32> -> vector<64x128xf32>
    %63 = arith.addf %59, %62 : vector<64x128xf32>
    %c0_77 = arith.constant 0 : index
    %c0_78 = arith.constant 0 : index
    %64 = vector.load %arg6[%c0_77, %c0_78] : memref<64x128xf32, #tpu.memory_space<vmem>>, vector<64x128xf32>
    tpu.vector_store %arg6[%c0_77, %c0_78], %63 {strides = array<i32>} : memref<64x128xf32, #tpu.memory_space<vmem>>, vector<64x128xf32>,
    %c1_79 = arith.constant 1 : index
    %c1_80 = arith.constant 1 : index
    %c0_81 = arith.constant 0 : index
    %c0_82 = arith.constant 0 : index
    %65 = vector.load %arg2[%c1_79, %c1_80, %c0_81, %c0_82] : memref<4x9x9x128xbf16, #tpu.memory_space<vmem>>, vector<1x8x8x128xbf16>
    %66 = vector.shape_cast %65 : vector<1x8x8x128xbf16> to vector<8x8x128xbf16>
    %67 = vector.shape_cast %66 : vector<8x8x128xbf16> to vector<64x128xbf16>
    %c0_83 = arith.constant 0 : index
    %c0_84 = arith.constant 0 : index
    %68 = vector.load %arg6[%c0_83, %c0_84] : memref<64x128xf32, #tpu.memory_space<vmem>>, vector<64x128xf32>
    %c7 = arith.constant 7 : index
    %c0_85 = arith.constant 0 : index
    %c0_86 = arith.constant 0 : index
    %69 = vector.load %arg3[%c7, %c0_85, %c0_86] : memref<9x128x128xbf16, #tpu.memory_space<vmem>>, vector<1x128x128xbf16>
    %70 = vector.shape_cast %69 : vector<1x128x128xbf16> to vector<128x128xbf16>
    %cst_87 = arith.constant dense<0.000000e+00> : vector<64x128xf32>
    %71 = tpu.matmul %67, %70, %cst_87 {dimension_numbers = #tpu.dot_dimension_numbers<[1], [0], [0], [1], [0, 0, 1, 1], [], []>} : vector<64x128xbf16>, vector<128x128xbf16>, vector<64x128xf32> -> vector<64x128xf32>
    %72 = arith.addf %68, %71 : vector<64x128xf32>
    %c0_88 = arith.constant 0 : index
    %c0_89 = arith.constant 0 : index
    %73 = vector.load %arg6[%c0_88, %c0_89] : memref<64x128xf32, #tpu.memory_space<vmem>>, vector<64x128xf32>
    tpu.vector_store %arg6[%c0_88, %c0_89], %72 {strides = array<i32>} : memref<64x128xf32, #tpu.memory_space<vmem>>, vector<64x128xf32>,
    %c0_90 = arith.constant 0 : index
    %c1_91 = arith.constant 1 : index
    %c1_92 = arith.constant 1 : index
    %c0_93 = arith.constant 0 : index
    %74 = vector.load %arg2[%c0_90, %c1_91, %c1_92, %c0_93] : memref<4x9x9x128xbf16, #tpu.memory_space<vmem>>, vector<1x8x8x128xbf16>
    %75 = vector.shape_cast %74 : vector<1x8x8x128xbf16> to vector<8x8x128xbf16>
    %76 = vector.shape_cast %75 : vector<8x8x128xbf16> to vector<64x128xbf16>
    %c0_94 = arith.constant 0 : index
    %c0_95 = arith.constant 0 : index
    %77 = vector.load %arg6[%c0_94, %c0_95] : memref<64x128xf32, #tpu.memory_space<vmem>>, vector<64x128xf32>
    %c8 = arith.constant 8 : index
    %c0_96 = arith.constant 0 : index
    %c0_97 = arith.constant 0 : index
    %78 = vector.load %arg3[%c8, %c0_96, %c0_97] : memref<9x128x128xbf16, #tpu.memory_space<vmem>>, vector<1x128x128xbf16>
    %79 = vector.shape_cast %78 : vector<1x128x128xbf16> to vector<128x128xbf16>
    %cst_98 = arith.constant dense<0.000000e+00> : vector<64x128xf32>
    %80 = tpu.matmul %76, %79, %cst_98 {dimension_numbers = #tpu.dot_dimension_numbers<[1], [0], [0], [1], [0, 0, 1, 1], [], []>} : vector<64x128xbf16>, vector<128x128xbf16>, vector<64x128xf32> -> vector<64x128xf32>
    %81 = arith.addf %77, %80 : vector<64x128xf32>
    %c0_99 = arith.constant 0 : index
    %c0_100 = arith.constant 0 : index
    %82 = vector.load %arg6[%c0_99, %c0_100] : memref<64x128xf32, #tpu.memory_space<vmem>>, vector<64x128xf32>
    tpu.vector_store %arg6[%c0_99, %c0_100], %81 {strides = array<i32>} : memref<64x128xf32, #tpu.memory_space<vmem>>, vector<64x128xf32>,
    %c0_101 = arith.constant 0 : index
    %c0_102 = arith.constant 0 : index
    %83 = vector.load %arg6[%c0_101, %c0_102] : memref<64x128xf32, #tpu.memory_space<vmem>>, vector<64x128xf32>
    %c0_103 = arith.constant 0 : index
    %c0_104 = arith.constant 0 : index
    %84 = vector.load %arg4[%c0_103, %c0_104] : memref<1x128xf32, #tpu.memory_space<vmem>>, vector<1x128xf32>
    %85 = vector.broadcast %84 : vector<1x128xf32> to vector<64x128xf32>
    %86 = arith.addf %83, %85 : vector<64x128xf32>
    %cst_105 = arith.constant 0.000000e+00 : f32
    %87 = vector.broadcast %cst_105 : f32 to vector<64x128xf32>
    %88 = arith.maximumf %86, %87 : vector<64x128xf32>
    %89 = arith.truncf %88 : vector<64x128xf32> to vector<64x128xbf16>
    %c0_106 = arith.constant 0 : index
    %c0_107 = arith.constant 0 : index
    %c0_108 = arith.constant 0 : index
    %90 = vector.load %arg5[%c0_106, %c0_107, %c0_108] : memref<1x64x128xbf16, #tpu.memory_space<vmem>>, vector<1x64x128xbf16>
    %91 = vector.shape_cast %90 : vector<1x64x128xbf16> to vector<64x128xbf16>
    %92 = vector.shape_cast %89 : vector<64x128xbf16> to vector<1x64x128xbf16>
    tpu.vector_store %arg5[%c0_106, %c0_107, %c0_108], %92 {strides = array<i32>} : memref<1x64x128xbf16, #tpu.memory_space<vmem>>, vector<1x64x128xbf16>,
    return
  }
  func.func @transform_0(%arg0: i32, %arg1: i32) -> (i32, i32, i32, i32) {
    %c0_i32 = arith.constant 0 : i32
    %c0_i32_0 = arith.constant 0 : i32
    %c0_i32_1 = arith.constant 0 : i32
    %c0_i32_2 = arith.constant 0 : i32
    return %arg0, %c0_i32, %c0_i32_0, %c0_i32_1 : i32, i32, i32, i32
  }
  func.func @transform_1(%arg0: i32, %arg1: i32) -> (i32, i32, i32) {
    %c0_i32 = arith.constant 0 : i32
    %c0_i32_0 = arith.constant 0 : i32
    %c0_i32_1 = arith.constant 0 : i32
    return %c0_i32, %c0_i32_0, %arg1 : i32, i32, i32
  }
  func.func @transform_2(%arg0: i32, %arg1: i32) -> (i32, i32) {
    %c0_i32 = arith.constant 0 : i32
    %c0_i32_0 = arith.constant 0 : i32
    return %c0_i32, %arg1 : i32, i32
  }
  func.func @transform_3(%arg0: i32, %arg1: i32) -> (i32, i32, i32) {
    %c0_i32 = arith.constant 0 : i32
    %c0_i32_0 = arith.constant 0 : i32
    return %arg0, %c0_i32, %arg1 : i32, i32, i32
  }
}

module attributes {stable_mosaic.version = 11 : i64} {
  func.func @_gemm_bias_act_kernel(%arg0: i32, %arg1: i32, %arg2: i32, %arg3: memref<64x128xbf16, #tpu.memory_space<vmem>>, %arg4: memref<128x128xbf16, #tpu.memory_space<vmem>>, %arg5: memref<1x128xf32, #tpu.memory_space<vmem>>, %arg6: memref<64x128xbf16, #tpu.memory_space<vmem>>, %arg7: memref<64x128xbf16, #tpu.memory_space<vmem>>, %arg8: memref<64x128xf32, #tpu.memory_space<vmem>>) attributes {dimension_semantics = [#tpu.dimension_semantics<parallel>, #tpu.dimension_semantics<parallel>, #tpu.dimension_semantics<arbitrary>], iteration_bounds = array<i64: 2, 1, 1>, scalar_prefetch = 0 : i64, scratch_operands = 1 : i64, tpu.core_type = #tpu.core_type<tc>, window_params = [{transform_indices = @transform_0, window_bounds = array<i64: 64, 128>}, {transform_indices = @transform_1, window_bounds = array<i64: 128, 128>}, {transform_indices = @transform_2, window_bounds = array<i64: 1, 128>}, {transform_indices = @transform_3, window_bounds = array<i64: 64, 128>}, {transform_indices = @transform_4, window_bounds = array<i64: 64, 128>}]} {
    %c0_i32 = arith.constant 0 : i32
    %0 = arith.cmpi eq, %arg2, %c0_i32 : i32
    %1 = arith.extui %0 : i1 to i32
    %c0_i32_0 = arith.constant 0 : i32
    %2 = arith.cmpi ne, %1, %c0_i32_0 : i32
    scf.if %2 {
      %cst_10 = arith.constant 0.000000e+00 : f32
      %12 = vector.broadcast %cst_10 : f32 to vector<64x128xf32>
      %c0_11 = arith.constant 0 : index
      %c0_12 = arith.constant 0 : index
      %13 = vector.load %arg8[%c0_11, %c0_12] : memref<64x128xf32, #tpu.memory_space<vmem>>, vector<64x128xf32>
      tpu.vector_store %arg8[%c0_11, %c0_12], %12 {strides = array<i32>} : memref<64x128xf32, #tpu.memory_space<vmem>>, vector<64x128xf32>,
    } else {
    }
    %c0 = arith.constant 0 : index
    %c0_1 = arith.constant 0 : index
    %3 = vector.load %arg8[%c0, %c0_1] : memref<64x128xf32, #tpu.memory_space<vmem>>, vector<64x128xf32>
    %c0_2 = arith.constant 0 : index
    %c0_3 = arith.constant 0 : index
    %4 = vector.load %arg3[%c0_2, %c0_3] : memref<64x128xbf16, #tpu.memory_space<vmem>>, vector<64x128xbf16>
    %c0_4 = arith.constant 0 : index
    %c0_5 = arith.constant 0 : index
    %5 = vector.load %arg4[%c0_4, %c0_5] : memref<128x128xbf16, #tpu.memory_space<vmem>>, vector<128x128xbf16>
    %cst = arith.constant dense<0.000000e+00> : vector<64x128xf32>
    %6 = tpu.matmul %4, %5, %cst {dimension_numbers = #tpu.dot_dimension_numbers<[1], [0], [0], [1], [0, 0, 1, 1], [], []>} : vector<64x128xbf16>, vector<128x128xbf16>, vector<64x128xf32> -> vector<64x128xf32>
    %7 = arith.addf %3, %6 : vector<64x128xf32>
    %c0_6 = arith.constant 0 : index
    %c0_7 = arith.constant 0 : index
    %8 = vector.load %arg8[%c0_6, %c0_7] : memref<64x128xf32, #tpu.memory_space<vmem>>, vector<64x128xf32>
    tpu.vector_store %arg8[%c0_6, %c0_7], %7 {strides = array<i32>} : memref<64x128xf32, #tpu.memory_space<vmem>>, vector<64x128xf32>,
    %c0_i32_8 = arith.constant 0 : i32
    %9 = arith.cmpi eq, %arg2, %c0_i32_8 : i32
    %10 = arith.extui %9 : i1 to i32
    %c0_i32_9 = arith.constant 0 : i32
    %11 = arith.cmpi ne, %10, %c0_i32_9 : i32
    scf.if %11 {
      %c0_10 = arith.constant 0 : index
      %c0_11 = arith.constant 0 : index
      %12 = vector.load %arg8[%c0_10, %c0_11] : memref<64x128xf32, #tpu.memory_space<vmem>>, vector<64x128xf32>
      %c0_12 = arith.constant 0 : index
      %c0_13 = arith.constant 0 : index
      %13 = vector.load %arg5[%c0_12, %c0_13] : memref<1x128xf32, #tpu.memory_space<vmem>>, vector<1x128xf32>
      %14 = vector.broadcast %13 : vector<1x128xf32> to vector<64x128xf32>
      %15 = arith.addf %12, %14 : vector<64x128xf32>
      %c0_14 = arith.constant 0 : index
      %c0_15 = arith.constant 0 : index
      %16 = vector.load %arg6[%c0_14, %c0_15] : memref<64x128xbf16, #tpu.memory_space<vmem>>, vector<64x128xbf16>
      %17 = arith.extf %16 : vector<64x128xbf16> to vector<64x128xf32>
      %18 = arith.addf %15, %17 : vector<64x128xf32>
      %cst_16 = arith.constant 0.000000e+00 : f32
      %19 = vector.broadcast %cst_16 : f32 to vector<64x128xf32>
      %20 = arith.maximumf %18, %19 : vector<64x128xf32>
      %21 = arith.truncf %20 : vector<64x128xf32> to vector<64x128xbf16>
      %c0_17 = arith.constant 0 : index
      %c0_18 = arith.constant 0 : index
      %22 = vector.load %arg7[%c0_17, %c0_18] : memref<64x128xbf16, #tpu.memory_space<vmem>>, vector<64x128xbf16>
      tpu.vector_store %arg7[%c0_17, %c0_18], %21 {strides = array<i32>} : memref<64x128xbf16, #tpu.memory_space<vmem>>, vector<64x128xbf16>,
    } else {
    }
    return
  }
  func.func @transform_0(%arg0: i32, %arg1: i32, %arg2: i32) -> (i32, i32) {
    %c0_i32 = arith.constant 0 : i32
    return %arg0, %arg2 : i32, i32
  }
  func.func @transform_1(%arg0: i32, %arg1: i32, %arg2: i32) -> (i32, i32) {
    %c0_i32 = arith.constant 0 : i32
    return %arg2, %arg1 : i32, i32
  }
  func.func @transform_2(%arg0: i32, %arg1: i32, %arg2: i32) -> (i32, i32) {
    %c0_i32 = arith.constant 0 : i32
    %c0_i32_0 = arith.constant 0 : i32
    return %c0_i32, %arg1 : i32, i32
  }
  func.func @transform_3(%arg0: i32, %arg1: i32, %arg2: i32) -> (i32, i32) {
    %c0_i32 = arith.constant 0 : i32
    return %arg0, %arg1 : i32, i32
  }
  func.func @transform_4(%arg0: i32, %arg1: i32, %arg2: i32) -> (i32, i32) {
    %c0_i32 = arith.constant 0 : i32
    return %arg0, %arg1 : i32, i32
  }
}

</mosaic_0001>

<llo_original>
// kernel: bottleneck_forward.6
$region0: #{bottleneck_forward.6}
  #allocation0 [shape = 'u32[]', space=smem, size = 0x4, offset = 0x4, fixed_abs, tag = 'smem constant byte address 0x4 - core index']
  #allocation1 [shape = 'u32[72,128]{1,0:T(1,128)}', space=vmem, size = 0x9000, scoped, tag = 'internal scratch']
  #allocation2 [shape = 'f32[64,128]{1,0:T(8,128)}', space=vmem, size = 0x8000, scoped, tag = 'scratch operand']
  %s0 = inlined_call_operand.vmem [shape: bf16[128,128], index: 0, kind: input, shape index: {}]
  %s1 = inlined_call_operand.vmem [shape: bf16[128,128], index: 1, kind: input, shape index: {}]
  %s2 = inlined_call_operand.vmem [shape: f32[1,128], index: 2, kind: input, shape index: {}]
  %s3 = inlined_call_operand.vmem [shape: bf16[128,128], index: 3, kind: output, shape index: {}]
  %s4 = sld [smem:[#allocation0]]
  $region53: #{bottleneck_forward.6} parent=0
    _
  %s6 = ssub.s32 1, %s4
  %s7 = scalar_select 0, %s6, %s4
  loop: start=0, step=1, limit=4
  $region2: #{bottleneck_forward.6} parent=0 // loop_pre_header
    _
  $region3: #{bottleneck_forward.6} parent=0 // loop_header
    %s9 = sphi 0, %s13
    %p10 = scmp.ge.s32.totalorder %s9, 4
    %s16 = sphi 0, %s35
    %s17 = sphi 0, %s31
    %s18 = sphi 0, %s27
    %s19 = sphi 0, %s16
    %s20 = sphi 0, %s17
    %s21 = sphi 0, %s18
    %s22 = sphi 0, %s19
    %s23 = sphi 0, %s20
    %s24 = sphi 0, %s21
    %s40 = sphi 0, %s42
    %s43 = sphi 0, %s40
    %s44 = sphi 0, %s43
    %s60 = sphi 0, %s44
    %s68 = sphi 0, %s70
    %s71 = sphi 0, %s68
    %s72 = sphi 0, %s71
    %s88 = sphi 0, %s72
    %s94 = sphi 0, %s96
    %s97 = sphi 0, %s94
    %s98 = sphi 0, %s97
    %s114 = sphi 0, %s98
    %s122 = sphi 0, %s124
    %s125 = sphi 0, %s122
    %s126 = sphi 0, %s125
    %s142 = sphi 0, %s126
  $region4: #{bottleneck_forward.6} parent=0 // loop_header_branch
    %12 = sbr.rel (%p10) target = $region8
  $region5: #{bottleneck_forward.6} parent=0 // loop_body
    %s14 = ssub.s32 %s9, 1
    %s15 = ssub.s32 %s9, 2
    %s25 = sadd.s32 1, %s18
    %p26 = scmp.ge.s32.totalorder %s25, 1
    %s27 = scalar_select %p26, 0, %s25
    %s28 = sadd.s32 1, %s17
    %s29 = scalar_select %p26, %s28, %s17
    %p30 = scmp.ge.s32.totalorder %s29, 1
    %s31 = scalar_select %p30, 0, %s29
    %s32 = sadd.s32 1, %s16
    %s33 = scalar_select %p30, %s32, %s16
    %p34 = scmp.ge.s32.totalorder %s33, 2
    %s35 = scalar_select %p34, 0, %s33
    %s36 = ssub.s32 %s16, %s35
    %s37 = ssub.s32 %s18, %s27
    %s38 = sor.u32 %s36, %s37
    %p39 = scmp.eq.s32.totalorder %s38, 0
    %s41 = sadd.s32 %s40, 1
    %s42 = scalar_select %p39, %s40, %s41
    %p45 = pneg %p39
    %p46 = scmp.eq.s32.totalorder %s9, 1
    %p47 = por %p45, %p46
    %p48 = scmp.ne.s32.totalorder %s40, %s43
    %p49 = scmp.eq.s32.totalorder %s9, 0
    %p50 = por %p48, %p49
    %p51 = scmp.ne.s32.totalorder %s40, %s43
    %p52 = scmp.eq.s32.totalorder %s14, 1
    %p53 = por %p51, %p52
    %p54 = scmp.ne.s32.totalorder %s43, %s44
    %p55 = scmp.eq.s32.totalorder %s14, 0
    %p56 = por %p54, %p55
    %p57 = scmp.ne.s32.totalorder %s43, %s44
    %p58 = scmp.eq.s32.totalorder %s15, 1
    %p59 = por %p57, %p58
    %p61 = scmp.ne.s32.totalorder %s44, %s60
    %p62 = scmp.eq.s32.totalorder %s15, 0
    %p63 = por %p61, %p62
    %s64 = ssub.s32 %s18, %s27
    %s65 = ssub.s32 %s17, %s31
    %s66 = sor.u32 %s64, %s65
    %p67 = scmp.eq.s32.totalorder %s66, 0
    %s69 = sadd.s32 %s68, 1
    %s70 = scalar_select %p67, %s68, %s69
    %p73 = pneg %p67
    %p74 = scmp.eq.s32.totalorder %s9, 1
    %p75 = por %p73, %p74
    %p76 = scmp.ne.s32.totalorder %s68, %s71
    %p77 = scmp.eq.s32.totalorder %s9, 0
    %p78 = por %p76, %p77
    %p79 = scmp.ne.s32.totalorder %s68, %s71
    %p80 = scmp.eq.s32.totalorder %s14, 1
    %p81 = por %p79, %p80
    %p82 = scmp.ne.s32.totalorder %s71, %s72
    %p83 = scmp.eq.s32.totalorder %s14, 0
    %p84 = por %p82, %p83
    %p85 = scmp.ne.s32.totalorder %s71, %s72
    %p86 = scmp.eq.s32.totalorder %s15, 1
    %p87 = por %p85, %p86
    %p89 = scmp.ne.s32.totalorder %s72, %s88
    %p90 = scmp.eq.s32.totalorder %s15, 0
    %p91 = por %p89, %p90
    %s92 = ssub.s32 %s17, %s31
    %p93 = scmp.eq.s32.totalorder %s92, 0
    %s95 = sadd.s32 %s94, 1
    %s96 = scalar_select %p93, %s94, %s95
    %p99 = pneg %p93
    %p100 = scmp.eq.s32.totalorder %s9, 1
    %p101 = por %p99, %p100
    %p102 = scmp.ne.s32.totalorder %s94, %s97
    %p103 = scmp.eq.s32.totalorder %s9, 0
    %p104 = por %p102, %p103
    %p105 = scmp.ne.s32.totalorder %s94, %s97
    %p106 = scmp.eq.s32.totalorder %s14, 1
    %p107 = por %p105, %p106
    %p108 = scmp.ne.s32.totalorder %s97, %s98
    %p109 = scmp.eq.s32.totalorder %s14, 0
    %p110 = por %p108, %p109
    %p111 = scmp.ne.s32.totalorder %s97, %s98
    %p112 = scmp.eq.s32.totalorder %s15, 1
    %p113 = por %p111, %p112
    %p115 = scmp.ne.s32.totalorder %s98, %s114
    %p116 = scmp.eq.s32.totalorder %s15, 0
    %p117 = por %p115, %p116
    %s118 = ssub.s32 %s16, %s35
    %s119 = ssub.s32 %s17, %s31
    %s120 = sor.u32 %s118, %s119
    %p121 = scmp.eq.s32.totalorder %s120, 0
    %s123 = sadd.s32 %s122, 1
    %s124 = scalar_select %p121, %s122, %s123
    %p127 = pneg %p121
    %p128 = scmp.eq.s32.totalorder %s9, 1
    %p129 = por %p127, %p128
    %p130 = scmp.ne.s32.totalorder %s122, %s125
    %p131 = scmp.eq.s32.totalorder %s9, 0
    %p132 = por %p130, %p131
    %p133 = scmp.ne.s32.totalorder %s122, %s125
    %p134 = scmp.eq.s32.totalorder %s14, 1
    %p135 = por %p133, %p134
    %p136 = scmp.ne.s32.totalorder %s125, %s126
    %p137 = scmp.eq.s32.totalorder %s14, 0
    %p138 = por %p136, %p137
    %p139 = scmp.ne.s32.totalorder %s125, %s126
    %p140 = scmp.eq.s32.totalorder %s15, 1
    %p141 = por %p139, %p140
    %p143 = scmp.ne.s32.totalorder %s126, %s142
    %p144 = scmp.eq.s32.totalorder %s15, 0
    %p145 = por %p143, %p144
    %p146 = scmp.le.s32.totalorder 1, %s9
    %p147 = scmp.lt.s32.totalorder %s9, 3
    %p148 = pnand %p146, %p147
    %p149 = pneg %p148
    // Predicated region
    $region9: #{bottleneck_forward.6} parent=5 // pred_check
      _
    $region10: #{bottleneck_forward.6} parent=5 // pred_check_branch
      %151 = sbr.rel (%p148) target = $region12
    $region11: #{bottleneck_forward.6} parent=5 // pred_region
      %s152 = ssub.s32 %s9, 1
      // Predicated region
      $region13: #{bottleneck_forward.6} parent=11 // pred_check
        %p153 = pneg %p84
      $region14: #{bottleneck_forward.6} parent=11 // pred_check_branch
        %155 = sbr.rel (%p153) target = $region16
      $region15: #{bottleneck_forward.6} parent=11 // pred_region
        %s156 = smul.u32 16, %s21
        %p157 = scmp.lt.s32.totalorder %s156, 15
        %s158 = scalar_select %p157, %s156, 15
        %p159 = scmp.lt.s32.totalorder %s20, 0
        %s160 = scalar_select %p159, %s20, 0
        %s161 = sadd.s32 %s160, %s158
        %s162 = smul.addr %s161, 4
        %s163 = scalar_lea.vmem %s1, %s162
        %s164 = smul.u32 16, %s21
      $region16: #{bottleneck_forward.6} parent=11 // pred_fallthru
        _
      // Predicated region
      $region17: #{bottleneck_forward.6} parent=11 // pred_check
        %p165 = pneg %p110
      $region18: #{bottleneck_forward.6} parent=11 // pred_check_branch
        %167 = sbr.rel (%p165) target = $region20
      $region19: #{bottleneck_forward.6} parent=11 // pred_region
        %p168 = scmp.lt.s32.totalorder %s20, 0
        %s169 = scalar_select %p168, %s20, 0
        %s170 = scalar_lea.vmem %s2, %s169
      $region20: #{bottleneck_forward.6} parent=11 // pred_fallthru
        _
    $region12: #{bottleneck_forward.6} parent=5 // pred_fallthru
      _
    %p171 = scmp.lt.s32.totalorder %s9, 2
    // Predicated region
    $region21: #{bottleneck_forward.6} parent=5 // pred_check
      %p172 = pneg %p171
    $region22: #{bottleneck_forward.6} parent=5 // pred_check_branch
      %174 = sbr.rel (%p172) target = $region24
    $region23: #{bottleneck_forward.6} parent=5 // pred_region
      // Predicated region
      $region25: #{bottleneck_forward.6} parent=23 // pred_check
        %p175 = pneg %p50
      $region26: #{bottleneck_forward.6} parent=23 // pred_check_branch
        %177 = sbr.rel (%p175) target = $region28
      $region27: #{bottleneck_forward.6} parent=23 // pred_region
        %s178 = smul.u32 8, %s16
        %p179 = scmp.lt.s32.totalorder %s178, 15
        %s180 = scalar_select %p179, %s178, 15
        %p181 = scmp.lt.s32.totalorder %s18, 0
        %s182 = scalar_select %p181, %s18, 0
        %s183 = sadd.s32 %s182, %s180
        %s184 = smul.addr %s183, 4
        %s185 = scalar_lea.vmem %s0, %s184
        %s186 = smul.u32 8, %s16
      $region28: #{bottleneck_forward.6} parent=23 // pred_fallthru
        _
    $region24: #{bottleneck_forward.6} parent=5 // pred_fallthru
      _
    %p187 = scmp.le.s32.totalorder 1, %s9
    %p188 = scmp.lt.s32.totalorder %s9, 3
    %p189 = pnand %p187, %p188
    %p190 = pneg %p189
    // Predicated region
    $region29: #{bottleneck_forward.6} parent=5 // pred_check
      _
    $region30: #{bottleneck_forward.6} parent=5 // pred_check_branch
      %192 = sbr.rel (%p189) target = $region32
    $region31: #{bottleneck_forward.6} parent=5 // pred_region
      %s193 = ssub.s32 %s9, 1
      %s194 = smul.u32 8, %s19
      %p195 = scmp.lt.s32.totalorder %s194, 15
      %s196 = scalar_select %p195, %s194, 15
      %p197 = scmp.lt.s32.totalorder %s21, 0
      %s198 = scalar_select %p197, %s21, 0
      %s199 = sadd.s32 %s198, %s196
      %s200 = smul.addr %s199, 4
      %s201 = scalar_lea.vmem %s0, %s200
      %p202 = pneg %p56
      %p203 = pneg %p53
      %s204 = smul.u32 16, %s21
      %p205 = scmp.lt.s32.totalorder %s204, 15
      %s206 = scalar_select %p205, %s204, 15
      %p207 = scmp.lt.s32.totalorder %s20, 0
      %s208 = scalar_select %p207, %s20, 0
      %s209 = sadd.s32 %s208, %s206
      %s210 = smul.addr %s209, 4
      %s211 = scalar_lea.vmem %s1, %s210
      %p212 = pneg %p84
      %p213 = pneg %p81
      %p214 = scmp.lt.s32.totalorder %s20, 0
      %s215 = scalar_select %p214, %s20, 0
      %s216 = scalar_lea.vmem %s2, %s215
      %p217 = pneg %p110
      %p218 = pneg %p107
      %p219 = pneg %p138
      %p220 = pneg %p135
      %s221 = smul.u32 8, %s19
      %p222 = scmp.lt.s32.totalorder %s221, 15
      %s223 = scalar_select %p222, %s221, 15
      %p224 = scmp.lt.s32.totalorder %s20, 0
      %s225 = scalar_select %p224, %s20, 0
      %s226 = sadd.s32 %s225, %s223
      %s227 = smul.addr %s226, 4
      %s228 = scalar_lea.vmem %s3, %s227
      %s229 = smul.u32 8, %s19
      %p230 = scmp.lt.s32.totalorder %s229, 15
      %s231 = scalar_select %p230, %s229, 15
      %p232 = scmp.lt.s32.totalorder %s21, 0
      %s233 = scalar_select %p232, %s21, 0
      %s234 = sadd.s32 %s233, %s231
      %s235 = smul.addr %s234, 4
      %s236 = scalar_lea.vmem %s0, %s235
      %s237 = smul.u32 8, %s19
      %s238 = smul.u32 16, %s21
      %p239 = scmp.lt.s32.totalorder %s238, 15
      %s240 = scalar_select %p239, %s238, 15
      %p241 = scmp.lt.s32.totalorder %s20, 0
      %s242 = scalar_select %p241, %s20, 0
      %s243 = sadd.s32 %s242, %s240
      %s244 = smul.addr %s243, 4
      %s245 = scalar_lea.vmem %s1, %s244
      %s246 = smul.u32 16, %s21
      %p247 = scmp.lt.s32.totalorder %s20, 0
      %s248 = scalar_select %p247, %s20, 0
      %s249 = scalar_lea.vmem %s2, %s248
      %s250 = smul.u32 8, %s19
      %p251 = scmp.lt.s32.totalorder %s250, 15
      %s252 = scalar_select %p251, %s250, 15
      %p253 = scmp.lt.s32.totalorder %s20, 0
      %s254 = scalar_select %p253, %s20, 0
      %s255 = sadd.s32 %s254, %s252
      %s256 = smul.addr %s255, 4
      %s257 = scalar_lea.vmem %s3, %s256
      %s258 = smul.u32 8, %s19
      %p259 = scmp.eq.s32.totalorder %s21, 0
      // Predicated region
      $region33: #{bottleneck_forward.6} parent=31 // pred_check
        %p260 = pneg %p259
      $region34: #{bottleneck_forward.6} parent=31 // pred_check_branch
        %262 = sbr.rel (%p260) target = $region36
      $region35: #{bottleneck_forward.6} parent=31 // pred_region
        %263 = vst [vmem:[#allocation2] sm:$0xff] 0.0
        %264 = vst [vmem:[#allocation2 + $0x8] sm:$0xff] 0.0
        %265 = vst [vmem:[#allocation2 + $0x10] sm:$0xff] 0.0
        %266 = vst [vmem:[#allocation2 + $0x18] sm:$0xff] 0.0
        %267 = vst [vmem:[#allocation2 + $0x20] sm:$0xff] 0.0
        %268 = vst [vmem:[#allocation2 + $0x28] sm:$0xff] 0.0
        %269 = vst [vmem:[#allocation2 + $0x30] sm:$0xff] 0.0
        %270 = vst [vmem:[#allocation2 + $0x38] sm:$0xff] 0.0
      $region36: #{bottleneck_forward.6} parent=31 // pred_fallthru
        _
      %v271 = vld [vmem:[#allocation2] sm:$0xff]
      %v272 = vld [vmem:[#allocation2 + $0x8] sm:$0xff]
      %v273 = vld [vmem:[#allocation2 + $0x10] sm:$0xff]
      %v274 = vld [vmem:[#allocation2 + $0x18] sm:$0xff]
      %v275 = vld [vmem:[#allocation2 + $0x20] sm:$0xff]
      %v276 = vld [vmem:[#allocation2 + $0x28] sm:$0xff]
      %v277 = vld [vmem:[#allocation2 + $0x30] sm:$0xff]
      %v278 = vld [vmem:[#allocation2 + $0x38] sm:$0xff]
      %v279 = vld [vmem:[%s236] sm:$0xf]
      %v280 = vld [vmem:[%s236 + $0x4] sm:$0xf]
      %v281 = vld [vmem:[%s236 + $0x8] sm:$0xf]
      %v282 = vld [vmem:[%s236 + $0xc] sm:$0xf]
      %v283 = vld [vmem:[%s236 + $0x10] sm:$0xf]
      %v284 = vld [vmem:[%s236 + $0x14] sm:$0xf]
      %v285 = vld [vmem:[%s236 + $0x18] sm:$0xf]
      %v286 = vld [vmem:[%s236 + $0x1c] sm:$0xf]
      %v287 = vld [vmem:[%s245] sm:$0xf]
      %v288 = vld [vmem:[%s245 + $0x4] sm:$0xf]
      %v289 = vld [vmem:[%s245 + $0x8] sm:$0xf]
      %v290 = vld [vmem:[%s245 + $0xc] sm:$0xf]
      %v291 = vld [vmem:[%s245 + $0x10] sm:$0xf]
      %v292 = vld [vmem:[%s245 + $0x14] sm:$0xf]
      %v293 = vld [vmem:[%s245 + $0x18] sm:$0xf]
      %v294 = vld [vmem:[%s245 + $0x1c] sm:$0xf]
      %v295 = vld [vmem:[%s245 + $0x20] sm:$0xf]
      %v296 = vld [vmem:[%s245 + $0x24] sm:$0xf]
      %v297 = vld [vmem:[%s245 + $0x28] sm:$0xf]
      %v298 = vld [vmem:[%s245 + $0x2c] sm:$0xf]
      %v299 = vld [vmem:[%s245 + $0x30] sm:$0xf]
      %v300 = vld [vmem:[%s245 + $0x34] sm:$0xf]
      %v301 = vld [vmem:[%s245 + $0x38] sm:$0xf]
      %v302 = vld [vmem:[%s245 + $0x3c] sm:$0xf]
      %v311 = vunpack.c.l.b16 %v279
      %v312 = vunpack.c.l.b16 %v280
      %v313 = vunpack.c.l.b16 %v281
      %v314 = vunpack.c.l.b16 %v282
      %v315 = vunpack.c.l.b16 %v283
      %v316 = vunpack.c.l.b16 %v284
      %v317 = vunpack.c.l.b16 %v285
      %v318 = vunpack.c.l.b16 %v286
      %v319 = vpack.c.b16 %v312, %v311
      %v320 = vpack.c.b16 %v314, %v313
      %v321 = vpack.c.b16 %v316, %v315
      %v322 = vpack.c.b16 %v318, %v317
      %v343 = vunpack.c.l.b16 %v287
      %v344 = vunpack.c.l.b16 %v288
      %v345 = vunpack.c.l.b16 %v289
      %v346 = vunpack.c.l.b16 %v290
      %v347 = vunpack.c.l.b16 %v291
      %v348 = vunpack.c.l.b16 %v292
      %v349 = vunpack.c.l.b16 %v293
      %v350 = vunpack.c.l.b16 %v294
      %v351 = vunpack.c.l.b16 %v295
      %v352 = vunpack.c.l.b16 %v296
      %v353 = vunpack.c.l.b16 %v297
      %v354 = vunpack.c.l.b16 %v298
      %v355 = vunpack.c.l.b16 %v299
      %v356 = vunpack.c.l.b16 %v300
      %v357 = vunpack.c.l.b16 %v301
      %v358 = vunpack.c.l.b16 %v302
      %v359 = vpack.c.b16 %v344, %v343
      %v360 = vpack.c.b16 %v346, %v345
      %v361 = vpack.c.b16 %v348, %v347
      %v362 = vpack.c.b16 %v350, %v349
      %v363 = vpack.c.b16 %v352, %v351
      %v364 = vpack.c.b16 %v354, %v353
      %v365 = vpack.c.b16 %v356, %v355
      %v366 = vpack.c.b16 %v358, %v357
      %375 = vmatpush.bf16.msra.mxu0 %v366
      %376 = vmatpush.bf16.msra.mxu0 %v365
      %377 = vmatpush.bf16.msra.mxu0 %v364
      %378 = vmatpush.bf16.msra.mxu0 %v363
      %379 = vmatpush.bf16.msra.mxu0 %v362
      %380 = vmatpush.bf16.msra.mxu0 %v361
      %381 = vmatpush.bf16.msra.mxu0 %v360
      %382 = vmatpush.bf16.msra.mxu0 %v359
      %383 = vmatmul.bf16.gmra.mxu0 %v319
      %v384 = vpop.f32.mrf.mxu0
      %v385 = vadd.f32 0.0, %v384
      %v386 = vpop.f32.mrf.mxu0
      %v387 = vadd.f32 0.0, %v386
      %388 = vmatmul.bf16.gmra.mxu0 %v320
      %v389 = vpop.f32.mrf.mxu0
      %v390 = vadd.f32 0.0, %v389
      %v391 = vpop.f32.mrf.mxu0
      %v392 = vadd.f32 0.0, %v391
      %393 = vmatmul.bf16.gmra.mxu0 %v321
      %v394 = vpop.f32.mrf.mxu0
      %v395 = vadd.f32 0.0, %v394
      %v396 = vpop.f32.mrf.mxu0
      %v397 = vadd.f32 0.0, %v396
      %398 = vmatmul.bf16.gmra.mxu0 %v322
      %v399 = vpop.f32.mrf.mxu0
      %v400 = vadd.f32 0.0, %v399
      %v401 = vpop.f32.mrf.mxu0
      %v402 = vadd.f32 0.0, %v401
      %403 = vdwg.mxu0
      %v404 = vadd.f32 %v271, %v385
      %v405 = vadd.f32 %v272, %v387
      %v406 = vadd.f32 %v273, %v390
      %v407 = vadd.f32 %v274, %v392
      %v408 = vadd.f32 %v275, %v395
      %v409 = vadd.f32 %v276, %v397
      %v410 = vadd.f32 %v277, %v400
      %v411 = vadd.f32 %v278, %v402
      %412 = vst [vmem:[#allocation2] sm:$0xff] %v404
      %413 = vst [vmem:[#allocation2 + $0x8] sm:$0xff] %v405
      %414 = vst [vmem:[#allocation2 + $0x10] sm:$0xff] %v406
      %415 = vst [vmem:[#allocation2 + $0x18] sm:$0xff] %v407
      %416 = vst [vmem:[#allocation2 + $0x20] sm:$0xff] %v408
      %417 = vst [vmem:[#allocation2 + $0x28] sm:$0xff] %v409
      %418 = vst [vmem:[#allocation2 + $0x30] sm:$0xff] %v410
      %419 = vst [vmem:[#allocation2 + $0x38] sm:$0xff] %v411
      // Predicated region
      $region37: #{bottleneck_forward.6} parent=31 // pred_check
        %p420 = pneg %p259
      $region38: #{bottleneck_forward.6} parent=31 // pred_check_branch
        %422 = sbr.rel (%p420) target = $region40
      $region39: #{bottleneck_forward.6} parent=31 // pred_region
        %v423 = vld [vmem:[#allocation2] sm:$0xff]
        %v424 = vld [vmem:[#allocation2 + $0x8] sm:$0xff]
        %v425 = vld [vmem:[#allocation2 + $0x10] sm:$0xff]
        %v426 = vld [vmem:[#allocation2 + $0x18] sm:$0xff]
        %v427 = vld [vmem:[#allocation2 + $0x20] sm:$0xff]
        %v428 = vld [vmem:[#allocation2 + $0x28] sm:$0xff]
        %v429 = vld [vmem:[#allocation2 + $0x30] sm:$0xff]
        %v430 = vld [vmem:[#allocation2 + $0x38] sm:$0xff]
        %v431 = vld [vmem:[%s249] sm:$0x1]
        %v433 = vperm.slane %v431, 0
        %v435 = vadd.f32 %v423, %v433
        %v436 = vadd.f32 %v424, %v433
        %v437 = vadd.f32 %v425, %v433
        %v438 = vadd.f32 %v426, %v433
        %v439 = vadd.f32 %v427, %v433
        %v440 = vadd.f32 %v428, %v433
        %v441 = vadd.f32 %v429, %v433
        %v442 = vadd.f32 %v430, %v433
        %v443 = vpack.c.bf16 %v435, %v435
        %v444 = vpack.c.bf16 %v436, %v436
        %v445 = vpack.c.bf16 %v437, %v437
        %v446 = vpack.c.bf16 %v438, %v438
        %v447 = vpack.c.bf16 %v439, %v439
        %v448 = vpack.c.bf16 %v440, %v440
        %v449 = vpack.c.bf16 %v441, %v441
        %v450 = vpack.c.bf16 %v442, %v442
        %451 = vst [vmem:[%s257] sm:$0xf] %v443
        %452 = vst [vmem:[%s257 + $0x4] sm:$0xf] %v444
        %453 = vst [vmem:[%s257 + $0x8] sm:$0xf] %v445
        %454 = vst [vmem:[%s257 + $0xc] sm:$0xf] %v446
        %455 = vst [vmem:[%s257 + $0x10] sm:$0xf] %v447
        %456 = vst [vmem:[%s257 + $0x14] sm:$0xf] %v448
        %457 = vst [vmem:[%s257 + $0x18] sm:$0xf] %v449
        %458 = vst [vmem:[%s257 + $0x1c] sm:$0xf] %v450
      $region40: #{bottleneck_forward.6} parent=31 // pred_fallthru
        _
      %s459 = smul.u32 8, %s19
      %p460 = scmp.lt.s32.totalorder %s459, 15
      %s461 = scalar_select %p460, %s459, 15
      %p462 = scmp.lt.s32.totalorder %s20, 0
      %s463 = scalar_select %p462, %s20, 0
      %s464 = sadd.s32 %s463, %s461
      %s465 = smul.addr %s464, 4
      %s466 = scalar_lea.vmem %s3, %s465
      // Predicated region
      $region41: #{bottleneck_forward.6} parent=31 // pred_check
        %p467 = pneg %p135
      $region42: #{bottleneck_forward.6} parent=31 // pred_check_branch
        %469 = sbr.rel (%p467) target = $region44
      $region43: #{bottleneck_forward.6} parent=31 // pred_region
        %s470 = smul.u32 8, %s19
      $region44: #{bottleneck_forward.6} parent=31 // pred_fallthru
        _
    $region32: #{bottleneck_forward.6} parent=5 // pred_fallthru
      _
    %p471 = scmp.le.s32.totalorder 2, %s9
    // Predicated region
    $region45: #{bottleneck_forward.6} parent=5 // pred_check
      %p472 = pneg %p471
    $region46: #{bottleneck_forward.6} parent=5 // pred_check_branch
      %474 = sbr.rel (%p472) target = $region48
    $region47: #{bottleneck_forward.6} parent=5 // pred_region
      %s475 = ssub.s32 %s9, 2
      // Predicated region
      $region49: #{bottleneck_forward.6} parent=47 // pred_check
        %p476 = pneg %p141
      $region50: #{bottleneck_forward.6} parent=47 // pred_check_branch
        %478 = sbr.rel (%p476) target = $region52
      $region51: #{bottleneck_forward.6} parent=47 // pred_region
        %s479 = smul.u32 8, %s22
        %p480 = scmp.lt.s32.totalorder %s479, 15
        %s481 = scalar_select %p480, %s479, 15
        %p482 = scmp.lt.s32.totalorder %s23, 0
        %s483 = scalar_select %p482, %s23, 0
        %s484 = sadd.s32 %s483, %s481
        %s485 = smul.addr %s484, 4
        %s486 = scalar_lea.vmem %s3, %s485
      $region52: #{bottleneck_forward.6} parent=47 // pred_fallthru
        _
    $region48: #{bottleneck_forward.6} parent=5 // pred_fallthru
      _
  $region6: #{bottleneck_forward.6} parent=0 // loop_footer
    %s13 = sadd.s32 1, %s9
  $region7: #{bottleneck_forward.6} parent=0 // loop_footer_branch
    %8 = sbr.rel target = $region3
  $region8: #{bottleneck_forward.6} parent=0 // loop_exit
    _

// kernel: bottleneck_forward.4
$region0: #{bottleneck_forward.4}
  #allocation0 [shape = 'u32[]', space=smem, size = 0x4, offset = 0x4, fixed_abs, tag = 'smem constant byte address 0x4 - core index']
  #allocation1 [shape = 'u32[72,128]{1,0:T(1,128)}', space=vmem, size = 0x9000, scoped, tag = 'internal scratch']
  #allocation2 [shape = 'f32[256,128]{1,0:T(8,128)}', space=vmem, size = 0x20000, scoped, tag = 'scratch operand']
  %s0 = inlined_call_operand.vmem [shape: bf16[512,128], index: 0, kind: input, shape index: {}]
  %s1 = inlined_call_operand.vmem [shape: bf16[128,128], index: 1, kind: input, shape index: {}]
  %s2 = inlined_call_operand.vmem [shape: f32[1,128], index: 2, kind: input, shape index: {}]
  %s3 = inlined_call_operand.vmem [shape: bf16[512,128], index: 3, kind: output, shape index: {}]
  %s4 = sld [smem:[#allocation0]]
  $region53: #{bottleneck_forward.4} parent=0
    _
  %s6 = ssub.s32 1, %s4
  %s7 = scalar_select 0, %s6, %s4
  loop: start=0, step=1, limit=4
  $region2: #{bottleneck_forward.4} parent=0 // loop_pre_header
    _
  $region3: #{bottleneck_forward.4} parent=0 // loop_header
    %s9 = sphi 0, %s13
    %p10 = scmp.ge.s32.totalorder %s9, 4
    %s16 = sphi 0, %s35
    %s17 = sphi 0, %s31
    %s18 = sphi 0, %s27
    %s19 = sphi 0, %s16
    %s20 = sphi 0, %s17
    %s21 = sphi 0, %s18
    %s22 = sphi 0, %s19
    %s23 = sphi 0, %s20
    %s24 = sphi 0, %s21
    %s40 = sphi 0, %s42
    %s43 = sphi 0, %s40
    %s44 = sphi 0, %s43
    %s60 = sphi 0, %s44
    %s68 = sphi 0, %s70
    %s71 = sphi 0, %s68
    %s72 = sphi 0, %s71
    %s88 = sphi 0, %s72
    %s94 = sphi 0, %s96
    %s97 = sphi 0, %s94
    %s98 = sphi 0, %s97
    %s114 = sphi 0, %s98
    %s122 = sphi 0, %s124
    %s125 = sphi 0, %s122
    %s126 = sphi 0, %s125
    %s142 = sphi 0, %s126
  $region4: #{bottleneck_forward.4} parent=0 // loop_header_branch
    %12 = sbr.rel (%p10) target = $region8
  $region5: #{bottleneck_forward.4} parent=0 // loop_body
    %s14 = ssub.s32 %s9, 1
    %s15 = ssub.s32 %s9, 2
    %s25 = sadd.s32 1, %s18
    %p26 = scmp.ge.s32.totalorder %s25, 1
    %s27 = scalar_select %p26, 0, %s25
    %s28 = sadd.s32 1, %s17
    %s29 = scalar_select %p26, %s28, %s17
    %p30 = scmp.ge.s32.totalorder %s29, 1
    %s31 = scalar_select %p30, 0, %s29
    %s32 = sadd.s32 1, %s16
    %s33 = scalar_select %p30, %s32, %s16
    %p34 = scmp.ge.s32.totalorder %s33, 2
    %s35 = scalar_select %p34, 0, %s33
    %s36 = ssub.s32 %s16, %s35
    %s37 = ssub.s32 %s18, %s27
    %s38 = sor.u32 %s36, %s37
    %p39 = scmp.eq.s32.totalorder %s38, 0
    %s41 = sadd.s32 %s40, 1
    %s42 = scalar_select %p39, %s40, %s41
    %p45 = pneg %p39
    %p46 = scmp.eq.s32.totalorder %s9, 1
    %p47 = por %p45, %p46
    %p48 = scmp.ne.s32.totalorder %s40, %s43
    %p49 = scmp.eq.s32.totalorder %s9, 0
    %p50 = por %p48, %p49
    %p51 = scmp.ne.s32.totalorder %s40, %s43
    %p52 = scmp.eq.s32.totalorder %s14, 1
    %p53 = por %p51, %p52
    %p54 = scmp.ne.s32.totalorder %s43, %s44
    %p55 = scmp.eq.s32.totalorder %s14, 0
    %p56 = por %p54, %p55
    %p57 = scmp.ne.s32.totalorder %s43, %s44
    %p58 = scmp.eq.s32.totalorder %s15, 1
    %p59 = por %p57, %p58
    %p61 = scmp.ne.s32.totalorder %s44, %s60
    %p62 = scmp.eq.s32.totalorder %s15, 0
    %p63 = por %p61, %p62
    %s64 = ssub.s32 %s18, %s27
    %s65 = ssub.s32 %s17, %s31
    %s66 = sor.u32 %s64, %s65
    %p67 = scmp.eq.s32.totalorder %s66, 0
    %s69 = sadd.s32 %s68, 1
    %s70 = scalar_select %p67, %s68, %s69
    %p73 = pneg %p67
    %p74 = scmp.eq.s32.totalorder %s9, 1
    %p75 = por %p73, %p74
    %p76 = scmp.ne.s32.totalorder %s68, %s71
    %p77 = scmp.eq.s32.totalorder %s9, 0
    %p78 = por %p76, %p77
    %p79 = scmp.ne.s32.totalorder %s68, %s71
    %p80 = scmp.eq.s32.totalorder %s14, 1
    %p81 = por %p79, %p80
    %p82 = scmp.ne.s32.totalorder %s71, %s72
    %p83 = scmp.eq.s32.totalorder %s14, 0
    %p84 = por %p82, %p83
    %p85 = scmp.ne.s32.totalorder %s71, %s72
    %p86 = scmp.eq.s32.totalorder %s15, 1
    %p87 = por %p85, %p86
    %p89 = scmp.ne.s32.totalorder %s72, %s88
    %p90 = scmp.eq.s32.totalorder %s15, 0
    %p91 = por %p89, %p90
    %s92 = ssub.s32 %s17, %s31
    %p93 = scmp.eq.s32.totalorder %s92, 0
    %s95 = sadd.s32 %s94, 1
    %s96 = scalar_select %p93, %s94, %s95
    %p99 = pneg %p93
    %p100 = scmp.eq.s32.totalorder %s9, 1
    %p101 = por %p99, %p100
    %p102 = scmp.ne.s32.totalorder %s94, %s97
    %p103 = scmp.eq.s32.totalorder %s9, 0
    %p104 = por %p102, %p103
    %p105 = scmp.ne.s32.totalorder %s94, %s97
    %p106 = scmp.eq.s32.totalorder %s14, 1
    %p107 = por %p105, %p106
    %p108 = scmp.ne.s32.totalorder %s97, %s98
    %p109 = scmp.eq.s32.totalorder %s14, 0
    %p110 = por %p108, %p109
    %p111 = scmp.ne.s32.totalorder %s97, %s98
    %p112 = scmp.eq.s32.totalorder %s15, 1
    %p113 = por %p111, %p112
    %p115 = scmp.ne.s32.totalorder %s98, %s114
    %p116 = scmp.eq.s32.totalorder %s15, 0
    %p117 = por %p115, %p116
    %s118 = ssub.s32 %s16, %s35
    %s119 = ssub.s32 %s17, %s31
    %s120 = sor.u32 %s118, %s119
    %p121 = scmp.eq.s32.totalorder %s120, 0
    %s123 = sadd.s32 %s122, 1
    %s124 = scalar_select %p121, %s122, %s123
    %p127 = pneg %p121
    %p128 = scmp.eq.s32.totalorder %s9, 1
    %p129 = por %p127, %p128
    %p130 = scmp.ne.s32.totalorder %s122, %s125
    %p131 = scmp.eq.s32.totalorder %s9, 0
    %p132 = por %p130, %p131
    %p133 = scmp.ne.s32.totalorder %s122, %s125
    %p134 = scmp.eq.s32.totalorder %s14, 1
    %p135 = por %p133, %p134
    %p136 = scmp.ne.s32.totalorder %s125, %s126
    %p137 = scmp.eq.s32.totalorder %s14, 0
    %p138 = por %p136, %p137
    %p139 = scmp.ne.s32.totalorder %s125, %s126
    %p140 = scmp.eq.s32.totalorder %s15, 1
    %p141 = por %p139, %p140
    %p143 = scmp.ne.s32.totalorder %s126, %s142
    %p144 = scmp.eq.s32.totalorder %s15, 0
    %p145 = por %p143, %p144
    %p146 = scmp.le.s32.totalorder 1, %s9
    %p147 = scmp.lt.s32.totalorder %s9, 3
    %p148 = pnand %p146, %p147
    %p149 = pneg %p148
    // Predicated region
    $region9: #{bottleneck_forward.4} parent=5 // pred_check
      _
    $region10: #{bottleneck_forward.4} parent=5 // pred_check_branch
      %151 = sbr.rel (%p148) target = $region12
    $region11: #{bottleneck_forward.4} parent=5 // pred_region
      %s152 = ssub.s32 %s9, 1
      // Predicated region
      $region13: #{bottleneck_forward.4} parent=11 // pred_check
        %p153 = pneg %p84
      $region14: #{bottleneck_forward.4} parent=11 // pred_check_branch
        %155 = sbr.rel (%p153) target = $region16
      $region15: #{bottleneck_forward.4} parent=11 // pred_region
        %s156 = smul.u32 16, %s21
        %p157 = scmp.lt.s32.totalorder %s156, 15
        %s158 = scalar_select %p157, %s156, 15
        %p159 = scmp.lt.s32.totalorder %s20, 0
        %s160 = scalar_select %p159, %s20, 0
        %s161 = sadd.s32 %s160, %s158
        %s162 = smul.addr %s161, 4
        %s163 = scalar_lea.vmem %s1, %s162
        %s164 = smul.u32 16, %s21
      $region16: #{bottleneck_forward.4} parent=11 // pred_fallthru
        _
      // Predicated region
      $region17: #{bottleneck_forward.4} parent=11 // pred_check
        %p165 = pneg %p110
      $region18: #{bottleneck_forward.4} parent=11 // pred_check_branch
        %167 = sbr.rel (%p165) target = $region20
      $region19: #{bottleneck_forward.4} parent=11 // pred_region
        %p168 = scmp.lt.s32.totalorder %s20, 0
        %s169 = scalar_select %p168, %s20, 0
        %s170 = scalar_lea.vmem %s2, %s169
      $region20: #{bottleneck_forward.4} parent=11 // pred_fallthru
        _
    $region12: #{bottleneck_forward.4} parent=5 // pred_fallthru
      _
    %p171 = scmp.lt.s32.totalorder %s9, 2
    // Predicated region
    $region21: #{bottleneck_forward.4} parent=5 // pred_check
      %p172 = pneg %p171
    $region22: #{bottleneck_forward.4} parent=5 // pred_check_branch
      %174 = sbr.rel (%p172) target = $region24
    $region23: #{bottleneck_forward.4} parent=5 // pred_region
      // Predicated region
      $region25: #{bottleneck_forward.4} parent=23 // pred_check
        %p175 = pneg %p50
      $region26: #{bottleneck_forward.4} parent=23 // pred_check_branch
        %177 = sbr.rel (%p175) target = $region28
      $region27: #{bottleneck_forward.4} parent=23 // pred_region
        %s178 = smul.u32 32, %s16
        %p179 = scmp.lt.s32.totalorder %s178, 63
        %s180 = scalar_select %p179, %s178, 63
        %p181 = scmp.lt.s32.totalorder %s18, 0
        %s182 = scalar_select %p181, %s18, 0
        %s183 = sadd.s32 %s182, %s180
        %s184 = smul.addr %s183, 4
        %s185 = scalar_lea.vmem %s0, %s184
        %s186 = smul.u32 32, %s16
      $region28: #{bottleneck_forward.4} parent=23 // pred_fallthru
        _
    $region24: #{bottleneck_forward.4} parent=5 // pred_fallthru
      _
    %p187 = scmp.le.s32.totalorder 1, %s9
    %p188 = scmp.lt.s32.totalorder %s9, 3
    %p189 = pnand %p187, %p188
    %p190 = pneg %p189
    // Predicated region
    $region29: #{bottleneck_forward.4} parent=5 // pred_check
      _
    $region30: #{bottleneck_forward.4} parent=5 // pred_check_branch
      %192 = sbr.rel (%p189) target = $region32
    $region31: #{bottleneck_forward.4} parent=5 // pred_region
      %s193 = ssub.s32 %s9, 1
      %s194 = smul.u32 32, %s19
      %p195 = scmp.lt.s32.totalorder %s194, 63
      %s196 = scalar_select %p195, %s194, 63
      %p197 = scmp.lt.s32.totalorder %s21, 0
      %s198 = scalar_select %p197, %s21, 0
      %s199 = sadd.s32 %s198, %s196
      %s200 = smul.addr %s199, 4
      %s201 = scalar_lea.vmem %s0, %s200
      %p202 = pneg %p56
      %p203 = pneg %p53
      %s204 = smul.u32 16, %s21
      %p205 = scmp.lt.s32.totalorder %s204, 15
      %s206 = scalar_select %p205, %s204, 15
      %p207 = scmp.lt.s32.totalorder %s20, 0
      %s208 = scalar_select %p207, %s20, 0
      %s209 = sadd.s32 %s208, %s206
      %s210 = smul.addr %s209, 4
      %s211 = scalar_lea.vmem %s1, %s210
      %p212 = pneg %p84
      %p213 = pneg %p81
      %p214 = scmp.lt.s32.totalorder %s20, 0
      %s215 = scalar_select %p214, %s20, 0
      %s216 = scalar_lea.vmem %s2, %s215
      %p217 = pneg %p110
      %p218 = pneg %p107
      %p219 = pneg %p138
      %p220 = pneg %p135
      %s221 = smul.u32 32, %s19
      %p222 = scmp.lt.s32.totalorder %s221, 63
      %s223 = scalar_select %p222, %s221, 63
      %p224 = scmp.lt.s32.totalorder %s20, 0
      %s225 = scalar_select %p224, %s20, 0
      %s226 = sadd.s32 %s225, %s223
      %s227 = smul.addr %s226, 4
      %s228 = scalar_lea.vmem %s3, %s227
      %s229 = smul.u32 32, %s19
      %p230 = scmp.lt.s32.totalorder %s229, 63
      %s231 = scalar_select %p230, %s229, 63
      %p232 = scmp.lt.s32.totalorder %s21, 0
      %s233 = scalar_select %p232, %s21, 0
      %s234 = sadd.s32 %s233, %s231
      %s235 = smul.addr %s234, 4
      %s236 = scalar_lea.vmem %s0, %s235
      %s237 = smul.u32 32, %s19
      %s238 = smul.u32 16, %s21
      %p239 = scmp.lt.s32.totalorder %s238, 15
      %s240 = scalar_select %p239, %s238, 15
      %p241 = scmp.lt.s32.totalorder %s20, 0
      %s242 = scalar_select %p241, %s20, 0
      %s243 = sadd.s32 %s242, %s240
      %s244 = smul.addr %s243, 4
      %s245 = scalar_lea.vmem %s1, %s244
      %s246 = smul.u32 16, %s21
      %p247 = scmp.lt.s32.totalorder %s20, 0
      %s248 = scalar_select %p247, %s20, 0
      %s249 = scalar_lea.vmem %s2, %s248
      %s250 = smul.u32 32, %s19
      %p251 = scmp.lt.s32.totalorder %s250, 63
      %s252 = scalar_select %p251, %s250, 63
      %p253 = scmp.lt.s32.totalorder %s20, 0
      %s254 = scalar_select %p253, %s20, 0
      %s255 = sadd.s32 %s254, %s252
      %s256 = smul.addr %s255, 4
      %s257 = scalar_lea.vmem %s3, %s256
      %s258 = smul.u32 32, %s19
      %p259 = scmp.eq.s32.totalorder %s21, 0
      // Predicated region
      $region33: #{bottleneck_forward.4} parent=31 // pred_check
        %p260 = pneg %p259
      $region34: #{bottleneck_forward.4} parent=31 // pred_check_branch
        %262 = sbr.rel (%p260) target = $region36
      $region35: #{bottleneck_forward.4} parent=31 // pred_region
        %263 = vst [vmem:[#allocation2] sm:$0xff] 0.0
        %264 = vst [vmem:[#allocation2 + $0x8] sm:$0xff] 0.0
        %265 = vst [vmem:[#allocation2 + $0x10] sm:$0xff] 0.0
        %266 = vst [vmem:[#allocation2 + $0x18] sm:$0xff] 0.0
        %267 = vst [vmem:[#allocation2 + $0x20] sm:$0xff] 0.0
        %268 = vst [vmem:[#allocation2 + $0x28] sm:$0xff] 0.0
        %269 = vst [vmem:[#allocation2 + $0x30] sm:$0xff] 0.0
        %270 = vst [vmem:[#allocation2 + $0x38] sm:$0xff] 0.0
        %271 = vst [vmem:[#allocation2 + $0x40] sm:$0xff] 0.0
        %272 = vst [vmem:[#allocation2 + $0x48] sm:$0xff] 0.0
        %273 = vst [vmem:[#allocation2 + $0x50] sm:$0xff] 0.0
        %274 = vst [vmem:[#allocation2 + $0x58] sm:$0xff] 0.0
        %275 = vst [vmem:[#allocation2 + $0x60] sm:$0xff] 0.0
        %276 = vst [vmem:[#allocation2 + $0x68] sm:$0xff] 0.0
        %277 = vst [vmem:[#allocation2 + $0x70] sm:$0xff] 0.0
        %278 = vst [vmem:[#allocation2 + $0x78] sm:$0xff] 0.0
        %279 = vst [vmem:[#allocation2 + $0x80] sm:$0xff] 0.0
        %280 = vst [vmem:[#allocation2 + $0x88] sm:$0xff] 0.0
        %281 = vst [vmem:[#allocation2 + $0x90] sm:$0xff] 0.0
        %282 = vst [vmem:[#allocation2 + $0x98] sm:$0xff] 0.0
        %283 = vst [vmem:[#allocation2 + $0xa0] sm:$0xff] 0.0
        %284 = vst [vmem:[#allocation2 + $0xa8] sm:$0xff] 0.0
        %285 = vst [vmem:[#allocation2 + $0xb0] sm:$0xff] 0.0
        %286 = vst [vmem:[#allocation2 + $0xb8] sm:$0xff] 0.0
        %287 = vst [vmem:[#allocation2 + $0xc0] sm:$0xff] 0.0
        %288 = vst [vmem:[#allocation2 + $0xc8] sm:$0xff] 0.0
        %289 = vst [vmem:[#allocation2 + $0xd0] sm:$0xff] 0.0
        %290 = vst [vmem:[#allocation2 + $0xd8] sm:$0xff] 0.0
        %291 = vst [vmem:[#allocation2 + $0xe0] sm:$0xff] 0.0
        %292 = vst [vmem:[#allocation2 + $0xe8] sm:$0xff] 0.0
        %293 = vst [vmem:[#allocation2 + $0xf0] sm:$0xff] 0.0
        %294 = vst [vmem:[#allocation2 + $0xf8] sm:$0xff] 0.0
      $region36: #{bottleneck_forward.4} parent=31 // pred_fallthru
        _
      %v295 = vld [vmem:[#allocation2] sm:$0xff]
      %v296 = vld [vmem:[#allocation2 + $0x8] sm:$0xff]
      %v297 = vld [vmem:[#allocation2 + $0x10] sm:$0xff]
      %v298 = vld [vmem:[#allocation2 + $0x18] sm:$0xff]
      %v299 = vld [vmem:[#allocation2 + $0x20] sm:$0xff]
      %v300 = vld [vmem:[#allocation2 + $0x28] sm:$0xff]
      %v301 = vld [vmem:[#allocation2 + $0x30] sm:$0xff]
      %v302 = vld [vmem:[#allocation2 + $0x38] sm:$0xff]
      %v303 = vld [vmem:[#allocation2 + $0x40] sm:$0xff]
      %v304 = vld [vmem:[#allocation2 + $0x48] sm:$0xff]
      %v305 = vld [vmem:[#allocation2 + $0x50] sm:$0xff]
      %v306 = vld [vmem:[#allocation2 + $0x58] sm:$0xff]
      %v307 = vld [vmem:[#allocation2 + $0x60] sm:$0xff]
      %v308 = vld [vmem:[#allocation2 + $0x68] sm:$0xff]
      %v309 = vld [vmem:[#allocation2 + $0x70] sm:$0xff]
      %v310 = vld [vmem:[#allocation2 + $0x78] sm:$0xff]
      %v311 = vld [vmem:[#allocation2 + $0x80] sm:$0xff]
      %v312 = vld [vmem:[#allocation2 + $0x88] sm:$0xff]
      %v313 = vld [vmem:[#allocation2 + $0x90] sm:$0xff]
      %v314 = vld [vmem:[#allocation2 + $0x98] sm:$0xff]
      %v315 = vld [vmem:[#allocation2 + $0xa0] sm:$0xff]
      %v316 = vld [vmem:[#allocation2 + $0xa8] sm:$0xff]
      %v317 = vld [vmem:[#allocation2 + $0xb0] sm:$0xff]
      %v318 = vld [vmem:[#allocation2 + $0xb8] sm:$0xff]
      %v319 = vld [vmem:[#allocation2 + $0xc0] sm:$0xff]
      %v320 = vld [vmem:[#allocation2 + $0xc8] sm:$0xff]
      %v321 = vld [vmem:[#allocation2 + $0xd0] sm:$0xff]
      %v322 = vld [vmem:[#allocation2 + $0xd8] sm:$0xff]
      %v323 = vld [vmem:[#allocation2 + $0xe0] sm:$0xff]
      %v324 = vld [vmem:[#allocation2 + $0xe8] sm:$0xff]
      %v325 = vld [vmem:[#allocation2 + $0xf0] sm:$0xff]
      %v326 = vld [vmem:[#allocation2 + $0xf8] sm:$0xff]
      %v327 = vld [vmem:[%s236] sm:$0xf]
      %v328 = vld [vmem:[%s236 + $0x4] sm:$0xf]
      %v329 = vld [vmem:[%s236 + $0x8] sm:$0xf]
      %v330 = vld [vmem:[%s236 + $0xc] sm:$0xf]
      %v331 = vld [vmem:[%s236 + $0x10] sm:$0xf]
      %v332 = vld [vmem:[%s236 + $0x14] sm:$0xf]
      %v333 = vld [vmem:[%s236 + $0x18] sm:$0xf]
      %v334 = vld [vmem:[%s236 + $0x1c] sm:$0xf]
      %v335 = vld [vmem:[%s236 + $0x20] sm:$0xf]
      %v336 = vld [vmem:[%s236 + $0x24] sm:$0xf]
      %v337 = vld [vmem:[%s236 + $0x28] sm:$0xf]
      %v338 = vld [vmem:[%s236 + $0x2c] sm:$0xf]
      %v339 = vld [vmem:[%s236 + $0x30] sm:$0xf]
      %v340 = vld [vmem:[%s236 + $0x34] sm:$0xf]
      %v341 = vld [vmem:[%s236 + $0x38] sm:$0xf]
      %v342 = vld [vmem:[%s236 + $0x3c] sm:$0xf]
      %v343 = vld [vmem:[%s236 + $0x40] sm:$0xf]
      %v344 = vld [vmem:[%s236 + $0x44] sm:$0xf]
      %v345 = vld [vmem:[%s236 + $0x48] sm:$0xf]
      %v346 = vld [vmem:[%s236 + $0x4c] sm:$0xf]
      %v347 = vld [vmem:[%s236 + $0x50] sm:$0xf]
      %v348 = vld [vmem:[%s236 + $0x54] sm:$0xf]
      %v349 = vld [vmem:[%s236 + $0x58] sm:$0xf]
      %v350 = vld [vmem:[%s236 + $0x5c] sm:$0xf]
      %v351 = vld [vmem:[%s236 + $0x60] sm:$0xf]
      %v352 = vld [vmem:[%s236 + $0x64] sm:$0xf]
      %v353 = vld [vmem:[%s236 + $0x68] sm:$0xf]
      %v354 = vld [vmem:[%s236 + $0x6c] sm:$0xf]
      %v355 = vld [vmem:[%s236 + $0x70] sm:$0xf]
      %v356 = vld [vmem:[%s236 + $0x74] sm:$0xf]
      %v357 = vld [vmem:[%s236 + $0x78] sm:$0xf]
      %v358 = vld [vmem:[%s236 + $0x7c] sm:$0xf]
      %v359 = vld [vmem:[%s245] sm:$0xf]
      %v360 = vld [vmem:[%s245 + $0x4] sm:$0xf]
      %v361 = vld [vmem:[%s245 + $0x8] sm:$0xf]
      %v362 = vld [vmem:[%s245 + $0xc] sm:$0xf]
      %v363 = vld [vmem:[%s245 + $0x10] sm:$0xf]
      %v364 = vld [vmem:[%s245 + $0x14] sm:$0xf]
      %v365 = vld [vmem:[%s245 + $0x18] sm:$0xf]
      %v366 = vld [vmem:[%s245 + $0x1c] sm:$0xf]
      %v367 = vld [vmem:[%s245 + $0x20] sm:$0xf]
      %v368 = vld [vmem:[%s245 + $0x24] sm:$0xf]
      %v369 = vld [vmem:[%s245 + $0x28] sm:$0xf]
      %v370 = vld [vmem:[%s245 + $0x2c] sm:$0xf]
      %v371 = vld [vmem:[%s245 + $0x30] sm:$0xf]
      %v372 = vld [vmem:[%s245 + $0x34] sm:$0xf]
      %v373 = vld [vmem:[%s245 + $0x38] sm:$0xf]
      %v374 = vld [vmem:[%s245 + $0x3c] sm:$0xf]
      %v407 = vunpack.c.l.b16 %v327
      %v408 = vunpack.c.l.b16 %v328
      %v409 = vunpack.c.l.b16 %v329
      %v410 = vunpack.c.l.b16 %v330
      %v411 = vunpack.c.l.b16 %v331
      %v412 = vunpack.c.l.b16 %v332
      %v413 = vunpack.c.l.b16 %v333
      %v414 = vunpack.c.l.b16 %v334
      %v415 = vunpack.c.l.b16 %v335
      %v416 = vunpack.c.l.b16 %v336
      %v417 = vunpack.c.l.b16 %v337
      %v418 = vunpack.c.l.b16 %v338
      %v419 = vunpack.c.l.b16 %v339
      %v420 = vunpack.c.l.b16 %v340
      %v421 = vunpack.c.l.b16 %v341
      %v422 = vunpack.c.l.b16 %v342
      %v423 = vunpack.c.l.b16 %v343
      %v424 = vunpack.c.l.b16 %v344
      %v425 = vunpack.c.l.b16 %v345
      %v426 = vunpack.c.l.b16 %v346
      %v427 = vunpack.c.l.b16 %v347
      %v428 = vunpack.c.l.b16 %v348
      %v429 = vunpack.c.l.b16 %v349
      %v430 = vunpack.c.l.b16 %v350
      %v431 = vunpack.c.l.b16 %v351
      %v432 = vunpack.c.l.b16 %v352
      %v433 = vunpack.c.l.b16 %v353
      %v434 = vunpack.c.l.b16 %v354
      %v435 = vunpack.c.l.b16 %v355
      %v436 = vunpack.c.l.b16 %v356
      %v437 = vunpack.c.l.b16 %v357
      %v438 = vunpack.c.l.b16 %v358
      %v439 = vpack.c.b16 %v408, %v407
      %v440 = vpack.c.b16 %v410, %v409
      %v441 = vpack.c.b16 %v412, %v411
      %v442 = vpack.c.b16 %v414, %v413
      %v443 = vpack.c.b16 %v416, %v415
      %v444 = vpack.c.b16 %v418, %v417
      %v445 = vpack.c.b16 %v420, %v419
      %v446 = vpack.c.b16 %v422, %v421
      %v447 = vpack.c.b16 %v424, %v423
      %v448 = vpack.c.b16 %v426, %v425
      %v449 = vpack.c.b16 %v428, %v427
      %v450 = vpack.c.b16 %v430, %v429
      %v451 = vpack.c.b16 %v432, %v431
      %v452 = vpack.c.b16 %v434, %v433
      %v453 = vpack.c.b16 %v436, %v435
      %v454 = vpack.c.b16 %v438, %v437
      %v487 = vunpack.c.l.b16 %v359
      %v488 = vunpack.c.l.b16 %v360
      %v489 = vunpack.c.l.b16 %v361
      %v490 = vunpack.c.l.b16 %v362
      %v491 = vunpack.c.l.b16 %v363
      %v492 = vunpack.c.l.b16 %v364
      %v493 = vunpack.c.l.b16 %v365
      %v494 = vunpack.c.l.b16 %v366
      %v495 = vunpack.c.l.b16 %v367
      %v496 = vunpack.c.l.b16 %v368
      %v497 = vunpack.c.l.b16 %v369
      %v498 = vunpack.c.l.b16 %v370
      %v499 = vunpack.c.l.b16 %v371
      %v500 = vunpack.c.l.b16 %v372
      %v501 = vunpack.c.l.b16 %v373
      %v502 = vunpack.c.l.b16 %v374
      %v503 = vpack.c.b16 %v488, %v487
      %v504 = vpack.c.b16 %v490, %v489
      %v505 = vpack.c.b16 %v492, %v491
      %v506 = vpack.c.b16 %v494, %v493
      %v507 = vpack.c.b16 %v496, %v495
      %v508 = vpack.c.b16 %v498, %v497
      %v509 = vpack.c.b16 %v500, %v499
      %v510 = vpack.c.b16 %v502, %v501
      %519 = vmatpush.bf16.msra.mxu0 %v510
      %520 = vmatpush.bf16.msra.mxu0 %v509
      %521 = vmatpush.bf16.msra.mxu0 %v508
      %522 = vmatpush.bf16.msra.mxu0 %v507
      %523 = vmatpush.bf16.msra.mxu0 %v506
      %524 = vmatpush.bf16.msra.mxu0 %v505
      %525 = vmatpush.bf16.msra.mxu0 %v504
      %526 = vmatpush.bf16.msra.mxu0 %v503
      %527 = vmatmul.bf16.gmra.mxu0 %v439
      %v528 = vpop.f32.mrf.mxu0
      %v529 = vadd.f32 0.0, %v528
      %v530 = vpop.f32.mrf.mxu0
      %v531 = vadd.f32 0.0, %v530
      %532 = vmatmul.bf16.gmra.mxu0 %v440
      %v533 = vpop.f32.mrf.mxu0
      %v534 = vadd.f32 0.0, %v533
      %v535 = vpop.f32.mrf.mxu0
      %v536 = vadd.f32 0.0, %v535
      %537 = vmatmul.bf16.gmra.mxu0 %v441
      %v538 = vpop.f32.mrf.mxu0
      %v539 = vadd.f32 0.0, %v538
      %v540 = vpop.f32.mrf.mxu0
      %v541 = vadd.f32 0.0, %v540
      %542 = vmatmul.bf16.gmra.mxu0 %v442
      %v543 = vpop.f32.mrf.mxu0
      %v544 = vadd.f32 0.0, %v543
      %v545 = vpop.f32.mrf.mxu0
      %v546 = vadd.f32 0.0, %v545
      %547 = vmatmul.bf16.gmra.mxu0 %v443
      %v548 = vpop.f32.mrf.mxu0
      %v549 = vadd.f32 0.0, %v548
      %v550 = vpop.f32.mrf.mxu0
      %v551 = vadd.f32 0.0, %v550
      %552 = vmatmul.bf16.gmra.mxu0 %v444
      %v553 = vpop.f32.mrf.mxu0
      %v554 = vadd.f32 0.0, %v553
      %v555 = vpop.f32.mrf.mxu0
      %v556 = vadd.f32 0.0, %v555
      %557 = vmatmul.bf16.gmra.mxu0 %v445
      %v558 = vpop.f32.mrf.mxu0
      %v559 = vadd.f32 0.0, %v558
      %v560 = vpop.f32.mrf.mxu0
      %v561 = vadd.f32 0.0, %v560
      %562 = vmatmul.bf16.gmra.mxu0 %v446
      %v563 = vpop.f32.mrf.mxu0
      %v564 = vadd.f32 0.0, %v563
      %v565 = vpop.f32.mrf.mxu0
      %v566 = vadd.f32 0.0, %v565
      %567 = vmatmul.bf16.gmra.mxu0 %v447
      %v568 = vpop.f32.mrf.mxu0
      %v569 = vadd.f32 0.0, %v568
      %v570 = vpop.f32.mrf.mxu0
      %v571 = vadd.f32 0.0, %v570
      %572 = vmatmul.bf16.gmra.mxu0 %v448
      %v573 = vpop.f32.mrf.mxu0
      %v574 = vadd.f32 0.0, %v573
      %v575 = vpop.f32.mrf.mxu0
      %v576 = vadd.f32 0.0, %v575
      %577 = vmatmul.bf16.gmra.mxu0 %v449
      %v578 = vpop.f32.mrf.mxu0
      %v579 = vadd.f32 0.0, %v578
      %v580 = vpop.f32.mrf.mxu0
      %v581 = vadd.f32 0.0, %v580
      %582 = vmatmul.bf16.gmra.mxu0 %v450
      %v583 = vpop.f32.mrf.mxu0
      %v584 = vadd.f32 0.0, %v583
      %v585 = vpop.f32.mrf.mxu0
      %v586 = vadd.f32 0.0, %v585
      %587 = vmatmul.bf16.gmra.mxu0 %v451
      %v588 = vpop.f32.mrf.mxu0
      %v589 = vadd.f32 0.0, %v588
      %v590 = vpop.f32.mrf.mxu0
      %v591 = vadd.f32 0.0, %v590
      %592 = vmatmul.bf16.gmra.mxu0 %v452
      %v593 = vpop.f32.mrf.mxu0
      %v594 = vadd.f32 0.0, %v593
      %v595 = vpop.f32.mrf.mxu0
      %v596 = vadd.f32 0.0, %v595
      %597 = vmatmul.bf16.gmra.mxu0 %v453
      %v598 = vpop.f32.mrf.mxu0
      %v599 = vadd.f32 0.0, %v598
      %v600 = vpop.f32.mrf.mxu0
      %v601 = vadd.f32 0.0, %v600
      %602 = vmatmul.bf16.gmra.mxu0 %v454
      %v603 = vpop.f32.mrf.mxu0
      %v604 = vadd.f32 0.0, %v603
      %v605 = vpop.f32.mrf.mxu0
      %v606 = vadd.f32 0.0, %v605
      %607 = vdwg.mxu0
      %v608 = vadd.f32 %v295, %v529
      %v609 = vadd.f32 %v296, %v531
      %v610 = vadd.f32 %v297, %v534
      %v611 = vadd.f32 %v298, %v536
      %v612 = vadd.f32 %v299, %v539
      %v613 = vadd.f32 %v300, %v541
      %v614 = vadd.f32 %v301, %v544
      %v615 = vadd.f32 %v302, %v546
      %v616 = vadd.f32 %v303, %v549
      %v617 = vadd.f32 %v304, %v551
      %v618 = vadd.f32 %v305, %v554
      %v619 = vadd.f32 %v306, %v556
      %v620 = vadd.f32 %v307, %v559
      %v621 = vadd.f32 %v308, %v561
      %v622 = vadd.f32 %v309, %v564
      %v623 = vadd.f32 %v310, %v566
      %v624 = vadd.f32 %v311, %v569
      %v625 = vadd.f32 %v312, %v571
      %v626 = vadd.f32 %v313, %v574
      %v627 = vadd.f32 %v314, %v576
      %v628 = vadd.f32 %v315, %v579
      %v629 = vadd.f32 %v316, %v581
      %v630 = vadd.f32 %v317, %v584
      %v631 = vadd.f32 %v318, %v586
      %v632 = vadd.f32 %v319, %v589
      %v633 = vadd.f32 %v320, %v591
      %v634 = vadd.f32 %v321, %v594
      %v635 = vadd.f32 %v322, %v596
      %v636 = vadd.f32 %v323, %v599
      %v637 = vadd.f32 %v324, %v601
      %v638 = vadd.f32 %v325, %v604
      %v639 = vadd.f32 %v326, %v606
      %640 = vst [vmem:[#allocation2] sm:$0xff] %v608
      %641 = vst [vmem:[#allocation2 + $0x8] sm:$0xff] %v609
      %642 = vst [vmem:[#allocation2 + $0x10] sm:$0xff] %v610
      %643 = vst [vmem:[#allocation2 + $0x18] sm:$0xff] %v611
      %644 = vst [vmem:[#allocation2 + $0x20] sm:$0xff] %v612
      %645 = vst [vmem:[#allocation2 + $0x28] sm:$0xff] %v613
      %646 = vst [vmem:[#allocation2 + $0x30] sm:$0xff] %v614
      %647 = vst [vmem:[#allocation2 + $0x38] sm:$0xff] %v615
      %648 = vst [vmem:[#allocation2 + $0x40] sm:$0xff] %v616
      %649 = vst [vmem:[#allocation2 + $0x48] sm:$0xff] %v617
      %650 = vst [vmem:[#allocation2 + $0x50] sm:$0xff] %v618
      %651 = vst [vmem:[#allocation2 + $0x58] sm:$0xff] %v619
      %652 = vst [vmem:[#allocation2 + $0x60] sm:$0xff] %v620
      %653 = vst [vmem:[#allocation2 + $0x68] sm:$0xff] %v621
      %654 = vst [vmem:[#allocation2 + $0x70] sm:$0xff] %v622
      %655 = vst [vmem:[#allocation2 + $0x78] sm:$0xff] %v623
      %656 = vst [vmem:[#allocation2 + $0x80] sm:$0xff] %v624
      %657 = vst [vmem:[#allocation2 + $0x88] sm:$0xff] %v625
      %658 = vst [vmem:[#allocation2 + $0x90] sm:$0xff] %v626
      %659 = vst [vmem:[#allocation2 + $0x98] sm:$0xff] %v627
      %660 = vst [vmem:[#allocation2 + $0xa0] sm:$0xff] %v628
      %661 = vst [vmem:[#allocation2 + $0xa8] sm:$0xff] %v629
      %662 = vst [vmem:[#allocation2 + $0xb0] sm:$0xff] %v630
      %663 = vst [vmem:[#allocation2 + $0xb8] sm:$0xff] %v631
      %664 = vst [vmem:[#allocation2 + $0xc0] sm:$0xff] %v632
      %665 = vst [vmem:[#allocation2 + $0xc8] sm:$0xff] %v633
      %666 = vst [vmem:[#allocation2 + $0xd0] sm:$0xff] %v634
      %667 = vst [vmem:[#allocation2 + $0xd8] sm:$0xff] %v635
      %668 = vst [vmem:[#allocation2 + $0xe0] sm:$0xff] %v636
      %669 = vst [vmem:[#allocation2 + $0xe8] sm:$0xff] %v637
      %670 = vst [vmem:[#allocation2 + $0xf0] sm:$0xff] %v638
      %671 = vst [vmem:[#allocation2 + $0xf8] sm:$0xff] %v639
      // Predicated region
      $region37: #{bottleneck_forward.4} parent=31 // pred_check
        %p672 = pneg %p259
      $region38: #{bottleneck_forward.4} parent=31 // pred_check_branch
        %674 = sbr.rel (%p672) target = $region40
      $region39: #{bottleneck_forward.4} parent=31 // pred_region
        %v675 = vld [vmem:[#allocation2] sm:$0xff]
        %v676 = vld [vmem:[#allocation2 + $0x8] sm:$0xff]
        %v677 = vld [vmem:[#allocation2 + $0x10] sm:$0xff]
        %v678 = vld [vmem:[#allocation2 + $0x18] sm:$0xff]
        %v679 = vld [vmem:[#allocation2 + $0x20] sm:$0xff]
        %v680 = vld [vmem:[#allocation2 + $0x28] sm:$0xff]
        %v681 = vld [vmem:[#allocation2 + $0x30] sm:$0xff]
        %v682 = vld [vmem:[#allocation2 + $0x38] sm:$0xff]
        %v683 = vld [vmem:[#allocation2 + $0x40] sm:$0xff]
        %v684 = vld [vmem:[#allocation2 + $0x48] sm:$0xff]
        %v685 = vld [vmem:[#allocation2 + $0x50] sm:$0xff]
        %v686 = vld [vmem:[#allocation2 + $0x58] sm:$0xff]
        %v687 = vld [vmem:[#allocation2 + $0x60] sm:$0xff]
        %v688 = vld [vmem:[#allocation2 + $0x68] sm:$0xff]
        %v689 = vld [vmem:[#allocation2 + $0x70] sm:$0xff]
        %v690 = vld [vmem:[#allocation2 + $0x78] sm:$0xff]
        %v691 = vld [vmem:[#allocation2 + $0x80] sm:$0xff]
        %v692 = vld [vmem:[#allocation2 + $0x88] sm:$0xff]
        %v693 = vld [vmem:[#allocation2 + $0x90] sm:$0xff]
        %v694 = vld [vmem:[#allocation2 + $0x98] sm:$0xff]
        %v695 = vld [vmem:[#allocation2 + $0xa0] sm:$0xff]
        %v696 = vld [vmem:[#allocation2 + $0xa8] sm:$0xff]
        %v697 = vld [vmem:[#allocation2 + $0xb0] sm:$0xff]
        %v698 = vld [vmem:[#allocation2 + $0xb8] sm:$0xff]
        %v699 = vld [vmem:[#allocation2 + $0xc0] sm:$0xff]
        %v700 = vld [vmem:[#allocation2 + $0xc8] sm:$0xff]
        %v701 = vld [vmem:[#allocation2 + $0xd0] sm:$0xff]
        %v702 = vld [vmem:[#allocation2 + $0xd8] sm:$0xff]
        %v703 = vld [vmem:[#allocation2 + $0xe0] sm:$0xff]
        %v704 = vld [vmem:[#allocation2 + $0xe8] sm:$0xff]
        %v705 = vld [vmem:[#allocation2 + $0xf0] sm:$0xff]
        %v706 = vld [vmem:[#allocation2 + $0xf8] sm:$0xff]
        %v707 = vld [vmem:[%s249] sm:$0x1]
        %v709 = vperm.slane %v707, 0
        %v711 = vadd.f32 %v675, %v709
        %v712 = vadd.f32 %v676, %v709
        %v713 = vadd.f32 %v677, %v709
        %v714 = vadd.f32 %v678, %v709
        %v715 = vadd.f32 %v679, %v709
        %v716 = vadd.f32 %v680, %v709
        %v717 = vadd.f32 %v681, %v709
        %v718 = vadd.f32 %v682, %v709
        %v719 = vadd.f32 %v683, %v709
        %v720 = vadd.f32 %v684, %v709
        %v721 = vadd.f32 %v685, %v709
        %v722 = vadd.f32 %v686, %v709
        %v723 = vadd.f32 %v687, %v709
        %v724 = vadd.f32 %v688, %v709
        %v725 = vadd.f32 %v689, %v709
        %v726 = vadd.f32 %v690, %v709
        %v727 = vadd.f32 %v691, %v709
        %v728 = vadd.f32 %v692, %v709
        %v729 = vadd.f32 %v693, %v709
        %v730 = vadd.f32 %v694, %v709
        %v731 = vadd.f32 %v695, %v709
        %v732 = vadd.f32 %v696, %v709
        %v733 = vadd.f32 %v697, %v709
        %v734 = vadd.f32 %v698, %v709
        %v735 = vadd.f32 %v699, %v709
        %v736 = vadd.f32 %v700, %v709
        %v737 = vadd.f32 %v701, %v709
        %v738 = vadd.f32 %v702, %v709
        %v739 = vadd.f32 %v703, %v709
        %v740 = vadd.f32 %v704, %v709
        %v741 = vadd.f32 %v705, %v709
        %v742 = vadd.f32 %v706, %v709
        %v743 = vmax.f32 %v711, 0.0
        %v744 = vmax.f32 %v712, 0.0
        %v745 = vmax.f32 %v713, 0.0
        %v746 = vmax.f32 %v714, 0.0
        %v747 = vmax.f32 %v715, 0.0
        %v748 = vmax.f32 %v716, 0.0
        %v749 = vmax.f32 %v717, 0.0
        %v750 = vmax.f32 %v718, 0.0
        %v751 = vmax.f32 %v719, 0.0
        %v752 = vmax.f32 %v720, 0.0
        %v753 = vmax.f32 %v721, 0.0
        %v754 = vmax.f32 %v722, 0.0
        %v755 = vmax.f32 %v723, 0.0
        %v756 = vmax.f32 %v724, 0.0
        %v757 = vmax.f32 %v725, 0.0
        %v758 = vmax.f32 %v726, 0.0
        %v759 = vmax.f32 %v727, 0.0
        %v760 = vmax.f32 %v728, 0.0
        %v761 = vmax.f32 %v729, 0.0
        %v762 = vmax.f32 %v730, 0.0
        %v763 = vmax.f32 %v731, 0.0
        %v764 = vmax.f32 %v732, 0.0
        %v765 = vmax.f32 %v733, 0.0
        %v766 = vmax.f32 %v734, 0.0
        %v767 = vmax.f32 %v735, 0.0
        %v768 = vmax.f32 %v736, 0.0
        %v769 = vmax.f32 %v737, 0.0
        %v770 = vmax.f32 %v738, 0.0
        %v771 = vmax.f32 %v739, 0.0
        %v772 = vmax.f32 %v740, 0.0
        %v773 = vmax.f32 %v741, 0.0
        %v774 = vmax.f32 %v742, 0.0
        %v775 = vpack.c.bf16 %v743, %v743
        %v776 = vpack.c.bf16 %v744, %v744
        %v777 = vpack.c.bf16 %v745, %v745
        %v778 = vpack.c.bf16 %v746, %v746
        %v779 = vpack.c.bf16 %v747, %v747
        %v780 = vpack.c.bf16 %v748, %v748
        %v781 = vpack.c.bf16 %v749, %v749
        %v782 = vpack.c.bf16 %v750, %v750
        %v783 = vpack.c.bf16 %v751, %v751
        %v784 = vpack.c.bf16 %v752, %v752
        %v785 = vpack.c.bf16 %v753, %v753
        %v786 = vpack.c.bf16 %v754, %v754
        %v787 = vpack.c.bf16 %v755, %v755
        %v788 = vpack.c.bf16 %v756, %v756
        %v789 = vpack.c.bf16 %v757, %v757
        %v790 = vpack.c.bf16 %v758, %v758
        %v791 = vpack.c.bf16 %v759, %v759
        %v792 = vpack.c.bf16 %v760, %v760
        %v793 = vpack.c.bf16 %v761, %v761
        %v794 = vpack.c.bf16 %v762, %v762
        %v795 = vpack.c.bf16 %v763, %v763
        %v796 = vpack.c.bf16 %v764, %v764
        %v797 = vpack.c.bf16 %v765, %v765
        %v798 = vpack.c.bf16 %v766, %v766
        %v799 = vpack.c.bf16 %v767, %v767
        %v800 = vpack.c.bf16 %v768, %v768
        %v801 = vpack.c.bf16 %v769, %v769
        %v802 = vpack.c.bf16 %v770, %v770
        %v803 = vpack.c.bf16 %v771, %v771
        %v804 = vpack.c.bf16 %v772, %v772
        %v805 = vpack.c.bf16 %v773, %v773
        %v806 = vpack.c.bf16 %v774, %v774
        %807 = vst [vmem:[%s257] sm:$0xf] %v775
        %808 = vst [vmem:[%s257 + $0x4] sm:$0xf] %v776
        %809 = vst [vmem:[%s257 + $0x8] sm:$0xf] %v777
        %810 = vst [vmem:[%s257 + $0xc] sm:$0xf] %v778
        %811 = vst [vmem:[%s257 + $0x10] sm:$0xf] %v779
        %812 = vst [vmem:[%s257 + $0x14] sm:$0xf] %v780
        %813 = vst [vmem:[%s257 + $0x18] sm:$0xf] %v781
        %814 = vst [vmem:[%s257 + $0x1c] sm:$0xf] %v782
        %815 = vst [vmem:[%s257 + $0x20] sm:$0xf] %v783
        %816 = vst [vmem:[%s257 + $0x24] sm:$0xf] %v784
        %817 = vst [vmem:[%s257 + $0x28] sm:$0xf] %v785
        %818 = vst [vmem:[%s257 + $0x2c] sm:$0xf] %v786
        %819 = vst [vmem:[%s257 + $0x30] sm:$0xf] %v787
        %820 = vst [vmem:[%s257 + $0x34] sm:$0xf] %v788
        %821 = vst [vmem:[%s257 + $0x38] sm:$0xf] %v789
        %822 = vst [vmem:[%s257 + $0x3c] sm:$0xf] %v790
        %823 = vst [vmem:[%s257 + $0x40] sm:$0xf] %v791
        %824 = vst [vmem:[%s257 + $0x44] sm:$0xf] %v792
        %825 = vst [vmem:[%s257 + $0x48] sm:$0xf] %v793
        %826 = vst [vmem:[%s257 + $0x4c] sm:$0xf] %v794
        %827 = vst [vmem:[%s257 + $0x50] sm:$0xf] %v795
        %828 = vst [vmem:[%s257 + $0x54] sm:$0xf] %v796
        %829 = vst [vmem:[%s257 + $0x58] sm:$0xf] %v797
        %830 = vst [vmem:[%s257 + $0x5c] sm:$0xf] %v798
        %831 = vst [vmem:[%s257 + $0x60] sm:$0xf] %v799
        %832 = vst [vmem:[%s257 + $0x64] sm:$0xf] %v800
        %833 = vst [vmem:[%s257 + $0x68] sm:$0xf] %v801
        %834 = vst [vmem:[%s257 + $0x6c] sm:$0xf] %v802
        %835 = vst [vmem:[%s257 + $0x70] sm:$0xf] %v803
        %836 = vst [vmem:[%s257 + $0x74] sm:$0xf] %v804
        %837 = vst [vmem:[%s257 + $0x78] sm:$0xf] %v805
        %838 = vst [vmem:[%s257 + $0x7c] sm:$0xf] %v806
      $region40: #{bottleneck_forward.4} parent=31 // pred_fallthru
        _
      %s839 = smul.u32 32, %s19
      %p840 = scmp.lt.s32.totalorder %s839, 63
      %s841 = scalar_select %p840, %s839, 63
      %p842 = scmp.lt.s32.totalorder %s20, 0
      %s843 = scalar_select %p842, %s20, 0
      %s844 = sadd.s32 %s843, %s841
      %s845 = smul.addr %s844, 4
      %s846 = scalar_lea.vmem %s3, %s845
      // Predicated region
      $region41: #{bottleneck_forward.4} parent=31 // pred_check
        %p847 = pneg %p135
      $region42: #{bottleneck_forward.4} parent=31 // pred_check_branch
        %849 = sbr.rel (%p847) target = $region44
      $region43: #{bottleneck_forward.4} parent=31 // pred_region
        %s850 = smul.u32 32, %s19
      $region44: #{bottleneck_forward.4} parent=31 // pred_fallthru
        _
    $region32: #{bottleneck_forward.4} parent=5 // pred_fallthru
      _
    %p851 = scmp.le.s32.totalorder 2, %s9
    // Predicated region
    $region45: #{bottleneck_forward.4} parent=5 // pred_check
      %p852 = pneg %p851
    $region46: #{bottleneck_forward.4} parent=5 // pred_check_branch
      %854 = sbr.rel (%p852) target = $region48
    $region47: #{bottleneck_forward.4} parent=5 // pred_region
      %s855 = ssub.s32 %s9, 2
      // Predicated region
      $region49: #{bottleneck_forward.4} parent=47 // pred_check
        %p856 = pneg %p141
      $region50: #{bottleneck_forward.4} parent=47 // pred_check_branch
        %858 = sbr.rel (%p856) target = $region52
      $region51: #{bottleneck_forward.4} parent=47 // pred_region
        %s859 = smul.u32 32, %s22
        %p860 = scmp.lt.s32.totalorder %s859, 63
        %s861 = scalar_select %p860, %s859, 63
        %p862 = scmp.lt.s32.totalorder %s23, 0
        %s863 = scalar_select %p862, %s23, 0
        %s864 = sadd.s32 %s863, %s861
        %s865 = smul.addr %s864, 4
        %s866 = scalar_lea.vmem %s3, %s865
      $region52: #{bottleneck_forward.4} parent=47 // pred_fallthru
        _
    $region48: #{bottleneck_forward.4} parent=5 // pred_fallthru
      _
  $region6: #{bottleneck_forward.4} parent=0 // loop_footer
    %s13 = sadd.s32 1, %s9
  $region7: #{bottleneck_forward.4} parent=0 // loop_footer_branch
    %8 = sbr.rel target = $region3
  $region8: #{bottleneck_forward.4} parent=0 // loop_exit
    _

// kernel: bottleneck_forward.7
$region0: #{bottleneck_forward.7}
  #allocation0 [shape = 'u32[]', space=smem, size = 0x4, offset = 0x4, fixed_abs, tag = 'smem constant byte address 0x4 - core index']
  #allocation1 [shape = 'u32[72,128]{1,0:T(1,128)}', space=vmem, size = 0x9000, scoped, tag = 'internal scratch']
  #allocation2 [shape = 'f32[64,128]{1,0:T(8,128)}', space=vmem, size = 0x8000, scoped, tag = 'scratch operand']
  %s0 = inlined_call_operand.vmem [shape: bf16[128,128], index: 0, kind: input, shape index: {}]
  %s1 = inlined_call_operand.vmem [shape: bf16[128,128], index: 1, kind: input, shape index: {}]
  %s2 = inlined_call_operand.vmem [shape: f32[1,128], index: 2, kind: input, shape index: {}]
  %s3 = inlined_call_operand.vmem [shape: bf16[128,128], index: 3, kind: input, shape index: {}]
  %s4 = inlined_call_operand.vmem [shape: bf16[128,128], index: 4, kind: output, shape index: {}]
  %s5 = sld [smem:[#allocation0]]
  $region57: #{bottleneck_forward.7} parent=0
    _
  %s7 = ssub.s32 1, %s5
  %s8 = scalar_select 0, %s7, %s5
  loop: start=0, step=1, limit=4
  $region2: #{bottleneck_forward.7} parent=0 // loop_pre_header
    _
  $region3: #{bottleneck_forward.7} parent=0 // loop_header
    %s10 = sphi 0, %s14
    %p11 = scmp.ge.s32.totalorder %s10, 4
    %s17 = sphi 0, %s36
    %s18 = sphi 0, %s32
    %s19 = sphi 0, %s28
    %s20 = sphi 0, %s17
    %s21 = sphi 0, %s18
    %s22 = sphi 0, %s19
    %s23 = sphi 0, %s20
    %s24 = sphi 0, %s21
    %s25 = sphi 0, %s22
    %s41 = sphi 0, %s43
    %s44 = sphi 0, %s41
    %s45 = sphi 0, %s44
    %s61 = sphi 0, %s45
    %s69 = sphi 0, %s71
    %s72 = sphi 0, %s69
    %s73 = sphi 0, %s72
    %s89 = sphi 0, %s73
    %s95 = sphi 0, %s97
    %s98 = sphi 0, %s95
    %s99 = sphi 0, %s98
    %s115 = sphi 0, %s99
    %s123 = sphi 0, %s125
    %s126 = sphi 0, %s123
    %s127 = sphi 0, %s126
    %s143 = sphi 0, %s127
    %s151 = sphi 0, %s153
    %s154 = sphi 0, %s151
    %s155 = sphi 0, %s154
    %s171 = sphi 0, %s155
  $region4: #{bottleneck_forward.7} parent=0 // loop_header_branch
    %13 = sbr.rel (%p11) target = $region8
  $region5: #{bottleneck_forward.7} parent=0 // loop_body
    %s15 = ssub.s32 %s10, 1
    %s16 = ssub.s32 %s10, 2
    %s26 = sadd.s32 1, %s19
    %p27 = scmp.ge.s32.totalorder %s26, 1
    %s28 = scalar_select %p27, 0, %s26
    %s29 = sadd.s32 1, %s18
    %s30 = scalar_select %p27, %s29, %s18
    %p31 = scmp.ge.s32.totalorder %s30, 1
    %s32 = scalar_select %p31, 0, %s30
    %s33 = sadd.s32 1, %s17
    %s34 = scalar_select %p31, %s33, %s17
    %p35 = scmp.ge.s32.totalorder %s34, 2
    %s36 = scalar_select %p35, 0, %s34
    %s37 = ssub.s32 %s17, %s36
    %s38 = ssub.s32 %s19, %s28
    %s39 = sor.u32 %s37, %s38
    %p40 = scmp.eq.s32.totalorder %s39, 0
    %s42 = sadd.s32 %s41, 1
    %s43 = scalar_select %p40, %s41, %s42
    %p46 = pneg %p40
    %p47 = scmp.eq.s32.totalorder %s10, 1
    %p48 = por %p46, %p47
    %p49 = scmp.ne.s32.totalorder %s41, %s44
    %p50 = scmp.eq.s32.totalorder %s10, 0
    %p51 = por %p49, %p50
    %p52 = scmp.ne.s32.totalorder %s41, %s44
    %p53 = scmp.eq.s32.totalorder %s15, 1
    %p54 = por %p52, %p53
    %p55 = scmp.ne.s32.totalorder %s44, %s45
    %p56 = scmp.eq.s32.totalorder %s15, 0
    %p57 = por %p55, %p56
    %p58 = scmp.ne.s32.totalorder %s44, %s45
    %p59 = scmp.eq.s32.totalorder %s16, 1
    %p60 = por %p58, %p59
    %p62 = scmp.ne.s32.totalorder %s45, %s61
    %p63 = scmp.eq.s32.totalorder %s16, 0
    %p64 = por %p62, %p63
    %s65 = ssub.s32 %s19, %s28
    %s66 = ssub.s32 %s18, %s32
    %s67 = sor.u32 %s65, %s66
    %p68 = scmp.eq.s32.totalorder %s67, 0
    %s70 = sadd.s32 %s69, 1
    %s71 = scalar_select %p68, %s69, %s70
    %p74 = pneg %p68
    %p75 = scmp.eq.s32.totalorder %s10, 1
    %p76 = por %p74, %p75
    %p77 = scmp.ne.s32.totalorder %s69, %s72
    %p78 = scmp.eq.s32.totalorder %s10, 0
    %p79 = por %p77, %p78
    %p80 = scmp.ne.s32.totalorder %s69, %s72
    %p81 = scmp.eq.s32.totalorder %s15, 1
    %p82 = por %p80, %p81
    %p83 = scmp.ne.s32.totalorder %s72, %s73
    %p84 = scmp.eq.s32.totalorder %s15, 0
    %p85 = por %p83, %p84
    %p86 = scmp.ne.s32.totalorder %s72, %s73
    %p87 = scmp.eq.s32.totalorder %s16, 1
    %p88 = por %p86, %p87
    %p90 = scmp.ne.s32.totalorder %s73, %s89
    %p91 = scmp.eq.s32.totalorder %s16, 0
    %p92 = por %p90, %p91
    %s93 = ssub.s32 %s18, %s32
    %p94 = scmp.eq.s32.totalorder %s93, 0
    %s96 = sadd.s32 %s95, 1
    %s97 = scalar_select %p94, %s95, %s96
    %p100 = pneg %p94
    %p101 = scmp.eq.s32.totalorder %s10, 1
    %p102 = por %p100, %p101
    %p103 = scmp.ne.s32.totalorder %s95, %s98
    %p104 = scmp.eq.s32.totalorder %s10, 0
    %p105 = por %p103, %p104
    %p106 = scmp.ne.s32.totalorder %s95, %s98
    %p107 = scmp.eq.s32.totalorder %s15, 1
    %p108 = por %p106, %p107
    %p109 = scmp.ne.s32.totalorder %s98, %s99
    %p110 = scmp.eq.s32.totalorder %s15, 0
    %p111 = por %p109, %p110
    %p112 = scmp.ne.s32.totalorder %s98, %s99
    %p113 = scmp.eq.s32.totalorder %s16, 1
    %p114 = por %p112, %p113
    %p116 = scmp.ne.s32.totalorder %s99, %s115
    %p117 = scmp.eq.s32.totalorder %s16, 0
    %p118 = por %p116, %p117
    %s119 = ssub.s32 %s17, %s36
    %s120 = ssub.s32 %s18, %s32
    %s121 = sor.u32 %s119, %s120
    %p122 = scmp.eq.s32.totalorder %s121, 0
    %s124 = sadd.s32 %s123, 1
    %s125 = scalar_select %p122, %s123, %s124
    %p128 = pneg %p122
    %p129 = scmp.eq.s32.totalorder %s10, 1
    %p130 = por %p128, %p129
    %p131 = scmp.ne.s32.totalorder %s123, %s126
    %p132 = scmp.eq.s32.totalorder %s10, 0
    %p133 = por %p131, %p132
    %p134 = scmp.ne.s32.totalorder %s123, %s126
    %p135 = scmp.eq.s32.totalorder %s15, 1
    %p136 = por %p134, %p135
    %p137 = scmp.ne.s32.totalorder %s126, %s127
    %p138 = scmp.eq.s32.totalorder %s15, 0
    %p139 = por %p137, %p138
    %p140 = scmp.ne.s32.totalorder %s126, %s127
    %p141 = scmp.eq.s32.totalorder %s16, 1
    %p142 = por %p140, %p141
    %p144 = scmp.ne.s32.totalorder %s127, %s143
    %p145 = scmp.eq.s32.totalorder %s16, 0
    %p146 = por %p144, %p145
    %s147 = ssub.s32 %s17, %s36
    %s148 = ssub.s32 %s18, %s32
    %s149 = sor.u32 %s147, %s148
    %p150 = scmp.eq.s32.totalorder %s149, 0
    %s152 = sadd.s32 %s151, 1
    %s153 = scalar_select %p150, %s151, %s152
    %p156 = pneg %p150
    %p157 = scmp.eq.s32.totalorder %s10, 1
    %p158 = por %p156, %p157
    %p159 = scmp.ne.s32.totalorder %s151, %s154
    %p160 = scmp.eq.s32.totalorder %s10, 0
    %p161 = por %p159, %p160
    %p162 = scmp.ne.s32.totalorder %s151, %s154
    %p163 = scmp.eq.s32.totalorder %s15, 1
    %p164 = por %p162, %p163
    %p165 = scmp.ne.s32.totalorder %s154, %s155
    %p166 = scmp.eq.s32.totalorder %s15, 0
    %p167 = por %p165, %p166
    %p168 = scmp.ne.s32.totalorder %s154, %s155
    %p169 = scmp.eq.s32.totalorder %s16, 1
    %p170 = por %p168, %p169
    %p172 = scmp.ne.s32.totalorder %s155, %s171
    %p173 = scmp.eq.s32.totalorder %s16, 0
    %p174 = por %p172, %p173
    %p175 = scmp.le.s32.totalorder 1, %s10
    %p176 = scmp.lt.s32.totalorder %s10, 3
    %p177 = pnand %p175, %p176
    %p178 = pneg %p177
    // Predicated region
    $region9: #{bottleneck_forward.7} parent=5 // pred_check
      _
    $region10: #{bottleneck_forward.7} parent=5 // pred_check_branch
      %180 = sbr.rel (%p177) target = $region12
    $region11: #{bottleneck_forward.7} parent=5 // pred_region
      %s181 = ssub.s32 %s10, 1
      // Predicated region
      $region13: #{bottleneck_forward.7} parent=11 // pred_check
        %p182 = pneg %p85
      $region14: #{bottleneck_forward.7} parent=11 // pred_check_branch
        %184 = sbr.rel (%p182) target = $region16
      $region15: #{bottleneck_forward.7} parent=11 // pred_region
        %s185 = smul.u32 16, %s22
        %p186 = scmp.lt.s32.totalorder %s185, 15
        %s187 = scalar_select %p186, %s185, 15
        %p188 = scmp.lt.s32.totalorder %s21, 0
        %s189 = scalar_select %p188, %s21, 0
        %s190 = sadd.s32 %s189, %s187
        %s191 = smul.addr %s190, 4
        %s192 = scalar_lea.vmem %s1, %s191
        %s193 = smul.u32 16, %s22
      $region16: #{bottleneck_forward.7} parent=11 // pred_fallthru
        _
      // Predicated region
      $region17: #{bottleneck_forward.7} parent=11 // pred_check
        %p194 = pneg %p111
      $region18: #{bottleneck_forward.7} parent=11 // pred_check_branch
        %196 = sbr.rel (%p194) target = $region20
      $region19: #{bottleneck_forward.7} parent=11 // pred_region
        %p197 = scmp.lt.s32.totalorder %s21, 0
        %s198 = scalar_select %p197, %s21, 0
        %s199 = scalar_lea.vmem %s2, %s198
      $region20: #{bottleneck_forward.7} parent=11 // pred_fallthru
        _
    $region12: #{bottleneck_forward.7} parent=5 // pred_fallthru
      _
    %p200 = scmp.lt.s32.totalorder %s10, 2
    // Predicated region
    $region21: #{bottleneck_forward.7} parent=5 // pred_check
      %p201 = pneg %p200
    $region22: #{bottleneck_forward.7} parent=5 // pred_check_branch
      %203 = sbr.rel (%p201) target = $region24
    $region23: #{bottleneck_forward.7} parent=5 // pred_region
      // Predicated region
      $region25: #{bottleneck_forward.7} parent=23 // pred_check
        %p204 = pneg %p51
      $region26: #{bottleneck_forward.7} parent=23 // pred_check_branch
        %206 = sbr.rel (%p204) target = $region28
      $region27: #{bottleneck_forward.7} parent=23 // pred_region
        %s207 = smul.u32 8, %s17
        %p208 = scmp.lt.s32.totalorder %s207, 15
        %s209 = scalar_select %p208, %s207, 15
        %p210 = scmp.lt.s32.totalorder %s19, 0
        %s211 = scalar_select %p210, %s19, 0
        %s212 = sadd.s32 %s211, %s209
        %s213 = smul.addr %s212, 4
        %s214 = scalar_lea.vmem %s0, %s213
        %s215 = smul.u32 8, %s17
      $region28: #{bottleneck_forward.7} parent=23 // pred_fallthru
        _
      // Predicated region
      $region29: #{bottleneck_forward.7} parent=23 // pred_check
        %p216 = pneg %p133
      $region30: #{bottleneck_forward.7} parent=23 // pred_check_branch
        %218 = sbr.rel (%p216) target = $region32
      $region31: #{bottleneck_forward.7} parent=23 // pred_region
        %s219 = smul.u32 8, %s17
        %p220 = scmp.lt.s32.totalorder %s219, 15
        %s221 = scalar_select %p220, %s219, 15
        %p222 = scmp.lt.s32.totalorder %s18, 0
        %s223 = scalar_select %p222, %s18, 0
        %s224 = sadd.s32 %s223, %s221
        %s225 = smul.addr %s224, 4
        %s226 = scalar_lea.vmem %s3, %s225
        %s227 = smul.u32 8, %s17
      $region32: #{bottleneck_forward.7} parent=23 // pred_fallthru
        _
    $region24: #{bottleneck_forward.7} parent=5 // pred_fallthru
      _
    %p228 = scmp.le.s32.totalorder 1, %s10
    %p229 = scmp.lt.s32.totalorder %s10, 3
    %p230 = pnand %p228, %p229
    %p231 = pneg %p230
    // Predicated region
    $region33: #{bottleneck_forward.7} parent=5 // pred_check
      _
    $region34: #{bottleneck_forward.7} parent=5 // pred_check_branch
      %233 = sbr.rel (%p230) target = $region36
    $region35: #{bottleneck_forward.7} parent=5 // pred_region
      %s234 = ssub.s32 %s10, 1
      %s235 = smul.u32 8, %s20
      %p236 = scmp.lt.s32.totalorder %s235, 15
      %s237 = scalar_select %p236, %s235, 15
      %p238 = scmp.lt.s32.totalorder %s22, 0
      %s239 = scalar_select %p238, %s22, 0
      %s240 = sadd.s32 %s239, %s237
      %s241 = smul.addr %s240, 4
      %s242 = scalar_lea.vmem %s0, %s241
      %p243 = pneg %p57
      %p244 = pneg %p54
      %s245 = smul.u32 16, %s22
      %p246 = scmp.lt.s32.totalorder %s245, 15
      %s247 = scalar_select %p246, %s245, 15
      %p248 = scmp.lt.s32.totalorder %s21, 0
      %s249 = scalar_select %p248, %s21, 0
      %s250 = sadd.s32 %s249, %s247
      %s251 = smul.addr %s250, 4
      %s252 = scalar_lea.vmem %s1, %s251
      %p253 = pneg %p85
      %p254 = pneg %p82
      %p255 = scmp.lt.s32.totalorder %s21, 0
      %s256 = scalar_select %p255, %s21, 0
      %s257 = scalar_lea.vmem %s2, %s256
      %p258 = pneg %p111
      %p259 = pneg %p108
      %s260 = smul.u32 8, %s20
      %p261 = scmp.lt.s32.totalorder %s260, 15
      %s262 = scalar_select %p261, %s260, 15
      %p263 = scmp.lt.s32.totalorder %s21, 0
      %s264 = scalar_select %p263, %s21, 0
      %s265 = sadd.s32 %s264, %s262
      %s266 = smul.addr %s265, 4
      %s267 = scalar_lea.vmem %s3, %s266
      %p268 = pneg %p139
      %p269 = pneg %p136
      %p270 = pneg %p167
      %p271 = pneg %p164
      %s272 = smul.u32 8, %s20
      %p273 = scmp.lt.s32.totalorder %s272, 15
      %s274 = scalar_select %p273, %s272, 15
      %p275 = scmp.lt.s32.totalorder %s21, 0
      %s276 = scalar_select %p275, %s21, 0
      %s277 = sadd.s32 %s276, %s274
      %s278 = smul.addr %s277, 4
      %s279 = scalar_lea.vmem %s4, %s278
      %s280 = smul.u32 8, %s20
      %p281 = scmp.lt.s32.totalorder %s280, 15
      %s282 = scalar_select %p281, %s280, 15
      %p283 = scmp.lt.s32.totalorder %s22, 0
      %s284 = scalar_select %p283, %s22, 0
      %s285 = sadd.s32 %s284, %s282
      %s286 = smul.addr %s285, 4
      %s287 = scalar_lea.vmem %s0, %s286
      %s288 = smul.u32 8, %s20
      %s289 = smul.u32 16, %s22
      %p290 = scmp.lt.s32.totalorder %s289, 15
      %s291 = scalar_select %p290, %s289, 15
      %p292 = scmp.lt.s32.totalorder %s21, 0
      %s293 = scalar_select %p292, %s21, 0
      %s294 = sadd.s32 %s293, %s291
      %s295 = smul.addr %s294, 4
      %s296 = scalar_lea.vmem %s1, %s295
      %s297 = smul.u32 16, %s22
      %p298 = scmp.lt.s32.totalorder %s21, 0
      %s299 = scalar_select %p298, %s21, 0
      %s300 = scalar_lea.vmem %s2, %s299
      %s301 = smul.u32 8, %s20
      %p302 = scmp.lt.s32.totalorder %s301, 15
      %s303 = scalar_select %p302, %s301, 15
      %p304 = scmp.lt.s32.totalorder %s21, 0
      %s305 = scalar_select %p304, %s21, 0
      %s306 = sadd.s32 %s305, %s303
      %s307 = smul.addr %s306, 4
      %s308 = scalar_lea.vmem %s3, %s307
      %s309 = smul.u32 8, %s20
      %s310 = smul.u32 8, %s20
      %p311 = scmp.lt.s32.totalorder %s310, 15
      %s312 = scalar_select %p311, %s310, 15
      %p313 = scmp.lt.s32.totalorder %s21, 0
      %s314 = scalar_select %p313, %s21, 0
      %s315 = sadd.s32 %s314, %s312
      %s316 = smul.addr %s315, 4
      %s317 = scalar_lea.vmem %s4, %s316
      %s318 = smul.u32 8, %s20
      %p319 = scmp.eq.s32.totalorder %s22, 0
      // Predicated region
      $region37: #{bottleneck_forward.7} parent=35 // pred_check
        %p320 = pneg %p319
      $region38: #{bottleneck_forward.7} parent=35 // pred_check_branch
        %322 = sbr.rel (%p320) target = $region40
      $region39: #{bottleneck_forward.7} parent=35 // pred_region
        %323 = vst [vmem:[#allocation2] sm:$0xff] 0.0
        %324 = vst [vmem:[#allocation2 + $0x8] sm:$0xff] 0.0
        %325 = vst [vmem:[#allocation2 + $0x10] sm:$0xff] 0.0
        %326 = vst [vmem:[#allocation2 + $0x18] sm:$0xff] 0.0
        %327 = vst [vmem:[#allocation2 + $0x20] sm:$0xff] 0.0
        %328 = vst [vmem:[#allocation2 + $0x28] sm:$0xff] 0.0
        %329 = vst [vmem:[#allocation2 + $0x30] sm:$0xff] 0.0
        %330 = vst [vmem:[#allocation2 + $0x38] sm:$0xff] 0.0
      $region40: #{bottleneck_forward.7} parent=35 // pred_fallthru
        _
      %v331 = vld [vmem:[#allocation2] sm:$0xff]
      %v332 = vld [vmem:[#allocation2 + $0x8] sm:$0xff]
      %v333 = vld [vmem:[#allocation2 + $0x10] sm:$0xff]
      %v334 = vld [vmem:[#allocation2 + $0x18] sm:$0xff]
      %v335 = vld [vmem:[#allocation2 + $0x20] sm:$0xff]
      %v336 = vld [vmem:[#allocation2 + $0x28] sm:$0xff]
      %v337 = vld [vmem:[#allocation2 + $0x30] sm:$0xff]
      %v338 = vld [vmem:[#allocation2 + $0x38] sm:$0xff]
      %v339 = vld [vmem:[%s287] sm:$0xf]
      %v340 = vld [vmem:[%s287 + $0x4] sm:$0xf]
      %v341 = vld [vmem:[%s287 + $0x8] sm:$0xf]
      %v342 = vld [vmem:[%s287 + $0xc] sm:$0xf]
      %v343 = vld [vmem:[%s287 + $0x10] sm:$0xf]
      %v344 = vld [vmem:[%s287 + $0x14] sm:$0xf]
      %v345 = vld [vmem:[%s287 + $0x18] sm:$0xf]
      %v346 = vld [vmem:[%s287 + $0x1c] sm:$0xf]
      %v347 = vld [vmem:[%s296] sm:$0xf]
      %v348 = vld [vmem:[%s296 + $0x4] sm:$0xf]
      %v349 = vld [vmem:[%s296 + $0x8] sm:$0xf]
      %v350 = vld [vmem:[%s296 + $0xc] sm:$0xf]
      %v351 = vld [vmem:[%s296 + $0x10] sm:$0xf]
      %v352 = vld [vmem:[%s296 + $0x14] sm:$0xf]
      %v353 = vld [vmem:[%s296 + $0x18] sm:$0xf]
      %v354 = vld [vmem:[%s296 + $0x1c] sm:$0xf]
      %v355 = vld [vmem:[%s296 + $0x20] sm:$0xf]
      %v356 = vld [vmem:[%s296 + $0x24] sm:$0xf]
      %v357 = vld [vmem:[%s296 + $0x28] sm:$0xf]
      %v358 = vld [vmem:[%s296 + $0x2c] sm:$0xf]
      %v359 = vld [vmem:[%s296 + $0x30] sm:$0xf]
      %v360 = vld [vmem:[%s296 + $0x34] sm:$0xf]
      %v361 = vld [vmem:[%s296 + $0x38] sm:$0xf]
      %v362 = vld [vmem:[%s296 + $0x3c] sm:$0xf]
      %v371 = vunpack.c.l.b16 %v339
      %v372 = vunpack.c.l.b16 %v340
      %v373 = vunpack.c.l.b16 %v341
      %v374 = vunpack.c.l.b16 %v342
      %v375 = vunpack.c.l.b16 %v343
      %v376 = vunpack.c.l.b16 %v344
      %v377 = vunpack.c.l.b16 %v345
      %v378 = vunpack.c.l.b16 %v346
      %v379 = vpack.c.b16 %v372, %v371
      %v380 = vpack.c.b16 %v374, %v373
      %v381 = vpack.c.b16 %v376, %v375
      %v382 = vpack.c.b16 %v378, %v377
      %v403 = vunpack.c.l.b16 %v347
      %v404 = vunpack.c.l.b16 %v348
      %v405 = vunpack.c.l.b16 %v349
      %v406 = vunpack.c.l.b16 %v350
      %v407 = vunpack.c.l.b16 %v351
      %v408 = vunpack.c.l.b16 %v352
      %v409 = vunpack.c.l.b16 %v353
      %v410 = vunpack.c.l.b16 %v354
      %v411 = vunpack.c.l.b16 %v355
      %v412 = vunpack.c.l.b16 %v356
      %v413 = vunpack.c.l.b16 %v357
      %v414 = vunpack.c.l.b16 %v358
      %v415 = vunpack.c.l.b16 %v359
      %v416 = vunpack.c.l.b16 %v360
      %v417 = vunpack.c.l.b16 %v361
      %v418 = vunpack.c.l.b16 %v362
      %v419 = vpack.c.b16 %v404, %v403
      %v420 = vpack.c.b16 %v406, %v405
      %v421 = vpack.c.b16 %v408, %v407
      %v422 = vpack.c.b16 %v410, %v409
      %v423 = vpack.c.b16 %v412, %v411
      %v424 = vpack.c.b16 %v414, %v413
      %v425 = vpack.c.b16 %v416, %v415
      %v426 = vpack.c.b16 %v418, %v417
      %435 = vmatpush.bf16.msra.mxu0 %v426
      %436 = vmatpush.bf16.msra.mxu0 %v425
      %437 = vmatpush.bf16.msra.mxu0 %v424
      %438 = vmatpush.bf16.msra.mxu0 %v423
      %439 = vmatpush.bf16.msra.mxu0 %v422
      %440 = vmatpush.bf16.msra.mxu0 %v421
      %441 = vmatpush.bf16.msra.mxu0 %v420
      %442 = vmatpush.bf16.msra.mxu0 %v419
      %443 = vmatmul.bf16.gmra.mxu0 %v379
      %v444 = vpop.f32.mrf.mxu0
      %v445 = vadd.f32 0.0, %v444
      %v446 = vpop.f32.mrf.mxu0
      %v447 = vadd.f32 0.0, %v446
      %448 = vmatmul.bf16.gmra.mxu0 %v380
      %v449 = vpop.f32.mrf.mxu0
      %v450 = vadd.f32 0.0, %v449
      %v451 = vpop.f32.mrf.mxu0
      %v452 = vadd.f32 0.0, %v451
      %453 = vmatmul.bf16.gmra.mxu0 %v381
      %v454 = vpop.f32.mrf.mxu0
      %v455 = vadd.f32 0.0, %v454
      %v456 = vpop.f32.mrf.mxu0
      %v457 = vadd.f32 0.0, %v456
      %458 = vmatmul.bf16.gmra.mxu0 %v382
      %v459 = vpop.f32.mrf.mxu0
      %v460 = vadd.f32 0.0, %v459
      %v461 = vpop.f32.mrf.mxu0
      %v462 = vadd.f32 0.0, %v461
      %463 = vdwg.mxu0
      %v464 = vadd.f32 %v331, %v445
      %v465 = vadd.f32 %v332, %v447
      %v466 = vadd.f32 %v333, %v450
      %v467 = vadd.f32 %v334, %v452
      %v468 = vadd.f32 %v335, %v455
      %v469 = vadd.f32 %v336, %v457
      %v470 = vadd.f32 %v337, %v460
      %v471 = vadd.f32 %v338, %v462
      %472 = vst [vmem:[#allocation2] sm:$0xff] %v464
      %473 = vst [vmem:[#allocation2 + $0x8] sm:$0xff] %v465
      %474 = vst [vmem:[#allocation2 + $0x10] sm:$0xff] %v466
      %475 = vst [vmem:[#allocation2 + $0x18] sm:$0xff] %v467
      %476 = vst [vmem:[#allocation2 + $0x20] sm:$0xff] %v468
      %477 = vst [vmem:[#allocation2 + $0x28] sm:$0xff] %v469
      %478 = vst [vmem:[#allocation2 + $0x30] sm:$0xff] %v470
      %479 = vst [vmem:[#allocation2 + $0x38] sm:$0xff] %v471
      // Predicated region
      $region41: #{bottleneck_forward.7} parent=35 // pred_check
        %p480 = pneg %p319
      $region42: #{bottleneck_forward.7} parent=35 // pred_check_branch
        %482 = sbr.rel (%p480) target = $region44
      $region43: #{bottleneck_forward.7} parent=35 // pred_region
        %v483 = vld [vmem:[#allocation2] sm:$0xff]
        %v484 = vld [vmem:[#allocation2 + $0x8] sm:$0xff]
        %v485 = vld [vmem:[#allocation2 + $0x10] sm:$0xff]
        %v486 = vld [vmem:[#allocation2 + $0x18] sm:$0xff]
        %v487 = vld [vmem:[#allocation2 + $0x20] sm:$0xff]
        %v488 = vld [vmem:[#allocation2 + $0x28] sm:$0xff]
        %v489 = vld [vmem:[#allocation2 + $0x30] sm:$0xff]
        %v490 = vld [vmem:[#allocation2 + $0x38] sm:$0xff]
        %v491 = vld [vmem:[%s300] sm:$0x1]
        %v493 = vperm.slane %v491, 0
        %v495 = vadd.f32 %v483, %v493
        %v496 = vadd.f32 %v484, %v493
        %v497 = vadd.f32 %v485, %v493
        %v498 = vadd.f32 %v486, %v493
        %v499 = vadd.f32 %v487, %v493
        %v500 = vadd.f32 %v488, %v493
        %v501 = vadd.f32 %v489, %v493
        %v502 = vadd.f32 %v490, %v493
        %v503 = vld [vmem:[%s308] sm:$0xf]
        %v504 = vld [vmem:[%s308 + $0x4] sm:$0xf]
        %v505 = vld [vmem:[%s308 + $0x8] sm:$0xf]
        %v506 = vld [vmem:[%s308 + $0xc] sm:$0xf]
        %v507 = vld [vmem:[%s308 + $0x10] sm:$0xf]
        %v508 = vld [vmem:[%s308 + $0x14] sm:$0xf]
        %v509 = vld [vmem:[%s308 + $0x18] sm:$0xf]
        %v510 = vld [vmem:[%s308 + $0x1c] sm:$0xf]
        %v511 = vunpack.c.l.bf16 %v503
        %v512 = vunpack.c.l.bf16 %v504
        %v513 = vunpack.c.l.bf16 %v505
        %v514 = vunpack.c.l.bf16 %v506
        %v515 = vunpack.c.l.bf16 %v507
        %v516 = vunpack.c.l.bf16 %v508
        %v517 = vunpack.c.l.bf16 %v509
        %v518 = vunpack.c.l.bf16 %v510
        %v519 = vadd.f32 %v495, %v511
        %v520 = vadd.f32 %v496, %v512
        %v521 = vadd.f32 %v497, %v513
        %v522 = vadd.f32 %v498, %v514
        %v523 = vadd.f32 %v499, %v515
        %v524 = vadd.f32 %v500, %v516
        %v525 = vadd.f32 %v501, %v517
        %v526 = vadd.f32 %v502, %v518
        %v527 = vmax.f32 %v519, 0.0
        %v528 = vmax.f32 %v520, 0.0
        %v529 = vmax.f32 %v521, 0.0
        %v530 = vmax.f32 %v522, 0.0
        %v531 = vmax.f32 %v523, 0.0
        %v532 = vmax.f32 %v524, 0.0
        %v533 = vmax.f32 %v525, 0.0
        %v534 = vmax.f32 %v526, 0.0
        %v535 = vpack.c.bf16 %v527, %v527
        %v536 = vpack.c.bf16 %v528, %v528
        %v537 = vpack.c.bf16 %v529, %v529
        %v538 = vpack.c.bf16 %v530, %v530
        %v539 = vpack.c.bf16 %v531, %v531
        %v540 = vpack.c.bf16 %v532, %v532
        %v541 = vpack.c.bf16 %v533, %v533
        %v542 = vpack.c.bf16 %v534, %v534
        %543 = vst [vmem:[%s317] sm:$0xf] %v535
        %544 = vst [vmem:[%s317 + $0x4] sm:$0xf] %v536
        %545 = vst [vmem:[%s317 + $0x8] sm:$0xf] %v537
        %546 = vst [vmem:[%s317 + $0xc] sm:$0xf] %v538
        %547 = vst [vmem:[%s317 + $0x10] sm:$0xf] %v539
        %548 = vst [vmem:[%s317 + $0x14] sm:$0xf] %v540
        %549 = vst [vmem:[%s317 + $0x18] sm:$0xf] %v541
        %550 = vst [vmem:[%s317 + $0x1c] sm:$0xf] %v542
      $region44: #{bottleneck_forward.7} parent=35 // pred_fallthru
        _
      %s551 = smul.u32 8, %s20
      %p552 = scmp.lt.s32.totalorder %s551, 15
      %s553 = scalar_select %p552, %s551, 15
      %p554 = scmp.lt.s32.totalorder %s21, 0
      %s555 = scalar_select %p554, %s21, 0
      %s556 = sadd.s32 %s555, %s553
      %s557 = smul.addr %s556, 4
      %s558 = scalar_lea.vmem %s4, %s557
      // Predicated region
      $region45: #{bottleneck_forward.7} parent=35 // pred_check
        %p559 = pneg %p164
      $region46: #{bottleneck_forward.7} parent=35 // pred_check_branch
        %561 = sbr.rel (%p559) target = $region48
      $region47: #{bottleneck_forward.7} parent=35 // pred_region
        %s562 = smul.u32 8, %s20
      $region48: #{bottleneck_forward.7} parent=35 // pred_fallthru
        _
    $region36: #{bottleneck_forward.7} parent=5 // pred_fallthru
      _
    %p563 = scmp.le.s32.totalorder 2, %s10
    // Predicated region
    $region49: #{bottleneck_forward.7} parent=5 // pred_check
      %p564 = pneg %p563
    $region50: #{bottleneck_forward.7} parent=5 // pred_check_branch
      %566 = sbr.rel (%p564) target = $region52
    $region51: #{bottleneck_forward.7} parent=5 // pred_region
      %s567 = ssub.s32 %s10, 2
      // Predicated region
      $region53: #{bottleneck_forward.7} parent=51 // pred_check
        %p568 = pneg %p170
      $region54: #{bottleneck_forward.7} parent=51 // pred_check_branch
        %570 = sbr.rel (%p568) target = $region56
      $region55: #{bottleneck_forward.7} parent=51 // pred_region
        %s571 = smul.u32 8, %s23
        %p572 = scmp.lt.s32.totalorder %s571, 15
        %s573 = scalar_select %p572, %s571, 15
        %p574 = scmp.lt.s32.totalorder %s24, 0
        %s575 = scalar_select %p574, %s24, 0
        %s576 = sadd.s32 %s575, %s573
        %s577 = smul.addr %s576, 4
        %s578 = scalar_lea.vmem %s4, %s577
      $region56: #{bottleneck_forward.7} parent=51 // pred_fallthru
        _
    $region52: #{bottleneck_forward.7} parent=5 // pred_fallthru
      _
  $region6: #{bottleneck_forward.7} parent=0 // loop_footer
    %s14 = sadd.s32 1, %s10
  $region7: #{bottleneck_forward.7} parent=0 // loop_footer_branch
    %9 = sbr.rel target = $region3
  $region8: #{bottleneck_forward.7} parent=0 // loop_exit
    _

// kernel: bottleneck_forward.5
$region0: #{bottleneck_forward.5}
  #allocation0 [shape = 'u32[]', space=smem, size = 0x4, offset = 0x4, fixed_abs, tag = 'smem constant byte address 0x4 - core index']
  #allocation1 [shape = 'u32[72,128]{1,0:T(1,128)}', space=vmem, size = 0x9000, scoped, tag = 'internal scratch']
  #allocation2 [shape = 'f32[64,128]{1,0:T(8,128)}', space=vmem, size = 0x8000, scoped, tag = 'scratch operand']
  %s0 = inlined_call_operand.vmem [shape: bf16[8,9,9,128], index: 0, kind: input, shape index: {}]
  %s1 = inlined_call_operand.vmem [shape: bf16[9,128,128], index: 1, kind: input, shape index: {}]
  %s2 = inlined_call_operand.vmem [shape: f32[1,128], index: 2, kind: input, shape index: {}]
  %s3 = inlined_call_operand.vmem [shape: bf16[2,64,128], index: 3, kind: output, shape index: {}]
  %s4 = sld [smem:[#allocation0]]
  $region45: #{bottleneck_forward.5} parent=0
    _
  %s6 = ssub.s32 1, %s4
  %s7 = scalar_select 0, %s6, %s4
  loop: start=0, step=1, limit=4
  $region2: #{bottleneck_forward.5} parent=0 // loop_pre_header
    _
  $region3: #{bottleneck_forward.5} parent=0 // loop_header
    %s9 = sphi 0, %s13
    %p10 = scmp.ge.s32.totalorder %s9, 4
    %s16 = sphi 0, %s28
    %s17 = sphi 0, %s24
    %s18 = sphi 0, %s16
    %s19 = sphi 0, %s17
    %s20 = sphi 0, %s18
    %s21 = sphi 0, %s19
    %s31 = sphi 0, %s33
    %s34 = sphi 0, %s31
    %s35 = sphi 0, %s34
    %s51 = sphi 0, %s35
    %s57 = sphi 0, %s59
    %s60 = sphi 0, %s57
    %s61 = sphi 0, %s60
    %s77 = sphi 0, %s61
    %s83 = sphi 0, %s85
    %s86 = sphi 0, %s83
    %s87 = sphi 0, %s86
    %s103 = sphi 0, %s87
    %s111 = sphi 0, %s113
    %s114 = sphi 0, %s111
    %s115 = sphi 0, %s114
    %s131 = sphi 0, %s115
  $region4: #{bottleneck_forward.5} parent=0 // loop_header_branch
    %12 = sbr.rel (%p10) target = $region8
  $region5: #{bottleneck_forward.5} parent=0 // loop_body
    %s14 = ssub.s32 %s9, 1
    %s15 = ssub.s32 %s9, 2
    %s22 = sadd.s32 1, %s17
    %p23 = scmp.ge.s32.totalorder %s22, 1
    %s24 = scalar_select %p23, 0, %s22
    %s25 = sadd.s32 1, %s16
    %s26 = scalar_select %p23, %s25, %s16
    %p27 = scmp.ge.s32.totalorder %s26, 2
    %s28 = scalar_select %p27, 0, %s26
    %s29 = ssub.s32 %s16, %s28
    %p30 = scmp.eq.s32.totalorder %s29, 0
    %s32 = sadd.s32 %s31, 1
    %s33 = scalar_select %p30, %s31, %s32
    %p36 = pneg %p30
    %p37 = scmp.eq.s32.totalorder %s9, 1
    %p38 = por %p36, %p37
    %p39 = scmp.ne.s32.totalorder %s31, %s34
    %p40 = scmp.eq.s32.totalorder %s9, 0
    %p41 = por %p39, %p40
    %p42 = scmp.ne.s32.totalorder %s31, %s34
    %p43 = scmp.eq.s32.totalorder %s14, 1
    %p44 = por %p42, %p43
    %p45 = scmp.ne.s32.totalorder %s34, %s35
    %p46 = scmp.eq.s32.totalorder %s14, 0
    %p47 = por %p45, %p46
    %p48 = scmp.ne.s32.totalorder %s34, %s35
    %p49 = scmp.eq.s32.totalorder %s15, 1
    %p50 = por %p48, %p49
    %p52 = scmp.ne.s32.totalorder %s35, %s51
    %p53 = scmp.eq.s32.totalorder %s15, 0
    %p54 = por %p52, %p53
    %s55 = ssub.s32 %s17, %s24
    %p56 = scmp.eq.s32.totalorder %s55, 0
    %s58 = sadd.s32 %s57, 1
    %s59 = scalar_select %p56, %s57, %s58
    %p62 = pneg %p56
    %p63 = scmp.eq.s32.totalorder %s9, 1
    %p64 = por %p62, %p63
    %p65 = scmp.ne.s32.totalorder %s57, %s60
    %p66 = scmp.eq.s32.totalorder %s9, 0
    %p67 = por %p65, %p66
    %p68 = scmp.ne.s32.totalorder %s57, %s60
    %p69 = scmp.eq.s32.totalorder %s14, 1
    %p70 = por %p68, %p69
    %p71 = scmp.ne.s32.totalorder %s60, %s61
    %p72 = scmp.eq.s32.totalorder %s14, 0
    %p73 = por %p71, %p72
    %p74 = scmp.ne.s32.totalorder %s60, %s61
    %p75 = scmp.eq.s32.totalorder %s15, 1
    %p76 = por %p74, %p75
    %p78 = scmp.ne.s32.totalorder %s61, %s77
    %p79 = scmp.eq.s32.totalorder %s15, 0
    %p80 = por %p78, %p79
    %s81 = ssub.s32 %s17, %s24
    %p82 = scmp.eq.s32.totalorder %s81, 0
    %s84 = sadd.s32 %s83, 1
    %s85 = scalar_select %p82, %s83, %s84
    %p88 = pneg %p82
    %p89 = scmp.eq.s32.totalorder %s9, 1
    %p90 = por %p88, %p89
    %p91 = scmp.ne.s32.totalorder %s83, %s86
    %p92 = scmp.eq.s32.totalorder %s9, 0
    %p93 = por %p91, %p92
    %p94 = scmp.ne.s32.totalorder %s83, %s86
    %p95 = scmp.eq.s32.totalorder %s14, 1
    %p96 = por %p94, %p95
    %p97 = scmp.ne.s32.totalorder %s86, %s87
    %p98 = scmp.eq.s32.totalorder %s14, 0
    %p99 = por %p97, %p98
    %p100 = scmp.ne.s32.totalorder %s86, %s87
    %p101 = scmp.eq.s32.totalorder %s15, 1
    %p102 = por %p100, %p101
    %p104 = scmp.ne.s32.totalorder %s87, %s103
    %p105 = scmp.eq.s32.totalorder %s15, 0
    %p106 = por %p104, %p105
    %s107 = ssub.s32 %s16, %s28
    %s108 = ssub.s32 %s17, %s24
    %s109 = sor.u32 %s107, %s108
    %p110 = scmp.eq.s32.totalorder %s109, 0
    %s112 = sadd.s32 %s111, 1
    %s113 = scalar_select %p110, %s111, %s112
    %p116 = pneg %p110
    %p117 = scmp.eq.s32.totalorder %s9, 1
    %p118 = por %p116, %p117
    %p119 = scmp.ne.s32.totalorder %s111, %s114
    %p120 = scmp.eq.s32.totalorder %s9, 0
    %p121 = por %p119, %p120
    %p122 = scmp.ne.s32.totalorder %s111, %s114
    %p123 = scmp.eq.s32.totalorder %s14, 1
    %p124 = por %p122, %p123
    %p125 = scmp.ne.s32.totalorder %s114, %s115
    %p126 = scmp.eq.s32.totalorder %s14, 0
    %p127 = por %p125, %p126
    %p128 = scmp.ne.s32.totalorder %s114, %s115
    %p129 = scmp.eq.s32.totalorder %s15, 1
    %p130 = por %p128, %p129
    %p132 = scmp.ne.s32.totalorder %s115, %s131
    %p133 = scmp.eq.s32.totalorder %s15, 0
    %p134 = por %p132, %p133
    %p135 = scmp.le.s32.totalorder 1, %s9
    %p136 = scmp.lt.s32.totalorder %s9, 3
    %p137 = pnand %p135, %p136
    %p138 = pneg %p137
    // Predicated region
    $region9: #{bottleneck_forward.5} parent=5 // pred_check
      _
    $region10: #{bottleneck_forward.5} parent=5 // pred_check_branch
      %140 = sbr.rel (%p137) target = $region12
    $region11: #{bottleneck_forward.5} parent=5 // pred_region
      %s141 = ssub.s32 %s9, 1
      // Predicated region
      $region13: #{bottleneck_forward.5} parent=11 // pred_check
        %p142 = pneg %p73
      $region14: #{bottleneck_forward.5} parent=11 // pred_check_branch
        %144 = sbr.rel (%p142) target = $region16
      $region15: #{bottleneck_forward.5} parent=11 // pred_region
        %p145 = scmp.lt.s32.totalorder %s19, 0
        %s146 = scalar_select %p145, %s19, 0
        %s147 = smul.addr %s146, 4
        %s148 = scalar_lea.vmem %s1, %s147
      $region16: #{bottleneck_forward.5} parent=11 // pred_fallthru
        _
      // Predicated region
      $region17: #{bottleneck_forward.5} parent=11 // pred_check
        %p149 = pneg %p99
      $region18: #{bottleneck_forward.5} parent=11 // pred_check_branch
        %151 = sbr.rel (%p149) target = $region20
      $region19: #{bottleneck_forward.5} parent=11 // pred_region
        %p152 = scmp.lt.s32.totalorder %s19, 0
        %s153 = scalar_select %p152, %s19, 0
        %s154 = scalar_lea.vmem %s2, %s153
      $region20: #{bottleneck_forward.5} parent=11 // pred_fallthru
        _
    $region12: #{bottleneck_forward.5} parent=5 // pred_fallthru
      _
    %p155 = scmp.lt.s32.totalorder %s9, 2
    // Predicated region
    $region21: #{bottleneck_forward.5} parent=5 // pred_check
      %p156 = pneg %p155
    $region22: #{bottleneck_forward.5} parent=5 // pred_check_branch
      %158 = sbr.rel (%p156) target = $region24
    $region23: #{bottleneck_forward.5} parent=5 // pred_region
      // Predicated region
      $region25: #{bottleneck_forward.5} parent=23 // pred_check
        %p159 = pneg %p41
      $region26: #{bottleneck_forward.5} parent=23 // pred_check_branch
        %161 = sbr.rel (%p159) target = $region28
      $region27: #{bottleneck_forward.5} parent=23 // pred_region
        %s162 = smul.u32 4, %s16
        %p163 = scmp.lt.s32.totalorder %s162, 7
        %s164 = scalar_select %p163, %s162, 7
        %s165 = smul.addr %s164, 18
        %s166 = smul.addr %s165, 4
        %s167 = scalar_lea.vmem %s0, %s166
        %s168 = smul.u32 4, %s16
      $region28: #{bottleneck_forward.5} parent=23 // pred_fallthru
        _
    $region24: #{bottleneck_forward.5} parent=5 // pred_fallthru
      _
    %p169 = scmp.le.s32.totalorder 1, %s9
    %p170 = scmp.lt.s32.totalorder %s9, 3
    %p171 = pnand %p169, %p170
    %p172 = pneg %p171
    // Predicated region
    $region29: #{bottleneck_forward.5} parent=5 // pred_check
      _
    $region30: #{bottleneck_forward.5} parent=5 // pred_check_branch
      %174 = sbr.rel (%p171) target = $region32
    $region31: #{bottleneck_forward.5} parent=5 // pred_region
      %s175 = ssub.s32 %s9, 1
      %s176 = smul.u32 4, %s18
      %p177 = scmp.lt.s32.totalorder %s176, 7
      %s178 = scalar_select %p177, %s176, 7
      %s179 = smul.addr %s178, 18
      %s180 = smul.addr %s179, 4
      %s181 = scalar_lea.vmem %s0, %s180
      %p182 = pneg %p47
      %p183 = pneg %p44
      %p184 = scmp.lt.s32.totalorder %s19, 0
      %s185 = scalar_select %p184, %s19, 0
      %s186 = smul.addr %s185, 4
      %s187 = scalar_lea.vmem %s1, %s186
      %p188 = pneg %p73
      %p189 = pneg %p70
      %p190 = scmp.lt.s32.totalorder %s19, 0
      %s191 = scalar_select %p190, %s19, 0
      %s192 = scalar_lea.vmem %s2, %s191
      %p193 = pneg %p99
      %p194 = pneg %p96
      %p195 = pneg %p127
      %p196 = pneg %p124
      %p197 = scmp.lt.s32.totalorder %s18, 1
      %s198 = scalar_select %p197, %s18, 1
      %p199 = scmp.lt.s32.totalorder %s19, 0
      %s200 = scalar_select %p199, %s19, 0
      %s201 = smul.addr %s198, 8
      %s202 = sadd.s32 %s200, %s201
      %s203 = smul.addr %s202, 4
      %s204 = scalar_lea.vmem %s3, %s203
      %s205 = smul.u32 4, %s18
      %p206 = scmp.lt.s32.totalorder %s205, 7
      %s207 = scalar_select %p206, %s205, 7
      %s208 = smul.addr %s207, 18
      %s209 = smul.addr %s208, 4
      %s210 = scalar_lea.vmem %s0, %s209
      %s211 = smul.u32 4, %s18
      %p212 = scmp.lt.s32.totalorder %s19, 0
      %s213 = scalar_select %p212, %s19, 0
      %s214 = smul.addr %s213, 4
      %s215 = scalar_lea.vmem %s1, %s214
      %p216 = scmp.lt.s32.totalorder %s19, 0
      %s217 = scalar_select %p216, %s19, 0
      %s218 = scalar_lea.vmem %s2, %s217
      %p219 = scmp.lt.s32.totalorder %s18, 1
      %s220 = scalar_select %p219, %s18, 1
      %p221 = scmp.lt.s32.totalorder %s19, 0
      %s222 = scalar_select %p221, %s19, 0
      %s223 = smul.addr %s220, 8
      %s224 = sadd.s32 %s222, %s223
      %s225 = smul.addr %s224, 4
      %s226 = scalar_lea.vmem %s3, %s225
      %227 = vst [vmem:[#allocation2] sm:$0xff] 0.0
      %228 = vst [vmem:[#allocation2 + $0x8] sm:$0xff] 0.0
      %229 = vst [vmem:[#allocation2 + $0x10] sm:$0xff] 0.0
      %230 = vst [vmem:[#allocation2 + $0x18] sm:$0xff] 0.0
      %231 = vst [vmem:[#allocation2 + $0x20] sm:$0xff] 0.0
      %232 = vst [vmem:[#allocation2 + $0x28] sm:$0xff] 0.0
      %233 = vst [vmem:[#allocation2 + $0x30] sm:$0xff] 0.0
      %234 = vst [vmem:[#allocation2 + $0x38] sm:$0xff] 0.0
      %v235 = vld [vmem:[%s210] sm:$0xf]
      %v236 = vld [vmem:[%s210 + $0x8] sm:$0xf]
      %v237 = vld [vmem:[%s210 + $0x10] sm:$0xf]
      %v238 = vld [vmem:[%s210 + $0x18] sm:$0xf]
      %v239 = vld [vmem:[%s210 + $0x20] sm:$0xf]
      %v240 = vld [vmem:[%s210 + $0x28] sm:$0xf]
      %v241 = vld [vmem:[%s210 + $0x30] sm:$0xf]
      %v242 = vld [vmem:[%s210 + $0x38] sm:$0xf]
      %v243 = vld [vmem:[#allocation2] sm:$0xff]
      %v244 = vld [vmem:[#allocation2 + $0x8] sm:$0xff]
      %v245 = vld [vmem:[#allocation2 + $0x10] sm:$0xff]
      %v246 = vld [vmem:[#allocation2 + $0x18] sm:$0xff]
      %v247 = vld [vmem:[#allocation2 + $0x20] sm:$0xff]
      %v248 = vld [vmem:[#allocation2 + $0x28] sm:$0xff]
      %v249 = vld [vmem:[#allocation2 + $0x30] sm:$0xff]
      %v250 = vld [vmem:[#allocation2 + $0x38] sm:$0xff]
      %v251 = vld [vmem:[%s215] sm:$0xf]
      %v252 = vld [vmem:[%s215 + $0x4] sm:$0xf]
      %v253 = vld [vmem:[%s215 + $0x8] sm:$0xf]
      %v254 = vld [vmem:[%s215 + $0xc] sm:$0xf]
      %v255 = vld [vmem:[%s215 + $0x10] sm:$0xf]
      %v256 = vld [vmem:[%s215 + $0x14] sm:$0xf]
      %v257 = vld [vmem:[%s215 + $0x18] sm:$0xf]
      %v258 = vld [vmem:[%s215 + $0x1c] sm:$0xf]
      %v259 = vld [vmem:[%s215 + $0x20] sm:$0xf]
      %v260 = vld [vmem:[%s215 + $0x24] sm:$0xf]
      %v261 = vld [vmem:[%s215 + $0x28] sm:$0xf]
      %v262 = vld [vmem:[%s215 + $0x2c] sm:$0xf]
      %v263 = vld [vmem:[%s215 + $0x30] sm:$0xf]
      %v264 = vld [vmem:[%s215 + $0x34] sm:$0xf]
      %v265 = vld [vmem:[%s215 + $0x38] sm:$0xf]
      %v266 = vld [vmem:[%s215 + $0x3c] sm:$0xf]
      %v275 = vunpack.c.l.b16 %v235
      %v276 = vunpack.c.l.b16 %v236
      %v277 = vunpack.c.l.b16 %v237
      %v278 = vunpack.c.l.b16 %v238
      %v279 = vunpack.c.l.b16 %v239
      %v280 = vunpack.c.l.b16 %v240
      %v281 = vunpack.c.l.b16 %v241
      %v282 = vunpack.c.l.b16 %v242
      %v283 = vpack.c.b16 %v276, %v275
      %v284 = vpack.c.b16 %v278, %v277
      %v285 = vpack.c.b16 %v280, %v279
      %v286 = vpack.c.b16 %v282, %v281
      %v307 = vunpack.c.l.b16 %v251
      %v308 = vunpack.c.l.b16 %v252
      %v309 = vunpack.c.l.b16 %v253
      %v310 = vunpack.c.l.b16 %v254
      %v311 = vunpack.c.l.b16 %v255
      %v312 = vunpack.c.l.b16 %v256
      %v313 = vunpack.c.l.b16 %v257
      %v314 = vunpack.c.l.b16 %v258
      %v315 = vunpack.c.l.b16 %v259
      %v316 = vunpack.c.l.b16 %v260
      %v317 = vunpack.c.l.b16 %v261
      %v318 = vunpack.c.l.b16 %v262
      %v319 = vunpack.c.l.b16 %v263
      %v320 = vunpack.c.l.b16 %v264
      %v321 = vunpack.c.l.b16 %v265
      %v322 = vunpack.c.l.b16 %v266
      %v323 = vpack.c.b16 %v308, %v307
      %v324 = vpack.c.b16 %v310, %v309
      %v325 = vpack.c.b16 %v312, %v311
      %v326 = vpack.c.b16 %v314, %v313
      %v327 = vpack.c.b16 %v316, %v315
      %v328 = vpack.c.b16 %v318, %v317
      %v329 = vpack.c.b16 %v320, %v319
      %v330 = vpack.c.b16 %v322, %v321
      %339 = vmatpush.bf16.msra.mxu0 %v330
      %340 = vmatpush.bf16.msra.mxu0 %v329
      %341 = vmatpush.bf16.msra.mxu0 %v328
      %342 = vmatpush.bf16.msra.mxu0 %v327
      %343 = vmatpush.bf16.msra.mxu0 %v326
      %344 = vmatpush.bf16.msra.mxu0 %v325
      %345 = vmatpush.bf16.msra.mxu0 %v324
      %346 = vmatpush.bf16.msra.mxu0 %v323
      %347 = vmatmul.bf16.gmra.mxu0 %v283
      %v348 = vpop.f32.mrf.mxu0
      %v349 = vadd.f32 0.0, %v348
      %v350 = vpop.f32.mrf.mxu0
      %v351 = vadd.f32 0.0, %v350
      %352 = vmatmul.bf16.gmra.mxu0 %v284
      %v353 = vpop.f32.mrf.mxu0
      %v354 = vadd.f32 0.0, %v353
      %v355 = vpop.f32.mrf.mxu0
      %v356 = vadd.f32 0.0, %v355
      %357 = vmatmul.bf16.gmra.mxu0 %v285
      %v358 = vpop.f32.mrf.mxu0
      %v359 = vadd.f32 0.0, %v358
      %v360 = vpop.f32.mrf.mxu0
      %v361 = vadd.f32 0.0, %v360
      %362 = vmatmul.bf16.gmra.mxu0 %v286
      %v363 = vpop.f32.mrf.mxu0
      %v364 = vadd.f32 0.0, %v363
      %v365 = vpop.f32.mrf.mxu0
      %v366 = vadd.f32 0.0, %v365
      %367 = vdwg.mxu0
      %v368 = vadd.f32 %v243, %v349
      %v369 = vadd.f32 %v244, %v351
      %v370 = vadd.f32 %v245, %v354
      %v371 = vadd.f32 %v246, %v356
      %v372 = vadd.f32 %v247, %v359
      %v373 = vadd.f32 %v248, %v361
      %v374 = vadd.f32 %v249, %v364
      %v375 = vadd.f32 %v250, %v366
      %376 = vst [vmem:[#allocation2] sm:$0xff] %v368
      %377 = vst [vmem:[#allocation2 + $0x8] sm:$0xff] %v369
      %378 = vst [vmem:[#allocation2 + $0x10] sm:$0xff] %v370
      %379 = vst [vmem:[#allocation2 + $0x18] sm:$0xff] %v371
      %380 = vst [vmem:[#allocation2 + $0x20] sm:$0xff] %v372
      %381 = vst [vmem:[#allocation2 + $0x28] sm:$0xff] %v373
      %382 = vst [vmem:[#allocation2 + $0x30] sm:$0xff] %v374
      %383 = vst [vmem:[#allocation2 + $0x38] sm:$0xff] %v375
      %s384 = scalar_lea.vmem %s210, 72
      %v385 = vld [vmem:[%s384] sm:$0xf]
      %v386 = vld [vmem:[%s384 + $0x8] sm:$0xf]
      %v387 = vld [vmem:[%s384 + $0x10] sm:$0xf]
      %v388 = vld [vmem:[%s384 + $0x18] sm:$0xf]
      %v389 = vld [vmem:[%s384 + $0x20] sm:$0xf]
      %v390 = vld [vmem:[%s384 + $0x28] sm:$0xf]
      %v391 = vld [vmem:[%s384 + $0x30] sm:$0xf]
      %v392 = vld [vmem:[%s384 + $0x38] sm:$0xf]
      %v393 = vld [vmem:[#allocation2] sm:$0xff]
      %v394 = vld [vmem:[#allocation2 + $0x8] sm:$0xff]
      %v395 = vld [vmem:[#allocation2 + $0x10] sm:$0xff]
      %v396 = vld [vmem:[#allocation2 + $0x18] sm:$0xff]
      %v397 = vld [vmem:[#allocation2 + $0x20] sm:$0xff]
      %v398 = vld [vmem:[#allocation2 + $0x28] sm:$0xff]
      %v399 = vld [vmem:[#allocation2 + $0x30] sm:$0xff]
      %v400 = vld [vmem:[#allocation2 + $0x38] sm:$0xff]
      %s401 = scalar_lea.vmem %s215, 64
      %v402 = vld [vmem:[%s401] sm:$0xf]
      %v403 = vld [vmem:[%s401 + $0x4] sm:$0xf]
      %v404 = vld [vmem:[%s401 + $0x8] sm:$0xf]
      %v405 = vld [vmem:[%s401 + $0xc] sm:$0xf]
      %v406 = vld [vmem:[%s401 + $0x10] sm:$0xf]
      %v407 = vld [vmem:[%s401 + $0x14] sm:$0xf]
      %v408 = vld [vmem:[%s401 + $0x18] sm:$0xf]
      %v409 = vld [vmem:[%s401 + $0x1c] sm:$0xf]
      %v410 = vld [vmem:[%s401 + $0x20] sm:$0xf]
      %v411 = vld [vmem:[%s401 + $0x24] sm:$0xf]
      %v412 = vld [vmem:[%s401 + $0x28] sm:$0xf]
      %v413 = vld [vmem:[%s401 + $0x2c] sm:$0xf]
      %v414 = vld [vmem:[%s401 + $0x30] sm:$0xf]
      %v415 = vld [vmem:[%s401 + $0x34] sm:$0xf]
      %v416 = vld [vmem:[%s401 + $0x38] sm:$0xf]
      %v417 = vld [vmem:[%s401 + $0x3c] sm:$0xf]
      %v426 = vunpack.c.l.b16 %v385
      %v427 = vunpack.c.l.b16 %v386
      %v428 = vunpack.c.l.b16 %v387
      %v429 = vunpack.c.l.b16 %v388
      %v430 = vunpack.c.l.b16 %v389
      %v431 = vunpack.c.l.b16 %v390
      %v432 = vunpack.c.l.b16 %v391
      %v433 = vunpack.c.l.b16 %v392
      %v434 = vpack.c.b16 %v427, %v426
      %v435 = vpack.c.b16 %v429, %v428
      %v436 = vpack.c.b16 %v431, %v430
      %v437 = vpack.c.b16 %v433, %v432
      %v458 = vunpack.c.l.b16 %v402
      %v459 = vunpack.c.l.b16 %v403
      %v460 = vunpack.c.l.b16 %v404
      %v461 = vunpack.c.l.b16 %v405
      %v462 = vunpack.c.l.b16 %v406
      %v463 = vunpack.c.l.b16 %v407
      %v464 = vunpack.c.l.b16 %v408
      %v465 = vunpack.c.l.b16 %v409
      %v466 = vunpack.c.l.b16 %v410
      %v467 = vunpack.c.l.b16 %v411
      %v468 = vunpack.c.l.b16 %v412
      %v469 = vunpack.c.l.b16 %v413
      %v470 = vunpack.c.l.b16 %v414
      %v471 = vunpack.c.l.b16 %v415
      %v472 = vunpack.c.l.b16 %v416
      %v473 = vunpack.c.l.b16 %v417
      %v474 = vpack.c.b16 %v459, %v458
      %v475 = vpack.c.b16 %v461, %v460
      %v476 = vpack.c.b16 %v463, %v462
      %v477 = vpack.c.b16 %v465, %v464
      %v478 = vpack.c.b16 %v467, %v466
      %v479 = vpack.c.b16 %v469, %v468
      %v480 = vpack.c.b16 %v471, %v470
      %v481 = vpack.c.b16 %v473, %v472
      %490 = vmatpush.bf16.msra.mxu0 %v481
      %491 = vmatpush.bf16.msra.mxu0 %v480
      %492 = vmatpush.bf16.msra.mxu0 %v479
      %493 = vmatpush.bf16.msra.mxu0 %v478
      %494 = vmatpush.bf16.msra.mxu0 %v477
      %495 = vmatpush.bf16.msra.mxu0 %v476
      %496 = vmatpush.bf16.msra.mxu0 %v475
      %497 = vmatpush.bf16.msra.mxu0 %v474
      %498 = vmatmul.bf16.gmra.mxu0 %v434
      %v499 = vpop.f32.mrf.mxu0
      %v500 = vadd.f32 0.0, %v499
      %v501 = vpop.f32.mrf.mxu0
      %v502 = vadd.f32 0.0, %v501
      %503 = vmatmul.bf16.gmra.mxu0 %v435
      %v504 = vpop.f32.mrf.mxu0
      %v505 = vadd.f32 0.0, %v504
      %v506 = vpop.f32.mrf.mxu0
      %v507 = vadd.f32 0.0, %v506
      %508 = vmatmul.bf16.gmra.mxu0 %v436
      %v509 = vpop.f32.mrf.mxu0
      %v510 = vadd.f32 0.0, %v509
      %v511 = vpop.f32.mrf.mxu0
      %v512 = vadd.f32 0.0, %v511
      %513 = vmatmul.bf16.gmra.mxu0 %v437
      %v514 = vpop.f32.mrf.mxu0
      %v515 = vadd.f32 0.0, %v514
      %v516 = vpop.f32.mrf.mxu0
      %v517 = vadd.f32 0.0, %v516
      %518 = vdwg.mxu0
      %v519 = vadd.f32 %v393, %v500
      %v520 = vadd.f32 %v394, %v502
      %v521 = vadd.f32 %v395, %v505
      %v522 = vadd.f32 %v396, %v507
      %v523 = vadd.f32 %v397, %v510
      %v524 = vadd.f32 %v398, %v512
      %v525 = vadd.f32 %v399, %v515
      %v526 = vadd.f32 %v400, %v517
      %527 = vst [vmem:[#allocation2] sm:$0xff] %v519
      %528 = vst [vmem:[#allocation2 + $0x8] sm:$0xff] %v520
      %529 = vst [vmem:[#allocation2 + $0x10] sm:$0xff] %v521
      %530 = vst [vmem:[#allocation2 + $0x18] sm:$0xff] %v522
      %531 = vst [vmem:[#allocation2 + $0x20] sm:$0xff] %v523
      %532 = vst [vmem:[#allocation2 + $0x28] sm:$0xff] %v524
      %533 = vst [vmem:[#allocation2 + $0x30] sm:$0xff] %v525
      %534 = vst [vmem:[#allocation2 + $0x38] sm:$0xff] %v526
      %v535 = vld [vmem:[%s210] sm:$0xf]
      %v536 = vld [vmem:[%s210 + $0x4] sm:$0x1]
      %v537 = vld [vmem:[%s210 + $0x8] sm:$0xf]
      %v538 = vld [vmem:[%s210 + $0xc] sm:$0x1]
      %v539 = vld [vmem:[%s210 + $0x10] sm:$0xf]
      %v540 = vld [vmem:[%s210 + $0x14] sm:$0x1]
      %v541 = vld [vmem:[%s210 + $0x18] sm:$0xf]
      %v542 = vld [vmem:[%s210 + $0x1c] sm:$0x1]
      %v543 = vld [vmem:[%s210 + $0x20] sm:$0xf]
      %v544 = vld [vmem:[%s210 + $0x24] sm:$0x1]
      %v545 = vld [vmem:[%s210 + $0x28] sm:$0xf]
      %v546 = vld [vmem:[%s210 + $0x2c] sm:$0x1]
      %v547 = vld [vmem:[%s210 + $0x30] sm:$0xf]
      %v548 = vld [vmem:[%s210 + $0x34] sm:$0x1]
      %v549 = vld [vmem:[%s210 + $0x38] sm:$0xf]
      %v550 = vld [vmem:[%s210 + $0x3c] sm:$0x1]
      %vm551 = vsmask.f32 3328
      %vm552 = vsmask.f32 7440
      %vm553 = vmor %vm551, %vm552
      %v555 = vshrl.u32 %v535, 16
      %v557 = vrot.slane %v555, 4
      %v558 = vshll.u32 %v535, 16
      %v560 = vrot.slane %v558, 5
      %v561 = vor.u32 %v557, %v560
      %v562 = vrot.slane %v561, 4
      %v564 = vshll.u32 %v536, 16
      %v566 = vrot.slane %v564, 5
      %v567 = vsel %vm553, %v562, %v566
      %v569 = vshrl.u32 %v537, 16
      %v571 = vrot.slane %v569, 4
      %v572 = vshll.u32 %v537, 16
      %v574 = vrot.slane %v572, 5
      %v575 = vor.u32 %v571, %v574
      %v576 = vrot.slane %v575, 4
      %v578 = vshll.u32 %v538, 16
      %v580 = vrot.slane %v578, 5
      %v581 = vsel %vm553, %v576, %v580
      %v583 = vshrl.u32 %v539, 16
      %v585 = vrot.slane %v583, 4
      %v586 = vshll.u32 %v539, 16
      %v588 = vrot.slane %v586, 5
      %v589 = vor.u32 %v585, %v588
      %v590 = vrot.slane %v589, 4
      %v592 = vshll.u32 %v540, 16
      %v594 = vrot.slane %v592, 5
      %v595 = vsel %vm553, %v590, %v594
      %v597 = vshrl.u32 %v541, 16
      %v599 = vrot.slane %v597, 4
      %v600 = vshll.u32 %v541, 16
      %v602 = vrot.slane %v600, 5
      %v603 = vor.u32 %v599, %v602
      %v604 = vrot.slane %v603, 4
      %v606 = vshll.u32 %v542, 16
      %v608 = vrot.slane %v606, 5
      %v609 = vsel %vm553, %v604, %v608
      %v611 = vshrl.u32 %v543, 16
      %v613 = vrot.slane %v611, 4
      %v614 = vshll.u32 %v543, 16
      %v616 = vrot.slane %v614, 5
      %v617 = vor.u32 %v613, %v616
      %v618 = vrot.slane %v617, 4
      %v620 = vshll.u32 %v544, 16
      %v622 = vrot.slane %v620, 5
      %v623 = vsel %vm553, %v618, %v622
      %v625 = vshrl.u32 %v545, 16
      %v627 = vrot.slane %v625, 4
      %v628 = vshll.u32 %v545, 16
      %v630 = vrot.slane %v628, 5
      %v631 = vor.u32 %v627, %v630
      %v632 = vrot.slane %v631, 4
      %v634 = vshll.u32 %v546, 16
      %v636 = vrot.slane %v634, 5
      %v637 = vsel %vm553, %v632, %v636
      %v639 = vshrl.u32 %v547, 16
      %v641 = vrot.slane %v639, 4
      %v642 = vshll.u32 %v547, 16
      %v644 = vrot.slane %v642, 5
      %v645 = vor.u32 %v641, %v644
      %v646 = vrot.slane %v645, 4
      %v648 = vshll.u32 %v548, 16
      %v650 = vrot.slane %v648, 5
      %v651 = vsel %vm553, %v646, %v650
      %v653 = vshrl.u32 %v549, 16
      %v655 = vrot.slane %v653, 4
      %v656 = vshll.u32 %v549, 16
      %v658 = vrot.slane %v656, 5
      %v659 = vor.u32 %v655, %v658
      %v660 = vrot.slane %v659, 4
      %v662 = vshll.u32 %v550, 16
      %v664 = vrot.slane %v662, 5
      %v665 = vsel %vm553, %v660, %v664
      %v666 = vld [vmem:[#allocation2] sm:$0xff]
      %v667 = vld [vmem:[#allocation2 + $0x8] sm:$0xff]
      %v668 = vld [vmem:[#allocation2 + $0x10] sm:$0xff]
      %v669 = vld [vmem:[#allocation2 + $0x18] sm:$0xff]
      %v670 = vld [vmem:[#allocation2 + $0x20] sm:$0xff]
      %v671 = vld [vmem:[#allocation2 + $0x28] sm:$0xff]
      %v672 = vld [vmem:[#allocation2 + $0x30] sm:$0xff]
      %v673 = vld [vmem:[#allocation2 + $0x38] sm:$0xff]
      %s674 = scalar_lea.vmem %s215, 128
      %v675 = vld [vmem:[%s674] sm:$0xf]
      %v676 = vld [vmem:[%s674 + $0x4] sm:$0xf]
      %v677 = vld [vmem:[%s674 + $0x8] sm:$0xf]
      %v678 = vld [vmem:[%s674 + $0xc] sm:$0xf]
      %v679 = vld [vmem:[%s674 + $0x10] sm:$0xf]
      %v680 = vld [vmem:[%s674 + $0x14] sm:$0xf]
      %v681 = vld [vmem:[%s674 + $0x18] sm:$0xf]
      %v682 = vld [vmem:[%s674 + $0x1c] sm:$0xf]
      %v683 = vld [vmem:[%s674 + $0x20] sm:$0xf]
      %v684 = vld [vmem:[%s674 + $0x24] sm:$0xf]
      %v685 = vld [vmem:[%s674 + $0x28] sm:$0xf]
      %v686 = vld [vmem:[%s674 + $0x2c] sm:$0xf]
      %v687 = vld [vmem:[%s674 + $0x30] sm:$0xf]
      %v688 = vld [vmem:[%s674 + $0x34] sm:$0xf]
      %v689 = vld [vmem:[%s674 + $0x38] sm:$0xf]
      %v690 = vld [vmem:[%s674 + $0x3c] sm:$0xf]
      %v691 = vunpack.c.l.b16 %v567
      %v692 = vunpack.c.l.b16 %v581
      %v693 = vunpack.c.l.b16 %v595
      %v694 = vunpack.c.l.b16 %v609
      %v695 = vunpack.c.l.b16 %v623
      %v696 = vunpack.c.l.b16 %v637
      %v697 = vunpack.c.l.b16 %v651
      %v698 = vunpack.c.l.b16 %v665
      %v699 = vpack.c.b16 %v692, %v691
      %v700 = vpack.c.b16 %v694, %v693
      %v701 = vpack.c.b16 %v696, %v695
      %v702 = vpack.c.b16 %v698, %v697
      %v723 = vunpack.c.l.b16 %v675
      %v724 = vunpack.c.l.b16 %v676
      %v725 = vunpack.c.l.b16 %v677
      %v726 = vunpack.c.l.b16 %v678
      %v727 = vunpack.c.l.b16 %v679
      %v728 = vunpack.c.l.b16 %v680
      %v729 = vunpack.c.l.b16 %v681
      %v730 = vunpack.c.l.b16 %v682
      %v731 = vunpack.c.l.b16 %v683
      %v732 = vunpack.c.l.b16 %v684
      %v733 = vunpack.c.l.b16 %v685
      %v734 = vunpack.c.l.b16 %v686
      %v735 = vunpack.c.l.b16 %v687
      %v736 = vunpack.c.l.b16 %v688
      %v737 = vunpack.c.l.b16 %v689
      %v738 = vunpack.c.l.b16 %v690
      %v739 = vpack.c.b16 %v724, %v723
      %v740 = vpack.c.b16 %v726, %v725
      %v741 = vpack.c.b16 %v728, %v727
      %v742 = vpack.c.b16 %v730, %v729
      %v743 = vpack.c.b16 %v732, %v731
      %v744 = vpack.c.b16 %v734, %v733
      %v745 = vpack.c.b16 %v736, %v735
      %v746 = vpack.c.b16 %v738, %v737
      %755 = vmatpush.bf16.msra.mxu0 %v746
      %756 = vmatpush.bf16.msra.mxu0 %v745
      %757 = vmatpush.bf16.msra.mxu0 %v744
      %758 = vmatpush.bf16.msra.mxu0 %v743
      %759 = vmatpush.bf16.msra.mxu0 %v742
      %760 = vmatpush.bf16.msra.mxu0 %v741
      %761 = vmatpush.bf16.msra.mxu0 %v740
      %762 = vmatpush.bf16.msra.mxu0 %v739
      %763 = vmatmul.bf16.gmra.mxu0 %v699
      %v764 = vpop.f32.mrf.mxu0
      %v765 = vadd.f32 0.0, %v764
      %v766 = vpop.f32.mrf.mxu0
      %v767 = vadd.f32 0.0, %v766
      %768 = vmatmul.bf16.gmra.mxu0 %v700
      %v769 = vpop.f32.mrf.mxu0
      %v770 = vadd.f32 0.0, %v769
      %v771 = vpop.f32.mrf.mxu0
      %v772 = vadd.f32 0.0, %v771
      %773 = vmatmul.bf16.gmra.mxu0 %v701
      %v774 = vpop.f32.mrf.mxu0
      %v775 = vadd.f32 0.0, %v774
      %v776 = vpop.f32.mrf.mxu0
      %v777 = vadd.f32 0.0, %v776
      %778 = vmatmul.bf16.gmra.mxu0 %v702
      %v779 = vpop.f32.mrf.mxu0
      %v780 = vadd.f32 0.0, %v779
      %v781 = vpop.f32.mrf.mxu0
      %v782 = vadd.f32 0.0, %v781
      %783 = vdwg.mxu0
      %v784 = vadd.f32 %v666, %v765
      %v785 = vadd.f32 %v667, %v767
      %v786 = vadd.f32 %v668, %v770
      %v787 = vadd.f32 %v669, %v772
      %v788 = vadd.f32 %v670, %v775
      %v789 = vadd.f32 %v671, %v777
      %v790 = vadd.f32 %v672, %v780
      %v791 = vadd.f32 %v673, %v782
      %792 = vst [vmem:[#allocation2] sm:$0xff] %v784
      %793 = vst [vmem:[#allocation2 + $0x8] sm:$0xff] %v785
      %794 = vst [vmem:[#allocation2 + $0x10] sm:$0xff] %v786
      %795 = vst [vmem:[#allocation2 + $0x18] sm:$0xff] %v787
      %796 = vst [vmem:[#allocation2 + $0x20] sm:$0xff] %v788
      %797 = vst [vmem:[#allocation2 + $0x28] sm:$0xff] %v789
      %798 = vst [vmem:[#allocation2 + $0x30] sm:$0xff] %v790
      %799 = vst [vmem:[#allocation2 + $0x38] sm:$0xff] %v791
      %s800 = scalar_lea.vmem %s210, 144
      %v801 = vld [vmem:[%s800] sm:$0xf]
      %v802 = vld [vmem:[%s800 + $0x8] sm:$0xf]
      %v803 = vld [vmem:[%s800 + $0x10] sm:$0xf]
      %v804 = vld [vmem:[%s800 + $0x18] sm:$0xf]
      %v805 = vld [vmem:[%s800 + $0x20] sm:$0xf]
      %v806 = vld [vmem:[%s800 + $0x28] sm:$0xf]
      %v807 = vld [vmem:[%s800 + $0x30] sm:$0xf]
      %v808 = vld [vmem:[%s800 + $0x38] sm:$0xf]
      %v809 = vld [vmem:[#allocation2] sm:$0xff]
      %v810 = vld [vmem:[#allocation2 + $0x8] sm:$0xff]
      %v811 = vld [vmem:[#allocation2 + $0x10] sm:$0xff]
      %v812 = vld [vmem:[#allocation2 + $0x18] sm:$0xff]
      %v813 = vld [vmem:[#allocation2 + $0x20] sm:$0xff]
      %v814 = vld [vmem:[#allocation2 + $0x28] sm:$0xff]
      %v815 = vld [vmem:[#allocation2 + $0x30] sm:$0xff]
      %v816 = vld [vmem:[#allocation2 + $0x38] sm:$0xff]
      %s817 = scalar_lea.vmem %s215, 192
      %v818 = vld [vmem:[%s817] sm:$0xf]
      %v819 = vld [vmem:[%s817 + $0x4] sm:$0xf]
      %v820 = vld [vmem:[%s817 + $0x8] sm:$0xf]
      %v821 = vld [vmem:[%s817 + $0xc] sm:$0xf]
      %v822 = vld [vmem:[%s817 + $0x10] sm:$0xf]
      %v823 = vld [vmem:[%s817 + $0x14] sm:$0xf]
      %v824 = vld [vmem:[%s817 + $0x18] sm:$0xf]
      %v825 = vld [vmem:[%s817 + $0x1c] sm:$0xf]
      %v826 = vld [vmem:[%s817 + $0x20] sm:$0xf]
      %v827 = vld [vmem:[%s817 + $0x24] sm:$0xf]
      %v828 = vld [vmem:[%s817 + $0x28] sm:$0xf]
      %v829 = vld [vmem:[%s817 + $0x2c] sm:$0xf]
      %v830 = vld [vmem:[%s817 + $0x30] sm:$0xf]
      %v831 = vld [vmem:[%s817 + $0x34] sm:$0xf]
      %v832 = vld [vmem:[%s817 + $0x38] sm:$0xf]
      %v833 = vld [vmem:[%s817 + $0x3c] sm:$0xf]
      %v842 = vunpack.c.l.b16 %v801
      %v843 = vunpack.c.l.b16 %v802
      %v844 = vunpack.c.l.b16 %v803
      %v845 = vunpack.c.l.b16 %v804
      %v846 = vunpack.c.l.b16 %v805
      %v847 = vunpack.c.l.b16 %v806
      %v848 = vunpack.c.l.b16 %v807
      %v849 = vunpack.c.l.b16 %v808
      %v850 = vpack.c.b16 %v843, %v842
      %v851 = vpack.c.b16 %v845, %v844
      %v852 = vpack.c.b16 %v847, %v846
      %v853 = vpack.c.b16 %v849, %v848
      %v874 = vunpack.c.l.b16 %v818
      %v875 = vunpack.c.l.b16 %v819
      %v876 = vunpack.c.l.b16 %v820
      %v877 = vunpack.c.l.b16 %v821
      %v878 = vunpack.c.l.b16 %v822
      %v879 = vunpack.c.l.b16 %v823
      %v880 = vunpack.c.l.b16 %v824
      %v881 = vunpack.c.l.b16 %v825
      %v882 = vunpack.c.l.b16 %v826
      %v883 = vunpack.c.l.b16 %v827
      %v884 = vunpack.c.l.b16 %v828
      %v885 = vunpack.c.l.b16 %v829
      %v886 = vunpack.c.l.b16 %v830
      %v887 = vunpack.c.l.b16 %v831
      %v888 = vunpack.c.l.b16 %v832
      %v889 = vunpack.c.l.b16 %v833
      %v890 = vpack.c.b16 %v875, %v874
      %v891 = vpack.c.b16 %v877, %v876
      %v892 = vpack.c.b16 %v879, %v878
      %v893 = vpack.c.b16 %v881, %v880
      %v894 = vpack.c.b16 %v883, %v882
      %v895 = vpack.c.b16 %v885, %v884
      %v896 = vpack.c.b16 %v887, %v886
      %v897 = vpack.c.b16 %v889, %v888
      %906 = vmatpush.bf16.msra.mxu0 %v897
      %907 = vmatpush.bf16.msra.mxu0 %v896
      %908 = vmatpush.bf16.msra.mxu0 %v895
      %909 = vmatpush.bf16.msra.mxu0 %v894
      %910 = vmatpush.bf16.msra.mxu0 %v893
      %911 = vmatpush.bf16.msra.mxu0 %v892
      %912 = vmatpush.bf16.msra.mxu0 %v891
      %913 = vmatpush.bf16.msra.mxu0 %v890
      %914 = vmatmul.bf16.gmra.mxu0 %v850
      %v915 = vpop.f32.mrf.mxu0
      %v916 = vadd.f32 0.0, %v915
      %v917 = vpop.f32.mrf.mxu0
      %v918 = vadd.f32 0.0, %v917
      %919 = vmatmul.bf16.gmra.mxu0 %v851
      %v920 = vpop.f32.mrf.mxu0
      %v921 = vadd.f32 0.0, %v920
      %v922 = vpop.f32.mrf.mxu0
      %v923 = vadd.f32 0.0, %v922
      %924 = vmatmul.bf16.gmra.mxu0 %v852
      %v925 = vpop.f32.mrf.mxu0
      %v926 = vadd.f32 0.0, %v925
      %v927 = vpop.f32.mrf.mxu0
      %v928 = vadd.f32 0.0, %v927
      %929 = vmatmul.bf16.gmra.mxu0 %v853
      %v930 = vpop.f32.mrf.mxu0
      %v931 = vadd.f32 0.0, %v930
      %v932 = vpop.f32.mrf.mxu0
      %v933 = vadd.f32 0.0, %v932
      %934 = vdwg.mxu0
      %v935 = vadd.f32 %v809, %v916
      %v936 = vadd.f32 %v810, %v918
      %v937 = vadd.f32 %v811, %v921
      %v938 = vadd.f32 %v812, %v923
      %v939 = vadd.f32 %v813, %v926
      %v940 = vadd.f32 %v814, %v928
      %v941 = vadd.f32 %v815, %v931
      %v942 = vadd.f32 %v816, %v933
      %943 = vst [vmem:[#allocation2] sm:$0xff] %v935
      %944 = vst [vmem:[#allocation2 + $0x8] sm:$0xff] %v936
      %945 = vst [vmem:[#allocation2 + $0x10] sm:$0xff] %v937
      %946 = vst [vmem:[#allocation2 + $0x18] sm:$0xff] %v938
      %947 = vst [vmem:[#allocation2 + $0x20] sm:$0xff] %v939
      %948 = vst [vmem:[#allocation2 + $0x28] sm:$0xff] %v940
      %949 = vst [vmem:[#allocation2 + $0x30] sm:$0xff] %v941
      %950 = vst [vmem:[#allocation2 + $0x38] sm:$0xff] %v942
      %s951 = scalar_lea.vmem %s210, 216
      %v952 = vld [vmem:[%s951] sm:$0xf]
      %v953 = vld [vmem:[%s951 + $0x8] sm:$0xf]
      %v954 = vld [vmem:[%s951 + $0x10] sm:$0xf]
      %v955 = vld [vmem:[%s951 + $0x18] sm:$0xf]
      %v956 = vld [vmem:[%s951 + $0x20] sm:$0xf]
      %v957 = vld [vmem:[%s951 + $0x28] sm:$0xf]
      %v958 = vld [vmem:[%s951 + $0x30] sm:$0xf]
      %v959 = vld [vmem:[%s951 + $0x38] sm:$0xf]
      %v960 = vld [vmem:[#allocation2] sm:$0xff]
      %v961 = vld [vmem:[#allocation2 + $0x8] sm:$0xff]
      %v962 = vld [vmem:[#allocation2 + $0x10] sm:$0xff]
      %v963 = vld [vmem:[#allocation2 + $0x18] sm:$0xff]
      %v964 = vld [vmem:[#allocation2 + $0x20] sm:$0xff]
      %v965 = vld [vmem:[#allocation2 + $0x28] sm:$0xff]
      %v966 = vld [vmem:[#allocation2 + $0x30] sm:$0xff]
      %v967 = vld [vmem:[#allocation2 + $0x38] sm:$0xff]
      %s968 = scalar_lea.vmem %s215, 256
      %v969 = vld [vmem:[%s968] sm:$0xf]
      %v970 = vld [vmem:[%s968 + $0x4] sm:$0xf]
      %v971 = vld [vmem:[%s968 + $0x8] sm:$0xf]
      %v972 = vld [vmem:[%s968 + $0xc] sm:$0xf]
      %v973 = vld [vmem:[%s968 + $0x10] sm:$0xf]
      %v974 = vld [vmem:[%s968 + $0x14] sm:$0xf]
      %v975 = vld [vmem:[%s968 + $0x18] sm:$0xf]
      %v976 = vld [vmem:[%s968 + $0x1c] sm:$0xf]
      %v977 = vld [vmem:[%s968 + $0x20] sm:$0xf]
      %v978 = vld [vmem:[%s968 + $0x24] sm:$0xf]
      %v979 = vld [vmem:[%s968 + $0x28] sm:$0xf]
      %v980 = vld [vmem:[%s968 + $0x2c] sm:$0xf]
      %v981 = vld [vmem:[%s968 + $0x30] sm:$0xf]
      %v982 = vld [vmem:[%s968 + $0x34] sm:$0xf]
      %v983 = vld [vmem:[%s968 + $0x38] sm:$0xf]
      %v984 = vld [vmem:[%s968 + $0x3c] sm:$0xf]
      %v993 = vunpack.c.l.b16 %v952
      %v994 = vunpack.c.l.b16 %v953
      %v995 = vunpack.c.l.b16 %v954
      %v996 = vunpack.c.l.b16 %v955
      %v997 = vunpack.c.l.b16 %v956
      %v998 = vunpack.c.l.b16 %v957
      %v999 = vunpack.c.l.b16 %v958
      %v1000 = vunpack.c.l.b16 %v959
      %v1001 = vpack.c.b16 %v994, %v993
      %v1002 = vpack.c.b16 %v996, %v995
      %v1003 = vpack.c.b16 %v998, %v997
      %v1004 = vpack.c.b16 %v1000, %v999
      %v1025 = vunpack.c.l.b16 %v969
      %v1026 = vunpack.c.l.b16 %v970
      %v1027 = vunpack.c.l.b16 %v971
      %v1028 = vunpack.c.l.b16 %v972
      %v1029 = vunpack.c.l.b16 %v973
      %v1030 = vunpack.c.l.b16 %v974
      %v1031 = vunpack.c.l.b16 %v975
      %v1032 = vunpack.c.l.b16 %v976
      %v1033 = vunpack.c.l.b16 %v977
      %v1034 = vunpack.c.l.b16 %v978
      %v1035 = vunpack.c.l.b16 %v979
      %v1036 = vunpack.c.l.b16 %v980
      %v1037 = vunpack.c.l.b16 %v981
      %v1038 = vunpack.c.l.b16 %v982
      %v1039 = vunpack.c.l.b16 %v983
      %v1040 = vunpack.c.l.b16 %v984
      %v1041 = vpack.c.b16 %v1026, %v1025
      %v1042 = vpack.c.b16 %v1028, %v1027
      %v1043 = vpack.c.b16 %v1030, %v1029
      %v1044 = vpack.c.b16 %v1032, %v1031
      %v1045 = vpack.c.b16 %v1034, %v1033
      %v1046 = vpack.c.b16 %v1036, %v1035
      %v1047 = vpack.c.b16 %v1038, %v1037
      %v1048 = vpack.c.b16 %v1040, %v1039
      %1057 = vmatpush.bf16.msra.mxu0 %v1048
      %1058 = vmatpush.bf16.msra.mxu0 %v1047
      %1059 = vmatpush.bf16.msra.mxu0 %v1046
      %1060 = vmatpush.bf16.msra.mxu0 %v1045
      %1061 = vmatpush.bf16.msra.mxu0 %v1044
      %1062 = vmatpush.bf16.msra.mxu0 %v1043
      %1063 = vmatpush.bf16.msra.mxu0 %v1042
      %1064 = vmatpush.bf16.msra.mxu0 %v1041
      %1065 = vmatmul.bf16.gmra.mxu0 %v1001
      %v1066 = vpop.f32.mrf.mxu0
      %v1067 = vadd.f32 0.0, %v1066
      %v1068 = vpop.f32.mrf.mxu0
      %v1069 = vadd.f32 0.0, %v1068
      %1070 = vmatmul.bf16.gmra.mxu0 %v1002
      %v1071 = vpop.f32.mrf.mxu0
      %v1072 = vadd.f32 0.0, %v1071
      %v1073 = vpop.f32.mrf.mxu0
      %v1074 = vadd.f32 0.0, %v1073
      %1075 = vmatmul.bf16.gmra.mxu0 %v1003
      %v1076 = vpop.f32.mrf.mxu0
      %v1077 = vadd.f32 0.0, %v1076
      %v1078 = vpop.f32.mrf.mxu0
      %v1079 = vadd.f32 0.0, %v1078
      %1080 = vmatmul.bf16.gmra.mxu0 %v1004
      %v1081 = vpop.f32.mrf.mxu0
      %v1082 = vadd.f32 0.0, %v1081
      %v1083 = vpop.f32.mrf.mxu0
      %v1084 = vadd.f32 0.0, %v1083
      %1085 = vdwg.mxu0
      %v1086 = vadd.f32 %v960, %v1067
      %v1087 = vadd.f32 %v961, %v1069
      %v1088 = vadd.f32 %v962, %v1072
      %v1089 = vadd.f32 %v963, %v1074
      %v1090 = vadd.f32 %v964, %v1077
      %v1091 = vadd.f32 %v965, %v1079
      %v1092 = vadd.f32 %v966, %v1082
      %v1093 = vadd.f32 %v967, %v1084
      %1094 = vst [vmem:[#allocation2] sm:$0xff] %v1086
      %1095 = vst [vmem:[#allocation2 + $0x8] sm:$0xff] %v1087
      %1096 = vst [vmem:[#allocation2 + $0x10] sm:$0xff] %v1088
      %1097 = vst [vmem:[#allocation2 + $0x18] sm:$0xff] %v1089
      %1098 = vst [vmem:[#allocation2 + $0x20] sm:$0xff] %v1090
      %1099 = vst [vmem:[#allocation2 + $0x28] sm:$0xff] %v1091
      %1100 = vst [vmem:[#allocation2 + $0x30] sm:$0xff] %v1092
      %1101 = vst [vmem:[#allocation2 + $0x38] sm:$0xff] %v1093
      %v1102 = vld [vmem:[%s800] sm:$0xf]
      %v1103 = vld [vmem:[%s800 + $0x4] sm:$0x1]
      %v1104 = vld [vmem:[%s800 + $0x8] sm:$0xf]
      %v1105 = vld [vmem:[%s800 + $0xc] sm:$0x1]
      %v1106 = vld [vmem:[%s800 + $0x10] sm:$0xf]
      %v1107 = vld [vmem:[%s800 + $0x14] sm:$0x1]
      %v1108 = vld [vmem:[%s800 + $0x18] sm:$0xf]
      %v1109 = vld [vmem:[%s800 + $0x1c] sm:$0x1]
      %v1110 = vld [vmem:[%s800 + $0x20] sm:$0xf]
      %v1111 = vld [vmem:[%s800 + $0x24] sm:$0x1]
      %v1112 = vld [vmem:[%s800 + $0x28] sm:$0xf]
      %v1113 = vld [vmem:[%s800 + $0x2c] sm:$0x1]
      %v1114 = vld [vmem:[%s800 + $0x30] sm:$0xf]
      %v1115 = vld [vmem:[%s800 + $0x34] sm:$0x1]
      %v1116 = vld [vmem:[%s800 + $0x38] sm:$0xf]
      %v1117 = vld [vmem:[%s800 + $0x3c] sm:$0x1]
      %v1119 = vshrl.u32 %v1102, 16
      %v1121 = vrot.slane %v1119, 4
      %v1122 = vshll.u32 %v1102, 16
      %v1124 = vrot.slane %v1122, 5
      %v1125 = vor.u32 %v1121, %v1124
      %v1126 = vrot.slane %v1125, 4
      %v1128 = vshll.u32 %v1103, 16
      %v1130 = vrot.slane %v1128, 5
      %v1131 = vsel %vm553, %v1126, %v1130
      %v1133 = vshrl.u32 %v1104, 16
      %v1135 = vrot.slane %v1133, 4
      %v1136 = vshll.u32 %v1104, 16
      %v1138 = vrot.slane %v1136, 5
      %v1139 = vor.u32 %v1135, %v1138
      %v1140 = vrot.slane %v1139, 4
      %v1142 = vshll.u32 %v1105, 16
      %v1144 = vrot.slane %v1142, 5
      %v1145 = vsel %vm553, %v1140, %v1144
      %v1147 = vshrl.u32 %v1106, 16
      %v1149 = vrot.slane %v1147, 4
      %v1150 = vshll.u32 %v1106, 16
      %v1152 = vrot.slane %v1150, 5
      %v1153 = vor.u32 %v1149, %v1152
      %v1154 = vrot.slane %v1153, 4
      %v1156 = vshll.u32 %v1107, 16
      %v1158 = vrot.slane %v1156, 5
      %v1159 = vsel %vm553, %v1154, %v1158
      %v1161 = vshrl.u32 %v1108, 16
      %v1163 = vrot.slane %v1161, 4
      %v1164 = vshll.u32 %v1108, 16
      %v1166 = vrot.slane %v1164, 5
      %v1167 = vor.u32 %v1163, %v1166
      %v1168 = vrot.slane %v1167, 4
      %v1170 = vshll.u32 %v1109, 16
      %v1172 = vrot.slane %v1170, 5
      %v1173 = vsel %vm553, %v1168, %v1172
      %v1175 = vshrl.u32 %v1110, 16
      %v1177 = vrot.slane %v1175, 4
      %v1178 = vshll.u32 %v1110, 16
      %v1180 = vrot.slane %v1178, 5
      %v1181 = vor.u32 %v1177, %v1180
      %v1182 = vrot.slane %v1181, 4
      %v1184 = vshll.u32 %v1111, 16
      %v1186 = vrot.slane %v1184, 5
      %v1187 = vsel %vm553, %v1182, %v1186
      %v1189 = vshrl.u32 %v1112, 16
      %v1191 = vrot.slane %v1189, 4
      %v1192 = vshll.u32 %v1112, 16
      %v1194 = vrot.slane %v1192, 5
      %v1195 = vor.u32 %v1191, %v1194
      %v1196 = vrot.slane %v1195, 4
      %v1198 = vshll.u32 %v1113, 16
      %v1200 = vrot.slane %v1198, 5
      %v1201 = vsel %vm553, %v1196, %v1200
      %v1203 = vshrl.u32 %v1114, 16
      %v1205 = vrot.slane %v1203, 4
      %v1206 = vshll.u32 %v1114, 16
      %v1208 = vrot.slane %v1206, 5
      %v1209 = vor.u32 %v1205, %v1208
      %v1210 = vrot.slane %v1209, 4
      %v1212 = vshll.u32 %v1115, 16
      %v1214 = vrot.slane %v1212, 5
      %v1215 = vsel %vm553, %v1210, %v1214
      %v1217 = vshrl.u32 %v1116, 16
      %v1219 = vrot.slane %v1217, 4
      %v1220 = vshll.u32 %v1116, 16
      %v1222 = vrot.slane %v1220, 5
      %v1223 = vor.u32 %v1219, %v1222
      %v1224 = vrot.slane %v1223, 4
      %v1226 = vshll.u32 %v1117, 16
      %v1228 = vrot.slane %v1226, 5
      %v1229 = vsel %vm553, %v1224, %v1228
      %v1230 = vld [vmem:[#allocation2] sm:$0xff]
      %v1231 = vld [vmem:[#allocation2 + $0x8] sm:$0xff]
      %v1232 = vld [vmem:[#allocation2 + $0x10] sm:$0xff]
      %v1233 = vld [vmem:[#allocation2 + $0x18] sm:$0xff]
      %v1234 = vld [vmem:[#allocation2 + $0x20] sm:$0xff]
      %v1235 = vld [vmem:[#allocation2 + $0x28] sm:$0xff]
      %v1236 = vld [vmem:[#allocation2 + $0x30] sm:$0xff]
      %v1237 = vld [vmem:[#allocation2 + $0x38] sm:$0xff]
      %s1238 = scalar_lea.vmem %s215, 320
      %v1239 = vld [vmem:[%s1238] sm:$0xf]
      %v1240 = vld [vmem:[%s1238 + $0x4] sm:$0xf]
      %v1241 = vld [vmem:[%s1238 + $0x8] sm:$0xf]
      %v1242 = vld [vmem:[%s1238 + $0xc] sm:$0xf]
      %v1243 = vld [vmem:[%s1238 + $0x10] sm:$0xf]
      %v1244 = vld [vmem:[%s1238 + $0x14] sm:$0xf]
      %v1245 = vld [vmem:[%s1238 + $0x18] sm:$0xf]
      %v1246 = vld [vmem:[%s1238 + $0x1c] sm:$0xf]
      %v1247 = vld [vmem:[%s1238 + $0x20] sm:$0xf]
      %v1248 = vld [vmem:[%s1238 + $0x24] sm:$0xf]
      %v1249 = vld [vmem:[%s1238 + $0x28] sm:$0xf]
      %v1250 = vld [vmem:[%s1238 + $0x2c] sm:$0xf]
      %v1251 = vld [vmem:[%s1238 + $0x30] sm:$0xf]
      %v1252 = vld [vmem:[%s1238 + $0x34] sm:$0xf]
      %v1253 = vld [vmem:[%s1238 + $0x38] sm:$0xf]
      %v1254 = vld [vmem:[%s1238 + $0x3c] sm:$0xf]
      %v1255 = vunpack.c.l.b16 %v1131
      %v1256 = vunpack.c.l.b16 %v1145
      %v1257 = vunpack.c.l.b16 %v1159
      %v1258 = vunpack.c.l.b16 %v1173
      %v1259 = vunpack.c.l.b16 %v1187
      %v1260 = vunpack.c.l.b16 %v1201
      %v1261 = vunpack.c.l.b16 %v1215
      %v1262 = vunpack.c.l.b16 %v1229
      %v1263 = vpack.c.b16 %v1256, %v1255
      %v1264 = vpack.c.b16 %v1258, %v1257
      %v1265 = vpack.c.b16 %v1260, %v1259
      %v1266 = vpack.c.b16 %v1262, %v1261
      %v1287 = vunpack.c.l.b16 %v1239
      %v1288 = vunpack.c.l.b16 %v1240
      %v1289 = vunpack.c.l.b16 %v1241
      %v1290 = vunpack.c.l.b16 %v1242
      %v1291 = vunpack.c.l.b16 %v1243
      %v1292 = vunpack.c.l.b16 %v1244
      %v1293 = vunpack.c.l.b16 %v1245
      %v1294 = vunpack.c.l.b16 %v1246
      %v1295 = vunpack.c.l.b16 %v1247
      %v1296 = vunpack.c.l.b16 %v1248
      %v1297 = vunpack.c.l.b16 %v1249
      %v1298 = vunpack.c.l.b16 %v1250
      %v1299 = vunpack.c.l.b16 %v1251
      %v1300 = vunpack.c.l.b16 %v1252
      %v1301 = vunpack.c.l.b16 %v1253
      %v1302 = vunpack.c.l.b16 %v1254
      %v1303 = vpack.c.b16 %v1288, %v1287
      %v1304 = vpack.c.b16 %v1290, %v1289
      %v1305 = vpack.c.b16 %v1292, %v1291
      %v1306 = vpack.c.b16 %v1294, %v1293
      %v1307 = vpack.c.b16 %v1296, %v1295
      %v1308 = vpack.c.b16 %v1298, %v1297
      %v1309 = vpack.c.b16 %v1300, %v1299
      %v1310 = vpack.c.b16 %v1302, %v1301
      %1319 = vmatpush.bf16.msra.mxu0 %v1310
      %1320 = vmatpush.bf16.msra.mxu0 %v1309
      %1321 = vmatpush.bf16.msra.mxu0 %v1308
      %1322 = vmatpush.bf16.msra.mxu0 %v1307
      %1323 = vmatpush.bf16.msra.mxu0 %v1306
      %1324 = vmatpush.bf16.msra.mxu0 %v1305
      %1325 = vmatpush.bf16.msra.mxu0 %v1304
      %1326 = vmatpush.bf16.msra.mxu0 %v1303
      %1327 = vmatmul.bf16.gmra.mxu0 %v1263
      %v1328 = vpop.f32.mrf.mxu0
      %v1329 = vadd.f32 0.0, %v1328
      %v1330 = vpop.f32.mrf.mxu0
      %v1331 = vadd.f32 0.0, %v1330
      %1332 = vmatmul.bf16.gmra.mxu0 %v1264
      %v1333 = vpop.f32.mrf.mxu0
      %v1334 = vadd.f32 0.0, %v1333
      %v1335 = vpop.f32.mrf.mxu0
      %v1336 = vadd.f32 0.0, %v1335
      %1337 = vmatmul.bf16.gmra.mxu0 %v1265
      %v1338 = vpop.f32.mrf.mxu0
      %v1339 = vadd.f32 0.0, %v1338
      %v1340 = vpop.f32.mrf.mxu0
      %v1341 = vadd.f32 0.0, %v1340
      %1342 = vmatmul.bf16.gmra.mxu0 %v1266
      %v1343 = vpop.f32.mrf.mxu0
      %v1344 = vadd.f32 0.0, %v1343
      %v1345 = vpop.f32.mrf.mxu0
      %v1346 = vadd.f32 0.0, %v1345
      %1347 = vdwg.mxu0
      %v1348 = vadd.f32 %v1230, %v1329
      %v1349 = vadd.f32 %v1231, %v1331
      %v1350 = vadd.f32 %v1232, %v1334
      %v1351 = vadd.f32 %v1233, %v1336
      %v1352 = vadd.f32 %v1234, %v1339
      %v1353 = vadd.f32 %v1235, %v1341
      %v1354 = vadd.f32 %v1236, %v1344
      %v1355 = vadd.f32 %v1237, %v1346
      %1356 = vst [vmem:[#allocation2] sm:$0xff] %v1348
      %1357 = vst [vmem:[#allocation2 + $0x8] sm:$0xff] %v1349
      %1358 = vst [vmem:[#allocation2 + $0x10] sm:$0xff] %v1350
      %1359 = vst [vmem:[#allocation2 + $0x18] sm:$0xff] %v1351
      %1360 = vst [vmem:[#allocation2 + $0x20] sm:$0xff] %v1352
      %1361 = vst [vmem:[#allocation2 + $0x28] sm:$0xff] %v1353
      %1362 = vst [vmem:[#allocation2 + $0x30] sm:$0xff] %v1354
      %1363 = vst [vmem:[#allocation2 + $0x38] sm:$0xff] %v1355
      %s1364 = scalar_lea.vmem %s210, 8
      %v1365 = vld [vmem:[%s1364] sm:$0xf]
      %v1366 = vld [vmem:[%s1364 + $0x8] sm:$0xf]
      %v1367 = vld [vmem:[%s1364 + $0x10] sm:$0xf]
      %v1368 = vld [vmem:[%s1364 + $0x18] sm:$0xf]
      %v1369 = vld [vmem:[%s1364 + $0x20] sm:$0xf]
      %v1370 = vld [vmem:[%s1364 + $0x28] sm:$0xf]
      %v1371 = vld [vmem:[%s1364 + $0x30] sm:$0xf]
      %v1372 = vld [vmem:[%s1364 + $0x38] sm:$0xf]
      %v1373 = vld [vmem:[#allocation2] sm:$0xff]
      %v1374 = vld [vmem:[#allocation2 + $0x8] sm:$0xff]
      %v1375 = vld [vmem:[#allocation2 + $0x10] sm:$0xff]
      %v1376 = vld [vmem:[#allocation2 + $0x18] sm:$0xff]
      %v1377 = vld [vmem:[#allocation2 + $0x20] sm:$0xff]
      %v1378 = vld [vmem:[#allocation2 + $0x28] sm:$0xff]
      %v1379 = vld [vmem:[#allocation2 + $0x30] sm:$0xff]
      %v1380 = vld [vmem:[#allocation2 + $0x38] sm:$0xff]
      %s1381 = scalar_lea.vmem %s215, 384
      %v1382 = vld [vmem:[%s1381] sm:$0xf]
      %v1383 = vld [vmem:[%s1381 + $0x4] sm:$0xf]
      %v1384 = vld [vmem:[%s1381 + $0x8] sm:$0xf]
      %v1385 = vld [vmem:[%s1381 + $0xc] sm:$0xf]
      %v1386 = vld [vmem:[%s1381 + $0x10] sm:$0xf]
      %v1387 = vld [vmem:[%s1381 + $0x14] sm:$0xf]
      %v1388 = vld [vmem:[%s1381 + $0x18] sm:$0xf]
      %v1389 = vld [vmem:[%s1381 + $0x1c] sm:$0xf]
      %v1390 = vld [vmem:[%s1381 + $0x20] sm:$0xf]
      %v1391 = vld [vmem:[%s1381 + $0x24] sm:$0xf]
      %v1392 = vld [vmem:[%s1381 + $0x28] sm:$0xf]
      %v1393 = vld [vmem:[%s1381 + $0x2c] sm:$0xf]
      %v1394 = vld [vmem:[%s1381 + $0x30] sm:$0xf]
      %v1395 = vld [vmem:[%s1381 + $0x34] sm:$0xf]
      %v1396 = vld [vmem:[%s1381 + $0x38] sm:$0xf]
      %v1397 = vld [vmem:[%s1381 + $0x3c] sm:$0xf]
      %v1406 = vunpack.c.l.b16 %v1365
      %v1407 = vunpack.c.l.b16 %v1366
      %v1408 = vunpack.c.l.b16 %v1367
      %v1409 = vunpack.c.l.b16 %v1368
      %v1410 = vunpack.c.l.b16 %v1369
      %v1411 = vunpack.c.l.b16 %v1370
      %v1412 = vunpack.c.l.b16 %v1371
      %v1413 = vunpack.c.l.b16 %v1372
      %v1414 = vpack.c.b16 %v1407, %v1406
      %v1415 = vpack.c.b16 %v1409, %v1408
      %v1416 = vpack.c.b16 %v1411, %v1410
      %v1417 = vpack.c.b16 %v1413, %v1412
      %v1438 = vunpack.c.l.b16 %v1382
      %v1439 = vunpack.c.l.b16 %v1383
      %v1440 = vunpack.c.l.b16 %v1384
      %v1441 = vunpack.c.l.b16 %v1385
      %v1442 = vunpack.c.l.b16 %v1386
      %v1443 = vunpack.c.l.b16 %v1387
      %v1444 = vunpack.c.l.b16 %v1388
      %v1445 = vunpack.c.l.b16 %v1389
      %v1446 = vunpack.c.l.b16 %v1390
      %v1447 = vunpack.c.l.b16 %v1391
      %v1448 = vunpack.c.l.b16 %v1392
      %v1449 = vunpack.c.l.b16 %v1393
      %v1450 = vunpack.c.l.b16 %v1394
      %v1451 = vunpack.c.l.b16 %v1395
      %v1452 = vunpack.c.l.b16 %v1396
      %v1453 = vunpack.c.l.b16 %v1397
      %v1454 = vpack.c.b16 %v1439, %v1438
      %v1455 = vpack.c.b16 %v1441, %v1440
      %v1456 = vpack.c.b16 %v1443, %v1442
      %v1457 = vpack.c.b16 %v1445, %v1444
      %v1458 = vpack.c.b16 %v1447, %v1446
      %v1459 = vpack.c.b16 %v1449, %v1448
      %v1460 = vpack.c.b16 %v1451, %v1450
      %v1461 = vpack.c.b16 %v1453, %v1452
      %1470 = vmatpush.bf16.msra.mxu0 %v1461
      %1471 = vmatpush.bf16.msra.mxu0 %v1460
      %1472 = vmatpush.bf16.msra.mxu0 %v1459
      %1473 = vmatpush.bf16.msra.mxu0 %v1458
      %1474 = vmatpush.bf16.msra.mxu0 %v1457
      %1475 = vmatpush.bf16.msra.mxu0 %v1456
      %1476 = vmatpush.bf16.msra.mxu0 %v1455
      %1477 = vmatpush.bf16.msra.mxu0 %v1454
      %1478 = vmatmul.bf16.gmra.mxu0 %v1414
      %v1479 = vpop.f32.mrf.mxu0
      %v1480 = vadd.f32 0.0, %v1479
      %v1481 = vpop.f32.mrf.mxu0
      %v1482 = vadd.f32 0.0, %v1481
      %1483 = vmatmul.bf16.gmra.mxu0 %v1415
      %v1484 = vpop.f32.mrf.mxu0
      %v1485 = vadd.f32 0.0, %v1484
      %v1486 = vpop.f32.mrf.mxu0
      %v1487 = vadd.f32 0.0, %v1486
      %1488 = vmatmul.bf16.gmra.mxu0 %v1416
      %v1489 = vpop.f32.mrf.mxu0
      %v1490 = vadd.f32 0.0, %v1489
      %v1491 = vpop.f32.mrf.mxu0
      %v1492 = vadd.f32 0.0, %v1491
      %1493 = vmatmul.bf16.gmra.mxu0 %v1417
      %v1494 = vpop.f32.mrf.mxu0
      %v1495 = vadd.f32 0.0, %v1494
      %v1496 = vpop.f32.mrf.mxu0
      %v1497 = vadd.f32 0.0, %v1496
      %1498 = vdwg.mxu0
      %v1499 = vadd.f32 %v1373, %v1480
      %v1500 = vadd.f32 %v1374, %v1482
      %v1501 = vadd.f32 %v1375, %v1485
      %v1502 = vadd.f32 %v1376, %v1487
      %v1503 = vadd.f32 %v1377, %v1490
      %v1504 = vadd.f32 %v1378, %v1492
      %v1505 = vadd.f32 %v1379, %v1495
      %v1506 = vadd.f32 %v1380, %v1497
      %1507 = vst [vmem:[#allocation2] sm:$0xff] %v1499
      %1508 = vst [vmem:[#allocation2 + $0x8] sm:$0xff] %v1500
      %1509 = vst [vmem:[#allocation2 + $0x10] sm:$0xff] %v1501
      %1510 = vst [vmem:[#allocation2 + $0x18] sm:$0xff] %v1502
      %1511 = vst [vmem:[#allocation2 + $0x20] sm:$0xff] %v1503
      %1512 = vst [vmem:[#allocation2 + $0x28] sm:$0xff] %v1504
      %1513 = vst [vmem:[#allocation2 + $0x30] sm:$0xff] %v1505
      %1514 = vst [vmem:[#allocation2 + $0x38] sm:$0xff] %v1506
      %s1515 = scalar_lea.vmem %s210, 80
      %v1516 = vld [vmem:[%s1515] sm:$0xf]
      %v1517 = vld [vmem:[%s1515 + $0x8] sm:$0xf]
      %v1518 = vld [vmem:[%s1515 + $0x10] sm:$0xf]
      %v1519 = vld [vmem:[%s1515 + $0x18] sm:$0xf]
      %v1520 = vld [vmem:[%s1515 + $0x20] sm:$0xf]
      %v1521 = vld [vmem:[%s1515 + $0x28] sm:$0xf]
      %v1522 = vld [vmem:[%s1515 + $0x30] sm:$0xf]
      %v1523 = vld [vmem:[%s1515 + $0x38] sm:$0xf]
      %v1524 = vld [vmem:[#allocation2] sm:$0xff]
      %v1525 = vld [vmem:[#allocation2 + $0x8] sm:$0xff]
      %v1526 = vld [vmem:[#allocation2 + $0x10] sm:$0xff]
      %v1527 = vld [vmem:[#allocation2 + $0x18] sm:$0xff]
      %v1528 = vld [vmem:[#allocation2 + $0x20] sm:$0xff]
      %v1529 = vld [vmem:[#allocation2 + $0x28] sm:$0xff]
      %v1530 = vld [vmem:[#allocation2 + $0x30] sm:$0xff]
      %v1531 = vld [vmem:[#allocation2 + $0x38] sm:$0xff]
      %s1532 = scalar_lea.vmem %s215, 448
      %v1533 = vld [vmem:[%s1532] sm:$0xf]
      %v1534 = vld [vmem:[%s1532 + $0x4] sm:$0xf]
      %v1535 = vld [vmem:[%s1532 + $0x8] sm:$0xf]
      %v1536 = vld [vmem:[%s1532 + $0xc] sm:$0xf]
      %v1537 = vld [vmem:[%s1532 + $0x10] sm:$0xf]
      %v1538 = vld [vmem:[%s1532 + $0x14] sm:$0xf]
      %v1539 = vld [vmem:[%s1532 + $0x18] sm:$0xf]
      %v1540 = vld [vmem:[%s1532 + $0x1c] sm:$0xf]
      %v1541 = vld [vmem:[%s1532 + $0x20] sm:$0xf]
      %v1542 = vld [vmem:[%s1532 + $0x24] sm:$0xf]
      %v1543 = vld [vmem:[%s1532 + $0x28] sm:$0xf]
      %v1544 = vld [vmem:[%s1532 + $0x2c] sm:$0xf]
      %v1545 = vld [vmem:[%s1532 + $0x30] sm:$0xf]
      %v1546 = vld [vmem:[%s1532 + $0x34] sm:$0xf]
      %v1547 = vld [vmem:[%s1532 + $0x38] sm:$0xf]
      %v1548 = vld [vmem:[%s1532 + $0x3c] sm:$0xf]
      %v1557 = vunpack.c.l.b16 %v1516
      %v1558 = vunpack.c.l.b16 %v1517
      %v1559 = vunpack.c.l.b16 %v1518
      %v1560 = vunpack.c.l.b16 %v1519
      %v1561 = vunpack.c.l.b16 %v1520
      %v1562 = vunpack.c.l.b16 %v1521
      %v1563 = vunpack.c.l.b16 %v1522
      %v1564 = vunpack.c.l.b16 %v1523
      %v1565 = vpack.c.b16 %v1558, %v1557
      %v1566 = vpack.c.b16 %v1560, %v1559
      %v1567 = vpack.c.b16 %v1562, %v1561
      %v1568 = vpack.c.b16 %v1564, %v1563
      %v1589 = vunpack.c.l.b16 %v1533
      %v1590 = vunpack.c.l.b16 %v1534
      %v1591 = vunpack.c.l.b16 %v1535
      %v1592 = vunpack.c.l.b16 %v1536
      %v1593 = vunpack.c.l.b16 %v1537
      %v1594 = vunpack.c.l.b16 %v1538
      %v1595 = vunpack.c.l.b16 %v1539
      %v1596 = vunpack.c.l.b16 %v1540
      %v1597 = vunpack.c.l.b16 %v1541
      %v1598 = vunpack.c.l.b16 %v1542
      %v1599 = vunpack.c.l.b16 %v1543
      %v1600 = vunpack.c.l.b16 %v1544
      %v1601 = vunpack.c.l.b16 %v1545
      %v1602 = vunpack.c.l.b16 %v1546
      %v1603 = vunpack.c.l.b16 %v1547
      %v1604 = vunpack.c.l.b16 %v1548
      %v1605 = vpack.c.b16 %v1590, %v1589
      %v1606 = vpack.c.b16 %v1592, %v1591
      %v1607 = vpack.c.b16 %v1594, %v1593
      %v1608 = vpack.c.b16 %v1596, %v1595
      %v1609 = vpack.c.b16 %v1598, %v1597
      %v1610 = vpack.c.b16 %v1600, %v1599
      %v1611 = vpack.c.b16 %v1602, %v1601
      %v1612 = vpack.c.b16 %v1604, %v1603
      %1621 = vmatpush.bf16.msra.mxu0 %v1612
      %1622 = vmatpush.bf16.msra.mxu0 %v1611
      %1623 = vmatpush.bf16.msra.mxu0 %v1610
      %1624 = vmatpush.bf16.msra.mxu0 %v1609
      %1625 = vmatpush.bf16.msra.mxu0 %v1608
      %1626 = vmatpush.bf16.msra.mxu0 %v1607
      %1627 = vmatpush.bf16.msra.mxu0 %v1606
      %1628 = vmatpush.bf16.msra.mxu0 %v1605
      %1629 = vmatmul.bf16.gmra.mxu0 %v1565
      %v1630 = vpop.f32.mrf.mxu0
      %v1631 = vadd.f32 0.0, %v1630
      %v1632 = vpop.f32.mrf.mxu0
      %v1633 = vadd.f32 0.0, %v1632
      %1634 = vmatmul.bf16.gmra.mxu0 %v1566
      %v1635 = vpop.f32.mrf.mxu0
      %v1636 = vadd.f32 0.0, %v1635
      %v1637 = vpop.f32.mrf.mxu0
      %v1638 = vadd.f32 0.0, %v1637
      %1639 = vmatmul.bf16.gmra.mxu0 %v1567
      %v1640 = vpop.f32.mrf.mxu0
      %v1641 = vadd.f32 0.0, %v1640
      %v1642 = vpop.f32.mrf.mxu0
      %v1643 = vadd.f32 0.0, %v1642
      %1644 = vmatmul.bf16.gmra.mxu0 %v1568
      %v1645 = vpop.f32.mrf.mxu0
      %v1646 = vadd.f32 0.0, %v1645
      %v1647 = vpop.f32.mrf.mxu0
      %v1648 = vadd.f32 0.0, %v1647
      %1649 = vdwg.mxu0
      %v1650 = vadd.f32 %v1524, %v1631
      %v1651 = vadd.f32 %v1525, %v1633
      %v1652 = vadd.f32 %v1526, %v1636
      %v1653 = vadd.f32 %v1527, %v1638
      %v1654 = vadd.f32 %v1528, %v1641
      %v1655 = vadd.f32 %v1529, %v1643
      %v1656 = vadd.f32 %v1530, %v1646
      %v1657 = vadd.f32 %v1531, %v1648
      %1658 = vst [vmem:[#allocation2] sm:$0xff] %v1650
      %1659 = vst [vmem:[#allocation2 + $0x8] sm:$0xff] %v1651
      %1660 = vst [vmem:[#allocation2 + $0x10] sm:$0xff] %v1652
      %1661 = vst [vmem:[#allocation2 + $0x18] sm:$0xff] %v1653
      %1662 = vst [vmem:[#allocation2 + $0x20] sm:$0xff] %v1654
      %1663 = vst [vmem:[#allocation2 + $0x28] sm:$0xff] %v1655
      %1664 = vst [vmem:[#allocation2 + $0x30] sm:$0xff] %v1656
      %1665 = vst [vmem:[#allocation2 + $0x38] sm:$0xff] %v1657
      %v1666 = vld [vmem:[%s1364] sm:$0xf]
      %v1667 = vld [vmem:[%s1364 + $0x4] sm:$0x1]
      %v1668 = vld [vmem:[%s1364 + $0x8] sm:$0xf]
      %v1669 = vld [vmem:[%s1364 + $0xc] sm:$0x1]
      %v1670 = vld [vmem:[%s1364 + $0x10] sm:$0xf]
      %v1671 = vld [vmem:[%s1364 + $0x14] sm:$0x1]
      %v1672 = vld [vmem:[%s1364 + $0x18] sm:$0xf]
      %v1673 = vld [vmem:[%s1364 + $0x1c] sm:$0x1]
      %v1674 = vld [vmem:[%s1364 + $0x20] sm:$0xf]
      %v1675 = vld [vmem:[%s1364 + $0x24] sm:$0x1]
      %v1676 = vld [vmem:[%s1364 + $0x28] sm:$0xf]
      %v1677 = vld [vmem:[%s1364 + $0x2c] sm:$0x1]
      %v1678 = vld [vmem:[%s1364 + $0x30] sm:$0xf]
      %v1679 = vld [vmem:[%s1364 + $0x34] sm:$0x1]
      %v1680 = vld [vmem:[%s1364 + $0x38] sm:$0xf]
      %v1681 = vld [vmem:[%s1364 + $0x3c] sm:$0x1]
      %v1683 = vshrl.u32 %v1666, 16
      %v1685 = vrot.slane %v1683, 4
      %v1686 = vshll.u32 %v1666, 16
      %v1688 = vrot.slane %v1686, 5
      %v1689 = vor.u32 %v1685, %v1688
      %v1690 = vrot.slane %v1689, 4
      %v1692 = vshll.u32 %v1667, 16
      %v1694 = vrot.slane %v1692, 5
      %v1695 = vsel %vm553, %v1690, %v1694
      %v1697 = vshrl.u32 %v1668, 16
      %v1699 = vrot.slane %v1697, 4
      %v1700 = vshll.u32 %v1668, 16
      %v1702 = vrot.slane %v1700, 5
      %v1703 = vor.u32 %v1699, %v1702
      %v1704 = vrot.slane %v1703, 4
      %v1706 = vshll.u32 %v1669, 16
      %v1708 = vrot.slane %v1706, 5
      %v1709 = vsel %vm553, %v1704, %v1708
      %v1711 = vshrl.u32 %v1670, 16
      %v1713 = vrot.slane %v1711, 4
      %v1714 = vshll.u32 %v1670, 16
      %v1716 = vrot.slane %v1714, 5
      %v1717 = vor.u32 %v1713, %v1716
      %v1718 = vrot.slane %v1717, 4
      %v1720 = vshll.u32 %v1671, 16
      %v1722 = vrot.slane %v1720, 5
      %v1723 = vsel %vm553, %v1718, %v1722
      %v1725 = vshrl.u32 %v1672, 16
      %v1727 = vrot.slane %v1725, 4
      %v1728 = vshll.u32 %v1672, 16
      %v1730 = vrot.slane %v1728, 5
      %v1731 = vor.u32 %v1727, %v1730
      %v1732 = vrot.slane %v1731, 4
      %v1734 = vshll.u32 %v1673, 16
      %v1736 = vrot.slane %v1734, 5
      %v1737 = vsel %vm553, %v1732, %v1736
      %v1739 = vshrl.u32 %v1674, 16
      %v1741 = vrot.slane %v1739, 4
      %v1742 = vshll.u32 %v1674, 16
      %v1744 = vrot.slane %v1742, 5
      %v1745 = vor.u32 %v1741, %v1744
      %v1746 = vrot.slane %v1745, 4
      %v1748 = vshll.u32 %v1675, 16
      %v1750 = vrot.slane %v1748, 5
      %v1751 = vsel %vm553, %v1746, %v1750
      %v1753 = vshrl.u32 %v1676, 16
      %v1755 = vrot.slane %v1753, 4
      %v1756 = vshll.u32 %v1676, 16
      %v1758 = vrot.slane %v1756, 5
      %v1759 = vor.u32 %v1755, %v1758
      %v1760 = vrot.slane %v1759, 4
      %v1762 = vshll.u32 %v1677, 16
      %v1764 = vrot.slane %v1762, 5
      %v1765 = vsel %vm553, %v1760, %v1764
      %v1767 = vshrl.u32 %v1678, 16
      %v1769 = vrot.slane %v1767, 4
      %v1770 = vshll.u32 %v1678, 16
      %v1772 = vrot.slane %v1770, 5
      %v1773 = vor.u32 %v1769, %v1772
      %v1774 = vrot.slane %v1773, 4
      %v1776 = vshll.u32 %v1679, 16
      %v1778 = vrot.slane %v1776, 5
      %v1779 = vsel %vm553, %v1774, %v1778
      %v1781 = vshrl.u32 %v1680, 16
      %v1783 = vrot.slane %v1781, 4
      %v1784 = vshll.u32 %v1680, 16
      %v1786 = vrot.slane %v1784, 5
      %v1787 = vor.u32 %v1783, %v1786
      %v1788 = vrot.slane %v1787, 4
      %v1790 = vshll.u32 %v1681, 16
      %v1792 = vrot.slane %v1790, 5
      %v1793 = vsel %vm553, %v1788, %v1792
      %v1794 = vld [vmem:[#allocation2] sm:$0xff]
      %v1795 = vld [vmem:[#allocation2 + $0x8] sm:$0xff]
      %v1796 = vld [vmem:[#allocation2 + $0x10] sm:$0xff]
      %v1797 = vld [vmem:[#allocation2 + $0x18] sm:$0xff]
      %v1798 = vld [vmem:[#allocation2 + $0x20] sm:$0xff]
      %v1799 = vld [vmem:[#allocation2 + $0x28] sm:$0xff]
      %v1800 = vld [vmem:[#allocation2 + $0x30] sm:$0xff]
      %v1801 = vld [vmem:[#allocation2 + $0x38] sm:$0xff]
      %s1802 = scalar_lea.vmem %s215, 512
      %v1803 = vld [vmem:[%s1802] sm:$0xf]
      %v1804 = vld [vmem:[%s1802 + $0x4] sm:$0xf]
      %v1805 = vld [vmem:[%s1802 + $0x8] sm:$0xf]
      %v1806 = vld [vmem:[%s1802 + $0xc] sm:$0xf]
      %v1807 = vld [vmem:[%s1802 + $0x10] sm:$0xf]
      %v1808 = vld [vmem:[%s1802 + $0x14] sm:$0xf]
      %v1809 = vld [vmem:[%s1802 + $0x18] sm:$0xf]
      %v1810 = vld [vmem:[%s1802 + $0x1c] sm:$0xf]
      %v1811 = vld [vmem:[%s1802 + $0x20] sm:$0xf]
      %v1812 = vld [vmem:[%s1802 + $0x24] sm:$0xf]
      %v1813 = vld [vmem:[%s1802 + $0x28] sm:$0xf]
      %v1814 = vld [vmem:[%s1802 + $0x2c] sm:$0xf]
      %v1815 = vld [vmem:[%s1802 + $0x30] sm:$0xf]
      %v1816 = vld [vmem:[%s1802 + $0x34] sm:$0xf]
      %v1817 = vld [vmem:[%s1802 + $0x38] sm:$0xf]
      %v1818 = vld [vmem:[%s1802 + $0x3c] sm:$0xf]
      %v1819 = vunpack.c.l.b16 %v1695
      %v1820 = vunpack.c.l.b16 %v1709
      %v1821 = vunpack.c.l.b16 %v1723
      %v1822 = vunpack.c.l.b16 %v1737
      %v1823 = vunpack.c.l.b16 %v1751
      %v1824 = vunpack.c.l.b16 %v1765
      %v1825 = vunpack.c.l.b16 %v1779
      %v1826 = vunpack.c.l.b16 %v1793
      %v1827 = vpack.c.b16 %v1820, %v1819
      %v1828 = vpack.c.b16 %v1822, %v1821
      %v1829 = vpack.c.b16 %v1824, %v1823
      %v1830 = vpack.c.b16 %v1826, %v1825
      %v1851 = vunpack.c.l.b16 %v1803
      %v1852 = vunpack.c.l.b16 %v1804
      %v1853 = vunpack.c.l.b16 %v1805
      %v1854 = vunpack.c.l.b16 %v1806
      %v1855 = vunpack.c.l.b16 %v1807
      %v1856 = vunpack.c.l.b16 %v1808
      %v1857 = vunpack.c.l.b16 %v1809
      %v1858 = vunpack.c.l.b16 %v1810
      %v1859 = vunpack.c.l.b16 %v1811
      %v1860 = vunpack.c.l.b16 %v1812
      %v1861 = vunpack.c.l.b16 %v1813
      %v1862 = vunpack.c.l.b16 %v1814
      %v1863 = vunpack.c.l.b16 %v1815
      %v1864 = vunpack.c.l.b16 %v1816
      %v1865 = vunpack.c.l.b16 %v1817
      %v1866 = vunpack.c.l.b16 %v1818
      %v1867 = vpack.c.b16 %v1852, %v1851
      %v1868 = vpack.c.b16 %v1854, %v1853
      %v1869 = vpack.c.b16 %v1856, %v1855
      %v1870 = vpack.c.b16 %v1858, %v1857
      %v1871 = vpack.c.b16 %v1860, %v1859
      %v1872 = vpack.c.b16 %v1862, %v1861
      %v1873 = vpack.c.b16 %v1864, %v1863
      %v1874 = vpack.c.b16 %v1866, %v1865
      %1883 = vmatpush.bf16.msra.mxu0 %v1874
      %1884 = vmatpush.bf16.msra.mxu0 %v1873
      %1885 = vmatpush.bf16.msra.mxu0 %v1872
      %1886 = vmatpush.bf16.msra.mxu0 %v1871
      %1887 = vmatpush.bf16.msra.mxu0 %v1870
      %1888 = vmatpush.bf16.msra.mxu0 %v1869
      %1889 = vmatpush.bf16.msra.mxu0 %v1868
      %1890 = vmatpush.bf16.msra.mxu0 %v1867
      %1891 = vmatmul.bf16.gmra.mxu0 %v1827
      %v1892 = vpop.f32.mrf.mxu0
      %v1893 = vadd.f32 0.0, %v1892
      %v1894 = vpop.f32.mrf.mxu0
      %v1895 = vadd.f32 0.0, %v1894
      %1896 = vmatmul.bf16.gmra.mxu0 %v1828
      %v1897 = vpop.f32.mrf.mxu0
      %v1898 = vadd.f32 0.0, %v1897
      %v1899 = vpop.f32.mrf.mxu0
      %v1900 = vadd.f32 0.0, %v1899
      %1901 = vmatmul.bf16.gmra.mxu0 %v1829
      %v1902 = vpop.f32.mrf.mxu0
      %v1903 = vadd.f32 0.0, %v1902
      %v1904 = vpop.f32.mrf.mxu0
      %v1905 = vadd.f32 0.0, %v1904
      %1906 = vmatmul.bf16.gmra.mxu0 %v1830
      %v1907 = vpop.f32.mrf.mxu0
      %v1908 = vadd.f32 0.0, %v1907
      %v1909 = vpop.f32.mrf.mxu0
      %v1910 = vadd.f32 0.0, %v1909
      %1911 = vdwg.mxu0
      %v1912 = vadd.f32 %v1794, %v1893
      %v1913 = vadd.f32 %v1795, %v1895
      %v1914 = vadd.f32 %v1796, %v1898
      %v1915 = vadd.f32 %v1797, %v1900
      %v1916 = vadd.f32 %v1798, %v1903
      %v1917 = vadd.f32 %v1799, %v1905
      %v1918 = vadd.f32 %v1800, %v1908
      %v1919 = vadd.f32 %v1801, %v1910
      %1920 = vst [vmem:[#allocation2] sm:$0xff] %v1912
      %1921 = vst [vmem:[#allocation2 + $0x8] sm:$0xff] %v1913
      %1922 = vst [vmem:[#allocation2 + $0x10] sm:$0xff] %v1914
      %1923 = vst [vmem:[#allocation2 + $0x18] sm:$0xff] %v1915
      %1924 = vst [vmem:[#allocation2 + $0x20] sm:$0xff] %v1916
      %1925 = vst [vmem:[#allocation2 + $0x28] sm:$0xff] %v1917
      %1926 = vst [vmem:[#allocation2 + $0x30] sm:$0xff] %v1918
      %1927 = vst [vmem:[#allocation2 + $0x38] sm:$0xff] %v1919
      %v1928 = vld [vmem:[#allocation2] sm:$0xff]
      %v1929 = vld [vmem:[#allocation2 + $0x8] sm:$0xff]
      %v1930 = vld [vmem:[#allocation2 + $0x10] sm:$0xff]
      %v1931 = vld [vmem:[#allocation2 + $0x18] sm:$0xff]
      %v1932 = vld [vmem:[#allocation2 + $0x20] sm:$0xff]
      %v1933 = vld [vmem:[#allocation2 + $0x28] sm:$0xff]
      %v1934 = vld [vmem:[#allocation2 + $0x30] sm:$0xff]
      %v1935 = vld [vmem:[#allocation2 + $0x38] sm:$0xff]
      %v1936 = vld [vmem:[%s218] sm:$0x1]
      %v1938 = vperm.slane %v1936, 0
      %v1940 = vadd.f32 %v1928, %v1938
      %v1941 = vadd.f32 %v1929, %v1938
      %v1942 = vadd.f32 %v1930, %v1938
      %v1943 = vadd.f32 %v1931, %v1938
      %v1944 = vadd.f32 %v1932, %v1938
      %v1945 = vadd.f32 %v1933, %v1938
      %v1946 = vadd.f32 %v1934, %v1938
      %v1947 = vadd.f32 %v1935, %v1938
      %v1948 = vmax.f32 %v1940, 0.0
      %v1949 = vmax.f32 %v1941, 0.0
      %v1950 = vmax.f32 %v1942, 0.0
      %v1951 = vmax.f32 %v1943, 0.0
      %v1952 = vmax.f32 %v1944, 0.0
      %v1953 = vmax.f32 %v1945, 0.0
      %v1954 = vmax.f32 %v1946, 0.0
      %v1955 = vmax.f32 %v1947, 0.0
      %v1956 = vpack.c.bf16 %v1948, %v1948
      %v1957 = vpack.c.bf16 %v1949, %v1949
      %v1958 = vpack.c.bf16 %v1950, %v1950
      %v1959 = vpack.c.bf16 %v1951, %v1951
      %v1960 = vpack.c.bf16 %v1952, %v1952
      %v1961 = vpack.c.bf16 %v1953, %v1953
      %v1962 = vpack.c.bf16 %v1954, %v1954
      %v1963 = vpack.c.bf16 %v1955, %v1955
      %1964 = vst [vmem:[%s226] sm:$0xf] %v1956
      %1965 = vst [vmem:[%s226 + $0x4] sm:$0xf] %v1957
      %1966 = vst [vmem:[%s226 + $0x8] sm:$0xf] %v1958
      %1967 = vst [vmem:[%s226 + $0xc] sm:$0xf] %v1959
      %1968 = vst [vmem:[%s226 + $0x10] sm:$0xf] %v1960
      %1969 = vst [vmem:[%s226 + $0x14] sm:$0xf] %v1961
      %1970 = vst [vmem:[%s226 + $0x18] sm:$0xf] %v1962
      %1971 = vst [vmem:[%s226 + $0x1c] sm:$0xf] %v1963
      %p1972 = scmp.lt.s32.totalorder %s18, 1
      %s1973 = scalar_select %p1972, %s18, 1
      %p1974 = scmp.lt.s32.totalorder %s19, 0
      %s1975 = scalar_select %p1974, %s19, 0
      %s1976 = smul.addr %s1973, 8
      %s1977 = sadd.s32 %s1975, %s1976
      %s1978 = smul.addr %s1977, 4
      %s1979 = scalar_lea.vmem %s3, %s1978
      // Predicated region
      $region33: #{bottleneck_forward.5} parent=31 // pred_check
        %p1980 = pneg %p124
      $region34: #{bottleneck_forward.5} parent=31 // pred_check_branch
        %1982 = sbr.rel (%p1980) target = $region36
      $region35: #{bottleneck_forward.5} parent=31 // pred_region
        _
      $region36: #{bottleneck_forward.5} parent=31 // pred_fallthru
        _
    $region32: #{bottleneck_forward.5} parent=5 // pred_fallthru
      _
    %p1983 = scmp.le.s32.totalorder 2, %s9
    // Predicated region
    $region37: #{bottleneck_forward.5} parent=5 // pred_check
      %p1984 = pneg %p1983
    $region38: #{bottleneck_forward.5} parent=5 // pred_check_branch
      %1986 = sbr.rel (%p1984) target = $region40
    $region39: #{bottleneck_forward.5} parent=5 // pred_region
      %s1987 = ssub.s32 %s9, 2
      // Predicated region
      $region41: #{bottleneck_forward.5} parent=39 // pred_check
        %p1988 = pneg %p130
      $region42: #{bottleneck_forward.5} parent=39 // pred_check_branch
        %1990 = sbr.rel (%p1988) target = $region44
      $region43: #{bottleneck_forward.5} parent=39 // pred_region
        %p1991 = scmp.lt.s32.totalorder %s20, 1
        %s1992 = scalar_select %p1991, %s20, 1
        %p1993 = scmp.lt.s32.totalorder %s21, 0
        %s1994 = scalar_select %p1993, %s21, 0
        %s1995 = smul.addr %s1992, 8
        %s1996 = sadd.s32 %s1994, %s1995
        %s1997 = smul.addr %s1996, 4
        %s1998 = scalar_lea.vmem %s3, %s1997
      $region44: #{bottleneck_forward.5} parent=39 // pred_fallthru
        _
    $region40: #{bottleneck_forward.5} parent=5 // pred_fallthru
      _
  $region6: #{bottleneck_forward.5} parent=0 // loop_footer
    %s13 = sadd.s32 1, %s9
  $region7: #{bottleneck_forward.5} parent=0 // loop_footer_branch
    %8 = sbr.rel target = $region3
  $region8: #{bottleneck_forward.5} parent=0 // loop_exit
    _

</llo_original>
